<compile_context>
chip_gen: v7x
topology: tpu7x:2x2x1
jax: 0.10.0
libtpu: 0.0.40
codegen_flags: <defaults>
</compile_context>

<pallas_src>
import jax
import jax.numpy as jnp
import numpy as np
from jax import lax
from jax.experimental import pallas as pl
from jax.experimental.pallas import tpu as pltpu

_EPS = 1e-5
# TODO(synk): set to jnp.bfloat16 on v6e/v7x for MXU-native throughput at
# production channel counts (and relax the f32 reference tolerance accordingly).
_MATMUL_DTYPE = jnp.float32


def _mm_cast(t):
    return t.astype(_MATMUL_DTYPE)


# ----------------------------------------------------------------------------
# Stage kernels (channels on sublanes, pixels on lanes; one batch tile / step)
# ----------------------------------------------------------------------------
def _stage1_kernel(x_ref, w1_ref, y_ref, ssum_ref, ssq_ref):
    # conv1 (1x1) == (C4, Cin) @ (Cin, L); bias dropped (cancelled by BN1 mean).
    y = jnp.dot(_mm_cast(w1_ref[...]), _mm_cast(x_ref[...]),
                preferred_element_type=jnp.float32)              # (C4, L)
    y_ref[...] = y
    ssum_ref[...] = jnp.sum(y, axis=1, keepdims=True)[None]       # (1, C4, 1)
    ssq_ref[...] = jnp.sum(y * y, axis=1, keepdims=True)[None]


def _make_stage2_kernel(W, C4):
    def kernel(y_ref, sc1_ref, sh1_ref, mr_ref, md_ref,
               wa_ref, wr_ref, wd_ref, wdr_ref,
               d_ref, ssum_ref, ssq_ref):
        L = y_ref.shape[1]
        # BN1 + ReLU folded as per-channel scale/shift computed by the wrapper.
        a = jnp.maximum(y_ref[...] * sc1_ref[...] + sh1_ref[...], 0.0)  # (C4, L)

        mr = mr_ref[...]                       # zero past right image edge (1, L)
        md = md_ref[...]                       # zero past bottom image edge (1, L)
        a_r = pltpu.roll(a, L - 1, 1) * mr              # value at (h,   w+1)
        a_d = pltpu.roll(a, L - W, 1) * md              # value at (h+1, w  )
        a_dr = pltpu.roll(a, L - W - 1, 1) * (mr * md)  # value at (h+1, w+1)

        # ConvTranspose2d(3x3, s=2, p=1, op=1): only the 9 non-zero taps,
        # grouped by which shifted input they consume (no zero-block MXU waste,
        # no ycat materialization).  Row groups = output parities [ee;eo;oe;oo].
        m_a = jnp.dot(_mm_cast(wa_ref[...]), _mm_cast(a),
                      preferred_element_type=jnp.float32)        # (4*C4, L)
        m_r = jnp.dot(_mm_cast(wr_ref[...]), _mm_cast(a_r),
                      preferred_element_type=jnp.float32)        # (2*C4, L)
        m_d = jnp.dot(_mm_cast(wd_ref[...]), _mm_cast(a_d),
                      preferred_element_type=jnp.float32)        # (2*C4, L)
        m_dr = jnp.dot(_mm_cast(wdr_ref[...]), _mm_cast(a_dr),
                       preferred_element_type=jnp.float32)       # (C4, L)

        d_ee = m_a[0:C4]
        d_eo = m_a[C4:2 * C4] + m_r[0:C4]
        d_oe = m_a[2 * C4:3 * C4] + m_d[0:C4]
        d_oo = m_a[3 * C4:4 * C4] + m_r[C4:2 * C4] + m_d[C4:2 * C4] + m_dr

        d_ref[0:C4, :] = d_ee
        d_ref[C4:2 * C4, :] = d_eo
        d_ref[2 * C4:3 * C4, :] = d_oe
        d_ref[3 * C4:4 * C4, :] = d_oo

        def _s(t):
            return jnp.sum(t, axis=1, keepdims=True)

        ssum_ref[...] = jnp.concatenate(
            [_s(d_ee), _s(d_eo), _s(d_oe), _s(d_oo)], axis=0)[None]
        ssq_ref[...] = jnp.concatenate(
            [_s(d_ee * d_ee), _s(d_eo * d_eo), _s(d_oe * d_oe), _s(d_oo * d_oo)],
            axis=0)[None]
    return kernel


def _make_stage3_kernel(C4, Cf):
    def kernel(d_ref, sc2_ref, sh2_ref, w3_ref, c_ref, ssum_ref, ssq_ref):
        # BN2 + ReLU folded as per-channel scale/shift.
        e = jnp.maximum(d_ref[...] * sc2_ref[...] + sh2_ref[...], 0.0)  # (4*C4, L)
        w3 = _mm_cast(w3_ref[...])
        sums, sqs = [], []
        for g in range(4):   # conv3 is block-diagonal over the 4 output parities
            cg = jnp.dot(w3, _mm_cast(e[g * C4:(g + 1) * C4]),
                         preferred_element_type=jnp.float32)             # (Cf, L)
            c_ref[g * Cf:(g + 1) * Cf, :] = cg
            sums.append(jnp.sum(cg, axis=1, keepdims=True))
            sqs.append(jnp.sum(cg * cg, axis=1, keepdims=True))
        ssum_ref[...] = jnp.concatenate(sums, axis=0)[None]
        ssq_ref[...] = jnp.concatenate(sqs, axis=0)[None]
    return kernel


# ----------------------------------------------------------------------------
# Wrapper helpers
# ----------------------------------------------------------------------------
def _vmem_limit_bytes():
    phys = 64 * 1024 * 1024          # conservative fallback (v7x physical)
    try:
        cap = getattr(pltpu.get_tpu_info(), "vmem_capacity_bytes", None)
        if cap:
            phys = int(cap)
    except Exception:
        pass
    # ~25% headroom for Mosaic internal scratch; cap keeps v7x (64 MiB) safe
    # while letting v5e/v6e (128 MiB) take larger lane tiles.
    return int(min(phys * 3 // 4, 96 * 1024 * 1024))


def _choose_tile_batch(N, HW, Cin, C4, Cf, vmem_limit):
    # Rough per-batch-element footprint of the heaviest call (inputs + outputs),
    # x2 for Pallas double-buffering.
    rows = max(Cin + C4, C4 + 4 * C4, 4 * C4 + 4 * Cf)
    per_b = 2 * rows * HW * 4
    tb = max(1, min(N, (vmem_limit // 2) // max(per_b, 1)))
    while N % tb:
        tb -= 1
    return tb


def _bn_affine(ssum_tiles, ssq_tiles, count, groups):
    """Combine per-tile (sum, sumsq) into per-channel BN scale/shift.

    Pre-BN slabs stack `groups` parity row-groups of the same channels, so the
    cross-tile AND cross-group sums reproduce PyTorch's per-channel batch stats
    over N x (2H) x (2W).  gamma=1 / beta=0 (fresh BatchNorm2d, training mode).
    """
    s = jnp.sum(ssum_tiles, axis=0)[:, 0]          # (groups*C,)
    q = jnp.sum(ssq_tiles, axis=0)[:, 0]
    R = s.shape[0]
    C = R // groups
    s = s.reshape(groups, C).sum(axis=0)
    q = q.reshape(groups, C).sum(axis=0)
    mean = s / count
    var = q / count - mean * mean                  # single-sweep variance (f32)
    scale = lax.rsqrt(var + _EPS)
    shift = -mean * scale
    scale = jnp.tile(scale, groups).reshape(R, 1)
    shift = jnp.tile(shift, groups).reshape(R, 1)
    return scale, shift


# ----------------------------------------------------------------------------
# Forward
# ----------------------------------------------------------------------------
def decoder_block_forward(x_nchw, params, tile_batch=None):
    """DecoderBlock forward.  x: (N, Cin, H, W) f32 -> (N, Cf, 2H, 2W) f32."""
    N, Cin, H, W = x_nchw.shape
    C4 = params["w1"].shape[0]
    Cf = params["w3"].shape[0]
    HW = H * W

    vmem_limit = _vmem_limit_bytes()
    if tile_batch is None:
        tile_batch = _choose_tile_batch(N, HW, Cin, C4, Cf, vmem_limit)
    assert N % tile_batch == 0
    G = N // tile_batch                     # grid size (batch tiles)
    L = tile_batch * HW                     # lanes per tile
    assert L % 128 == 0 or G == 1, "pixel tile must be lane-aligned"
    assert C4 % 8 == 0 and Cf % 8 == 0, "parity row-groups must be sublane-aligned"

    cparams = pltpu.CompilerParams(
        dimension_semantics=("parallel",),  # each tile writes disjoint blocks
        vmem_limit_bytes=vmem_limit)        # -> safe for v7x megacore sharding

    # NCHW -> (Cin, N*H*W): channels on sublanes, pixels on lanes (layout glue).
    x2d = jnp.transpose(x_nchw, (1, 0, 2, 3)).reshape(Cin, N * HW)

    stat_spec = lambda R: pl.BlockSpec((1, R, 1), lambda b: (b, 0, 0))
    stat_shape = lambda R: jax.ShapeDtypeStruct((G, R, 1), jnp.float32)
    const = lambda shape: pl.BlockSpec(shape, lambda b: (0, 0))

    # ---- call 1: conv1 -> pre-BN1 slab + stats ------------------------------
    y2d, s1, q1 = pl.pallas_call(
        _stage1_kernel,
        grid=(G,),
        in_specs=[pl.BlockSpec((Cin, L), lambda b: (0, b)),
                  const((C4, Cin))],
        out_specs=(pl.BlockSpec((C4, L), lambda b: (0, b)),
                   stat_spec(C4), stat_spec(C4)),
        out_shape=(jax.ShapeDtypeStruct((C4, N * HW), jnp.float32),
                   stat_shape(C4), stat_shape(C4)),
        compiler_params=cparams,
    )(x2d, params["w1"])
    sc1, sh1 = _bn_affine(s1, q1, N * HW, groups=1)

    # Edge masks for the transposed-conv shifts, built once per lane tile in
    # the wrapper (no per-tile int div/mod on the VPU).  Lane l <-> (nb, h, w).
    col = jnp.arange(L, dtype=jnp.int32)
    mask_r = ((col % W) < (W - 1)).astype(jnp.float32).reshape(1, L)
    mask_d = (((col // W) % H) < (H - 1)).astype(jnp.float32).reshape(1, L)

    # ---- call 2: BN1+ReLU -> deconv2 -> pre-BN2 slab + stats ----------------
    d2d, s2, q2 = pl.pallas_call(
        _make_stage2_kernel(W, C4),
        grid=(G,),
        in_specs=[pl.BlockSpec((C4, L), lambda b: (0, b)),
                  const((C4, 1)), const((C4, 1)),
                  const((1, L)), const((1, L)),
                  const((4 * C4, C4)), const((2 * C4, C4)),
                  const((2 * C4, C4)), const((C4, C4))],
        out_specs=(pl.BlockSpec((4 * C4, L), lambda b: (0, b)),
                   stat_spec(4 * C4), stat_spec(4 * C4)),
        out_shape=(jax.ShapeDtypeStruct((4 * C4, N * HW), jnp.float32),
                   stat_shape(4 * C4), stat_shape(4 * C4)),
        compiler_params=cparams,
    )(y2d, sc1, sh1, mask_r, mask_d,
      params["w2_a"], params["w2_r"], params["w2_d"], params["w2_dr"])
    sc2, sh2 = _bn_affine(s2, q2, 4 * N * HW, groups=4)

    # ---- call 3: BN2+ReLU -> conv3 -> pre-BN3 slab + stats ------------------
    c2d, s3, q3 = pl.pallas_call(
        _make_stage3_kernel(C4, Cf),
        grid=(G,),
        in_specs=[pl.BlockSpec((4 * C4, L), lambda b: (0, b)),
                  const((4 * C4, 1)), const((4 * C4, 1)),
                  const((Cf, C4))],
        out_specs=(pl.BlockSpec((4 * Cf, L), lambda b: (0, b)),
                   stat_spec(4 * Cf), stat_spec(4 * Cf)),
        out_shape=(jax.ShapeDtypeStruct((4 * Cf, N * HW), jnp.float32),
                   stat_shape(4 * Cf), stat_shape(4 * Cf)),
        compiler_params=cparams,
    )(d2d, sc2, sh2, params["w3"])
    sc3, sh3 = _bn_affine(s3, q3, 4 * N * HW, groups=4)

    # ---- BN3 + ReLU fused with parity -> NCHW interleave (one XLA fusion) ---
    out2d = jnp.maximum(c2d * sc3 + sh3, 0.0)        # (4*Cf, N*H*W)
    out6 = out2d.reshape(2, 2, Cf, N, H, W)          # (hp, wp, c, n, h, w)
    out = jnp.transpose(out6, (3, 2, 4, 0, 5, 1))    # (n, c, h, hp, w, wp)
    return out.reshape(N, Cf, 2 * H, 2 * W)


def make_params(raw):
    """Fold PyTorch-layout weights into the kernel layout.

    Conv / deconv biases are dropped on purpose: a per-channel constant added
    before BatchNorm is cancelled exactly by the batch-mean subtraction.
    """
    conv1_w = raw["conv1_w"]       # (C4, Cin, 1, 1)
    deconv_w = raw["deconv_w"]     # (C4_in, C4_out, 3, 3)  ConvTranspose2d layout
    conv3_w = raw["conv3_w"]       # (Cf, C4, 1, 1)

    f32 = jnp.float32
    w1 = conv1_w[:, :, 0, 0].astype(f32)                       # (C4, Cin)
    T = lambda kh, kw: deconv_w[:, :, kh, kw].T.astype(f32)    # (out, in) tap

    # Output parity row-groups [ee; eo; oe; oo]; only the 9 non-zero taps are
    # kept, grouped by the shifted input they consume:
    #   out[2i,2j]     = T11 a[i,j]
    #   out[2i,2j+1]   = T12 a[i,j] + T10 a[i,j+1]
    #   out[2i+1,2j]   = T21 a[i,j] + T01 a[i+1,j]
    #   out[2i+1,2j+1] = T22 a[i,j] + T20 a[i,j+1] + T02 a[i+1,j] + T00 a[i+1,j+1]
    w2_a = jnp.concatenate([T(1, 1), T(1, 2), T(2, 1), T(2, 2)], axis=0)  # @ a
    w2_r = jnp.concatenate([T(1, 0), T(2, 0)], axis=0)                    # @ a(.,w+1)
    w2_d = jnp.concatenate([T(0, 1), T(0, 2)], axis=0)                    # @ a(h+1,.)
    w2_dr = T(0, 0)                                                       # @ a(h+1,w+1)

    w3 = conv3_w[:, :, 0, 0].astype(f32)                       # (Cf, C4)
    return {"w1": w1, "w2_a": w2_a, "w2_r": w2_r, "w2_d": w2_d,
            "w2_dr": w2_dr, "w3": w3}


# ----------------------------------------------------------------------------
# Pure-JAX reference (PyTorch semantics, biases included) for validation
# ----------------------------------------------------------------------------
def _reference_forward(x, raw):
    def bn_relu(t):
        mean = jnp.mean(t, axis=(0, 2, 3), keepdims=True)
        var = jnp.mean((t - mean) ** 2, axis=(0, 2, 3), keepdims=True)
        return jnp.maximum((t - mean) * lax.rsqrt(var + _EPS), 0.0)  # gamma=1, beta=0

    dn = ("NCHW", "OIHW", "NCHW")
    y = lax.conv_general_dilated(x, raw["conv1_w"], (1, 1), "VALID",
                                 dimension_numbers=dn) + raw["conv1_b"].reshape(1, -1, 1, 1)
    y = bn_relu(y)
    # ConvTranspose2d(k=3, s=2, p=1, op=1) == input-dilated conv w/ flipped kernel
    w2c = jnp.transpose(raw["deconv_w"], (1, 0, 2, 3))[:, :, ::-1, ::-1]
    y = lax.conv_general_dilated(y, w2c, (1, 1), ((1, 2), (1, 2)), lhs_dilation=(2, 2),
                                 dimension_numbers=dn) + raw["deconv_b"].reshape(1, -1, 1, 1)
    y = bn_relu(y)
    y = lax.conv_general_dilated(y, raw["conv3_w"], (1, 1), "VALID",
                                 dimension_numbers=dn) + raw["conv3_b"].reshape(1, -1, 1, 1)
    return bn_relu(y)


# ----------------------------------------------------------------------------
# Main
# ----------------------------------------------------------------------------
if __name__ == "__main__":
    N, Cin, H, W = 2, 32, 16, 16          # in_channels = 32
    Cf = 16                               # n_filters   = 16
    C4 = Cin // 4                         # = 8

    key = jax.random.PRNGKey(0)
    ks = jax.random.split(key, 7)
    raw = {
        "conv1_w":  jax.random.normal(ks[0], (C4, Cin, 1, 1), jnp.float32) * 0.1,
        "conv1_b":  jax.random.normal(ks[1], (C4,), jnp.float32) * 0.1,
        "deconv_w": jax.random.normal(ks[2], (C4, C4, 3, 3), jnp.float32) * 0.1,
        "deconv_b": jax.random.normal(ks[3], (C4,), jnp.float32) * 0.1,
        "conv3_w":  jax.random.normal(ks[4], (Cf, C4, 1, 1), jnp.float32) * 0.1,
        "conv3_b":  jax.random.normal(ks[5], (Cf,), jnp.float32) * 0.1,
    }
    x = jax.random.normal(ks[6], (N, Cin, H, W), jnp.float32)

    params = make_params(raw)

    # tile_batch=1 -> grid of 2 batch tiles, exercising the cross-tile
    # accumulate/finalize BN path (auto-selection would pick a single tile here).
    fwd = jax.jit(lambda xx, pp: decoder_block_forward(xx, pp, tile_batch=1))
    out = jax.block_until_ready(fwd(x, params))
    assert out.shape == (N, Cf, 2 * H, 2 * W), out.shape

    ref = jax.block_until_ready(_reference_forward(x, raw))
    np.testing.assert_allclose(np.asarray(out), np.asarray(ref), rtol=2e-4, atol=2e-4)

    print("KERNEL_OK")
</pallas_src>

<mosaic_0001>
module attributes {stable_mosaic.version = 11 : i64} {
  func.func @_stage1_kernel(%arg0: i32, %arg1: memref<32x256xf32, #tpu.memory_space<vmem>>, %arg2: memref<8x32xf32, #tpu.memory_space<vmem>>, %arg3: memref<8x256xf32, #tpu.memory_space<vmem>>, %arg4: memref<1x8x1xf32, #tpu.memory_space<vmem>>, %arg5: memref<1x8x1xf32, #tpu.memory_space<vmem>>) attributes {dimension_semantics = [#tpu.dimension_semantics<parallel>], iteration_bounds = array<i64: 2>, scalar_prefetch = 0 : i64, scratch_operands = 0 : i64, tpu.core_type = #tpu.core_type<tc>, window_params = [{transform_indices = @transform_0, window_bounds = array<i64: 32, 256>}, {pipeline_mode = #tpu.pipeline_mode<synchronous>, transform_indices = @transform_1, window_bounds = array<i64: 8, 32>}, {transform_indices = @transform_2, window_bounds = array<i64: 8, 256>}, {transform_indices = @transform_3, window_bounds = array<i64: 1, 8, 1>}, {transform_indices = @transform_4, window_bounds = array<i64: 1, 8, 1>}]} {
    %c0 = arith.constant 0 : index
    %c0_0 = arith.constant 0 : index
    %0 = vector.load %arg2[%c0, %c0_0] : memref<8x32xf32, #tpu.memory_space<vmem>>, vector<8x32xf32>
    %c0_1 = arith.constant 0 : index
    %c0_2 = arith.constant 0 : index
    %1 = vector.load %arg1[%c0_1, %c0_2] : memref<32x256xf32, #tpu.memory_space<vmem>>, vector<32x256xf32>
    %cst = arith.constant dense<0.000000e+00> : vector<8x256xf32>
    %2 = tpu.matmul %0, %1, %cst {dimension_numbers = #tpu.dot_dimension_numbers<[1], [0], [0], [1], [0, 0, 1, 1], [], []>} : vector<8x32xf32>, vector<32x256xf32>, vector<8x256xf32> -> vector<8x256xf32>
    %c0_3 = arith.constant 0 : index
    %c0_4 = arith.constant 0 : index
    %3 = vector.load %arg3[%c0_3, %c0_4] : memref<8x256xf32, #tpu.memory_space<vmem>>, vector<8x256xf32>
    tpu.vector_store %arg3[%c0_3, %c0_4], %2 {strides = array<i32>} : memref<8x256xf32, #tpu.memory_space<vmem>>, vector<8x256xf32>,
    %cst_5 = arith.constant dense<0.000000e+00> : vector<8xf32>
    %4 = vector.multi_reduction <add>, %2, %cst_5 [1] : vector<8x256xf32> to vector<8xf32>
    %5 = vector.shape_cast %4 : vector<8xf32> to vector<8x1xf32>
    %6 = vector.shape_cast %5 : vector<8x1xf32> to vector<1x8x1xf32>
    %c0_6 = arith.constant 0 : index
    %c0_7 = arith.constant 0 : index
    %c0_8 = arith.constant 0 : index
    %7 = vector.load %arg4[%c0_6, %c0_7, %c0_8] : memref<1x8x1xf32, #tpu.memory_space<vmem>>, vector<1x8x1xf32>
    tpu.vector_store %arg4[%c0_6, %c0_7, %c0_8], %6 {strides = array<i32>} : memref<1x8x1xf32, #tpu.memory_space<vmem>>, vector<1x8x1xf32>,
    %8 = arith.mulf %2, %2 : vector<8x256xf32>
    %cst_9 = arith.constant dense<0.000000e+00> : vector<8xf32>
    %9 = vector.multi_reduction <add>, %8, %cst_9 [1] : vector<8x256xf32> to vector<8xf32>
    %10 = vector.shape_cast %9 : vector<8xf32> to vector<8x1xf32>
    %11 = vector.shape_cast %10 : vector<8x1xf32> to vector<1x8x1xf32>
    %c0_10 = arith.constant 0 : index
    %c0_11 = arith.constant 0 : index
    %c0_12 = arith.constant 0 : index
    %12 = vector.load %arg5[%c0_10, %c0_11, %c0_12] : memref<1x8x1xf32, #tpu.memory_space<vmem>>, vector<1x8x1xf32>
    tpu.vector_store %arg5[%c0_10, %c0_11, %c0_12], %11 {strides = array<i32>} : memref<1x8x1xf32, #tpu.memory_space<vmem>>, vector<1x8x1xf32>,
    return
  }
  func.func @transform_0(%arg0: i32) -> (i32, i32) {
    %c0_i32 = arith.constant 0 : i32
    %c0_i32_0 = arith.constant 0 : i32
    return %c0_i32, %arg0 : i32, i32
  }
  func.func @transform_1(%arg0: i32) -> (i32, i32) {
    %c0_i32 = arith.constant 0 : i32
    %c0_i32_0 = arith.constant 0 : i32
    %c0_i32_1 = arith.constant 0 : i32
    return %c0_i32, %c0_i32_0 : i32, i32
  }
  func.func @transform_2(%arg0: i32) -> (i32, i32) {
    %c0_i32 = arith.constant 0 : i32
    %c0_i32_0 = arith.constant 0 : i32
    return %c0_i32, %arg0 : i32, i32
  }
  func.func @transform_3(%arg0: i32) -> (i32, i32, i32) {
    %c0_i32 = arith.constant 0 : i32
    %c0_i32_0 = arith.constant 0 : i32
    %c0_i32_1 = arith.constant 0 : i32
    return %arg0, %c0_i32, %c0_i32_0 : i32, i32, i32
  }
  func.func @transform_4(%arg0: i32) -> (i32, i32, i32) {
    %c0_i32 = arith.constant 0 : i32
    %c0_i32_0 = arith.constant 0 : i32
    %c0_i32_1 = arith.constant 0 : i32
    return %arg0, %c0_i32, %c0_i32_0 : i32, i32, i32
  }
}

module attributes {stable_mosaic.version = 11 : i64} {
  func.func @kernel(%arg0: i32, %arg1: memref<8x256xf32, #tpu.memory_space<vmem>>, %arg2: memref<8x1xf32, #tpu.memory_space<vmem>>, %arg3: memref<8x1xf32, #tpu.memory_space<vmem>>, %arg4: memref<1x256xf32, #tpu.memory_space<vmem>>, %arg5: memref<1x256xf32, #tpu.memory_space<vmem>>, %arg6: memref<32x8xf32, #tpu.memory_space<vmem>>, %arg7: memref<16x8xf32, #tpu.memory_space<vmem>>, %arg8: memref<16x8xf32, #tpu.memory_space<vmem>>, %arg9: memref<8x8xf32, #tpu.memory_space<vmem>>, %arg10: memref<32x256xf32, #tpu.memory_space<vmem>>, %arg11: memref<1x32x1xf32, #tpu.memory_space<vmem>>, %arg12: memref<1x32x1xf32, #tpu.memory_space<vmem>>) attributes {dimension_semantics = [#tpu.dimension_semantics<parallel>], iteration_bounds = array<i64: 2>, scalar_prefetch = 0 : i64, scratch_operands = 0 : i64, tpu.core_type = #tpu.core_type<tc>, window_params = [{transform_indices = @transform_0, window_bounds = array<i64: 8, 256>}, {pipeline_mode = #tpu.pipeline_mode<synchronous>, transform_indices = @transform_1, window_bounds = array<i64: 8, 1>}, {pipeline_mode = #tpu.pipeline_mode<synchronous>, transform_indices = @transform_2, window_bounds = array<i64: 8, 1>}, {pipeline_mode = #tpu.pipeline_mode<synchronous>, transform_indices = @transform_3, window_bounds = array<i64: 1, 256>}, {pipeline_mode = #tpu.pipeline_mode<synchronous>, transform_indices = @transform_4, window_bounds = array<i64: 1, 256>}, {pipeline_mode = #tpu.pipeline_mode<synchronous>, transform_indices = @transform_5, window_bounds = array<i64: 32, 8>}, {pipeline_mode = #tpu.pipeline_mode<synchronous>, transform_indices = @transform_6, window_bounds = array<i64: 16, 8>}, {pipeline_mode = #tpu.pipeline_mode<synchronous>, transform_indices = @transform_7, window_bounds = array<i64: 16, 8>}, {pipeline_mode = #tpu.pipeline_mode<synchronous>, transform_indices = @transform_8, window_bounds = array<i64: 8, 8>}, {transform_indices = @transform_9, window_bounds = array<i64: 32, 256>}, {transform_indices = @transform_10, window_bounds = array<i64: 1, 32, 1>}, {transform_indices = @transform_11, window_bounds = array<i64: 1, 32, 1>}]} {
    %c0 = arith.constant 0 : index
    %c0_0 = arith.constant 0 : index
    %0 = vector.load %arg1[%c0, %c0_0] : memref<8x256xf32, #tpu.memory_space<vmem>>, vector<8x256xf32>
    %c0_1 = arith.constant 0 : index
    %c0_2 = arith.constant 0 : index
    %1 = vector.load %arg2[%c0_1, %c0_2] : memref<8x1xf32, #tpu.memory_space<vmem>>, vector<8x1xf32>
    %2 = vector.broadcast %1 : vector<8x1xf32> to vector<8x256xf32>
    %3 = arith.mulf %0, %2 : vector<8x256xf32>
    %c0_3 = arith.constant 0 : index
    %c0_4 = arith.constant 0 : index
    %4 = vector.load %arg3[%c0_3, %c0_4] : memref<8x1xf32, #tpu.memory_space<vmem>>, vector<8x1xf32>
    %5 = vector.broadcast %4 : vector<8x1xf32> to vector<8x256xf32>
    %6 = arith.addf %3, %5 : vector<8x256xf32>
    %cst = arith.constant 0.000000e+00 : f32
    %7 = vector.broadcast %cst : f32 to vector<8x256xf32>
    %8 = arith.maximumf %6, %7 : vector<8x256xf32>
    %c0_5 = arith.constant 0 : index
    %c0_6 = arith.constant 0 : index
    %9 = vector.load %arg4[%c0_5, %c0_6] : memref<1x256xf32, #tpu.memory_space<vmem>>, vector<1x256xf32>
    %c0_7 = arith.constant 0 : index
    %c0_8 = arith.constant 0 : index
    %10 = vector.load %arg5[%c0_7, %c0_8] : memref<1x256xf32, #tpu.memory_space<vmem>>, vector<1x256xf32>
    %c255_i32 = arith.constant 255 : i32
    %11 = tpu.dynamic_rotate %8 by %c255_i32 dim 1 : vector<8x256xf32>, i32 -> vector<8x256xf32>
    %12 = vector.broadcast %9 : vector<1x256xf32> to vector<8x256xf32>
    %13 = arith.mulf %11, %12 : vector<8x256xf32>
    %c240_i32 = arith.constant 240 : i32
    %14 = tpu.dynamic_rotate %8 by %c240_i32 dim 1 : vector<8x256xf32>, i32 -> vector<8x256xf32>
    %15 = vector.broadcast %10 : vector<1x256xf32> to vector<8x256xf32>
    %16 = arith.mulf %14, %15 : vector<8x256xf32>
    %c239_i32 = arith.constant 239 : i32
    %17 = tpu.dynamic_rotate %8 by %c239_i32 dim 1 : vector<8x256xf32>, i32 -> vector<8x256xf32>
    %18 = arith.mulf %9, %10 : vector<1x256xf32>
    %19 = vector.broadcast %18 : vector<1x256xf32> to vector<8x256xf32>
    %20 = arith.mulf %17, %19 : vector<8x256xf32>
    %c0_9 = arith.constant 0 : index
    %c0_10 = arith.constant 0 : index
    %21 = vector.load %arg6[%c0_9, %c0_10] : memref<32x8xf32, #tpu.memory_space<vmem>>, vector<32x8xf32>
    %cst_11 = arith.constant dense<0.000000e+00> : vector<32x256xf32>
    %22 = tpu.matmul %21, %8, %cst_11 {dimension_numbers = #tpu.dot_dimension_numbers<[1], [0], [0], [1], [0, 0, 1, 1], [], []>} : vector<32x8xf32>, vector<8x256xf32>, vector<32x256xf32> -> vector<32x256xf32>
    %c0_12 = arith.constant 0 : index
    %c0_13 = arith.constant 0 : index
    %23 = vector.load %arg7[%c0_12, %c0_13] : memref<16x8xf32, #tpu.memory_space<vmem>>, vector<16x8xf32>
    %cst_14 = arith.constant dense<0.000000e+00> : vector<16x256xf32>
    %24 = tpu.matmul %23, %13, %cst_14 {dimension_numbers = #tpu.dot_dimension_numbers<[1], [0], [0], [1], [0, 0, 1, 1], [], []>} : vector<16x8xf32>, vector<8x256xf32>, vector<16x256xf32> -> vector<16x256xf32>
    %c0_15 = arith.constant 0 : index
    %c0_16 = arith.constant 0 : index
    %25 = vector.load %arg8[%c0_15, %c0_16] : memref<16x8xf32, #tpu.memory_space<vmem>>, vector<16x8xf32>
    %cst_17 = arith.constant dense<0.000000e+00> : vector<16x256xf32>
    %26 = tpu.matmul %25, %16, %cst_17 {dimension_numbers = #tpu.dot_dimension_numbers<[1], [0], [0], [1], [0, 0, 1, 1], [], []>} : vector<16x8xf32>, vector<8x256xf32>, vector<16x256xf32> -> vector<16x256xf32>
    %c0_18 = arith.constant 0 : index
    %c0_19 = arith.constant 0 : index
    %27 = vector.load %arg9[%c0_18, %c0_19] : memref<8x8xf32, #tpu.memory_space<vmem>>, vector<8x8xf32>
    %cst_20 = arith.constant dense<0.000000e+00> : vector<8x256xf32>
    %28 = tpu.matmul %27, %20, %cst_20 {dimension_numbers = #tpu.dot_dimension_numbers<[1], [0], [0], [1], [0, 0, 1, 1], [], []>} : vector<8x8xf32>, vector<8x256xf32>, vector<8x256xf32> -> vector<8x256xf32>
    %29 = vector.extract_strided_slice %22 {offsets = [0, 0], sizes = [8, 256], strides = [1, 1]} : vector<32x256xf32> to vector<8x256xf32>
    %30 = vector.extract_strided_slice %22 {offsets = [8, 0], sizes = [8, 256], strides = [1, 1]} : vector<32x256xf32> to vector<8x256xf32>
    %31 = vector.extract_strided_slice %24 {offsets = [0, 0], sizes = [8, 256], strides = [1, 1]} : vector<16x256xf32> to vector<8x256xf32>
    %32 = arith.addf %30, %31 : vector<8x256xf32>
    %33 = vector.extract_strided_slice %22 {offsets = [16, 0], sizes = [8, 256], strides = [1, 1]} : vector<32x256xf32> to vector<8x256xf32>
    %34 = vector.extract_strided_slice %26 {offsets = [0, 0], sizes = [8, 256], strides = [1, 1]} : vector<16x256xf32> to vector<8x256xf32>
    %35 = arith.addf %33, %34 : vector<8x256xf32>
    %36 = vector.extract_strided_slice %22 {offsets = [24, 0], sizes = [8, 256], strides = [1, 1]} : vector<32x256xf32> to vector<8x256xf32>
    %37 = vector.extract_strided_slice %24 {offsets = [8, 0], sizes = [8, 256], strides = [1, 1]} : vector<16x256xf32> to vector<8x256xf32>
    %38 = arith.addf %36, %37 : vector<8x256xf32>
    %39 = vector.extract_strided_slice %26 {offsets = [8, 0], sizes = [8, 256], strides = [1, 1]} : vector<16x256xf32> to vector<8x256xf32>
    %40 = arith.addf %38, %39 : vector<8x256xf32>
    %41 = arith.addf %40, %28 : vector<8x256xf32>
    %c0_21 = arith.constant 0 : index
    %c0_22 = arith.constant 0 : index
    %42 = vector.load %arg10[%c0_21, %c0_22] : memref<32x256xf32, #tpu.memory_space<vmem>>, vector<8x256xf32>
    tpu.vector_store %arg10[%c0_21, %c0_22], %29 {strides = array<i32>} : memref<32x256xf32, #tpu.memory_space<vmem>>, vector<8x256xf32>,
    %c8 = arith.constant 8 : index
    %c0_23 = arith.constant 0 : index
    %43 = vector.load %arg10[%c8, %c0_23] : memref<32x256xf32, #tpu.memory_space<vmem>>, vector<8x256xf32>
    tpu.vector_store %arg10[%c8, %c0_23], %32 {strides = array<i32>} : memref<32x256xf32, #tpu.memory_space<vmem>>, vector<8x256xf32>,
    %c16 = arith.constant 16 : index
    %c0_24 = arith.constant 0 : index
    %44 = vector.load %arg10[%c16, %c0_24] : memref<32x256xf32, #tpu.memory_space<vmem>>, vector<8x256xf32>
    tpu.vector_store %arg10[%c16, %c0_24], %35 {strides = array<i32>} : memref<32x256xf32, #tpu.memory_space<vmem>>, vector<8x256xf32>,
    %c24 = arith.constant 24 : index
    %c0_25 = arith.constant 0 : index
    %45 = vector.load %arg10[%c24, %c0_25] : memref<32x256xf32, #tpu.memory_space<vmem>>, vector<8x256xf32>
    tpu.vector_store %arg10[%c24, %c0_25], %41 {strides = array<i32>} : memref<32x256xf32, #tpu.memory_space<vmem>>, vector<8x256xf32>,
    %cst_26 = arith.constant dense<0.000000e+00> : vector<8xf32>
    %46 = vector.multi_reduction <add>, %29, %cst_26 [1] : vector<8x256xf32> to vector<8xf32>
    %47 = vector.shape_cast %46 : vector<8xf32> to vector<8x1xf32>
    %cst_27 = arith.constant dense<0.000000e+00> : vector<8xf32>
    %48 = vector.multi_reduction <add>, %32, %cst_27 [1] : vector<8x256xf32> to vector<8xf32>
    %49 = vector.shape_cast %48 : vector<8xf32> to vector<8x1xf32>
    %cst_28 = arith.constant dense<0.000000e+00> : vector<8xf32>
    %50 = vector.multi_reduction <add>, %35, %cst_28 [1] : vector<8x256xf32> to vector<8xf32>
    %51 = vector.shape_cast %50 : vector<8xf32> to vector<8x1xf32>
    %cst_29 = arith.constant dense<0.000000e+00> : vector<8xf32>
    %52 = vector.multi_reduction <add>, %41, %cst_29 [1] : vector<8x256xf32> to vector<8xf32>
    %53 = vector.shape_cast %52 : vector<8xf32> to vector<8x1xf32>
    %54 = tpu.concatenate %47, %49, %51, %53 in 0 : vector<8x1xf32>, vector<8x1xf32>, vector<8x1xf32>, vector<8x1xf32> -> vector<32x1xf32>
    %55 = vector.shape_cast %54 : vector<32x1xf32> to vector<1x32x1xf32>
    %c0_30 = arith.constant 0 : index
    %c0_31 = arith.constant 0 : index
    %c0_32 = arith.constant 0 : index
    %56 = vector.load %arg11[%c0_30, %c0_31, %c0_32] : memref<1x32x1xf32, #tpu.memory_space<vmem>>, vector<1x32x1xf32>
    tpu.vector_store %arg11[%c0_30, %c0_31, %c0_32], %55 {strides = array<i32>} : memref<1x32x1xf32, #tpu.memory_space<vmem>>, vector<1x32x1xf32>,
    %57 = arith.mulf %29, %29 : vector<8x256xf32>
    %cst_33 = arith.constant dense<0.000000e+00> : vector<8xf32>
    %58 = vector.multi_reduction <add>, %57, %cst_33 [1] : vector<8x256xf32> to vector<8xf32>
    %59 = vector.shape_cast %58 : vector<8xf32> to vector<8x1xf32>
    %60 = arith.mulf %32, %32 : vector<8x256xf32>
    %cst_34 = arith.constant dense<0.000000e+00> : vector<8xf32>
    %61 = vector.multi_reduction <add>, %60, %cst_34 [1] : vector<8x256xf32> to vector<8xf32>
    %62 = vector.shape_cast %61 : vector<8xf32> to vector<8x1xf32>
    %63 = arith.mulf %35, %35 : vector<8x256xf32>
    %cst_35 = arith.constant dense<0.000000e+00> : vector<8xf32>
    %64 = vector.multi_reduction <add>, %63, %cst_35 [1] : vector<8x256xf32> to vector<8xf32>
    %65 = vector.shape_cast %64 : vector<8xf32> to vector<8x1xf32>
    %66 = arith.mulf %41, %41 : vector<8x256xf32>
    %cst_36 = arith.constant dense<0.000000e+00> : vector<8xf32>
    %67 = vector.multi_reduction <add>, %66, %cst_36 [1] : vector<8x256xf32> to vector<8xf32>
    %68 = vector.shape_cast %67 : vector<8xf32> to vector<8x1xf32>
    %69 = tpu.concatenate %59, %62, %65, %68 in 0 : vector<8x1xf32>, vector<8x1xf32>, vector<8x1xf32>, vector<8x1xf32> -> vector<32x1xf32>
    %70 = vector.shape_cast %69 : vector<32x1xf32> to vector<1x32x1xf32>
    %c0_37 = arith.constant 0 : index
    %c0_38 = arith.constant 0 : index
    %c0_39 = arith.constant 0 : index
    %71 = vector.load %arg12[%c0_37, %c0_38, %c0_39] : memref<1x32x1xf32, #tpu.memory_space<vmem>>, vector<1x32x1xf32>
    tpu.vector_store %arg12[%c0_37, %c0_38, %c0_39], %70 {strides = array<i32>} : memref<1x32x1xf32, #tpu.memory_space<vmem>>, vector<1x32x1xf32>,
    return
  }
  func.func @transform_0(%arg0: i32) -> (i32, i32) {
    %c0_i32 = arith.constant 0 : i32
    %c0_i32_0 = arith.constant 0 : i32
    return %c0_i32, %arg0 : i32, i32
  }
  func.func @transform_1(%arg0: i32) -> (i32, i32) {
    %c0_i32 = arith.constant 0 : i32
    %c0_i32_0 = arith.constant 0 : i32
    %c0_i32_1 = arith.constant 0 : i32
    return %c0_i32, %c0_i32_0 : i32, i32
  }
  func.func @transform_2(%arg0: i32) -> (i32, i32) {
    %c0_i32 = arith.constant 0 : i32
    %c0_i32_0 = arith.constant 0 : i32
    %c0_i32_1 = arith.constant 0 : i32
    return %c0_i32, %c0_i32_0 : i32, i32
  }
  func.func @transform_3(%arg0: i32) -> (i32, i32) {
    %c0_i32 = arith.constant 0 : i32
    %c0_i32_0 = arith.constant 0 : i32
    %c0_i32_1 = arith.constant 0 : i32
    return %c0_i32, %c0_i32_0 : i32, i32
  }
  func.func @transform_4(%arg0: i32) -> (i32, i32) {
    %c0_i32 = arith.constant 0 : i32
    %c0_i32_0 = arith.constant 0 : i32
    %c0_i32_1 = arith.constant 0 : i32
    return %c0_i32, %c0_i32_0 : i32, i32
  }
  func.func @transform_5(%arg0: i32) -> (i32, i32) {
    %c0_i32 = arith.constant 0 : i32
    %c0_i32_0 = arith.constant 0 : i32
    %c0_i32_1 = arith.constant 0 : i32
    return %c0_i32, %c0_i32_0 : i32, i32
  }
  func.func @transform_6(%arg0: i32) -> (i32, i32) {
    %c0_i32 = arith.constant 0 : i32
    %c0_i32_0 = arith.constant 0 : i32
    %c0_i32_1 = arith.constant 0 : i32
    return %c0_i32, %c0_i32_0 : i32, i32
  }
  func.func @transform_7(%arg0: i32) -> (i32, i32) {
    %c0_i32 = arith.constant 0 : i32
    %c0_i32_0 = arith.constant 0 : i32
    %c0_i32_1 = arith.constant 0 : i32
    return %c0_i32, %c0_i32_0 : i32, i32
  }
  func.func @transform_8(%arg0: i32) -> (i32, i32) {
    %c0_i32 = arith.constant 0 : i32
    %c0_i32_0 = arith.constant 0 : i32
    %c0_i32_1 = arith.constant 0 : i32
    return %c0_i32, %c0_i32_0 : i32, i32
  }
  func.func @transform_9(%arg0: i32) -> (i32, i32) {
    %c0_i32 = arith.constant 0 : i32
    %c0_i32_0 = arith.constant 0 : i32
    return %c0_i32, %arg0 : i32, i32
  }
  func.func @transform_10(%arg0: i32) -> (i32, i32, i32) {
    %c0_i32 = arith.constant 0 : i32
    %c0_i32_0 = arith.constant 0 : i32
    %c0_i32_1 = arith.constant 0 : i32
    return %arg0, %c0_i32, %c0_i32_0 : i32, i32, i32
  }
  func.func @transform_11(%arg0: i32) -> (i32, i32, i32) {
    %c0_i32 = arith.constant 0 : i32
    %c0_i32_0 = arith.constant 0 : i32
    %c0_i32_1 = arith.constant 0 : i32
    return %arg0, %c0_i32, %c0_i32_0 : i32, i32, i32
  }
}

module attributes {stable_mosaic.version = 11 : i64} {
  func.func @kernel(%arg0: i32, %arg1: memref<32x256xf32, #tpu.memory_space<vmem>>, %arg2: memref<32x1xf32, #tpu.memory_space<vmem>>, %arg3: memref<32x1xf32, #tpu.memory_space<vmem>>, %arg4: memref<16x8xf32, #tpu.memory_space<vmem>>, %arg5: memref<64x256xf32, #tpu.memory_space<vmem>>, %arg6: memref<1x64x1xf32, #tpu.memory_space<vmem>>, %arg7: memref<1x64x1xf32, #tpu.memory_space<vmem>>) attributes {dimension_semantics = [#tpu.dimension_semantics<parallel>], iteration_bounds = array<i64: 2>, scalar_prefetch = 0 : i64, scratch_operands = 0 : i64, tpu.core_type = #tpu.core_type<tc>, window_params = [{transform_indices = @transform_0, window_bounds = array<i64: 32, 256>}, {pipeline_mode = #tpu.pipeline_mode<synchronous>, transform_indices = @transform_1, window_bounds = array<i64: 32, 1>}, {pipeline_mode = #tpu.pipeline_mode<synchronous>, transform_indices = @transform_2, window_bounds = array<i64: 32, 1>}, {pipeline_mode = #tpu.pipeline_mode<synchronous>, transform_indices = @transform_3, window_bounds = array<i64: 16, 8>}, {transform_indices = @transform_4, window_bounds = array<i64: 64, 256>}, {transform_indices = @transform_5, window_bounds = array<i64: 1, 64, 1>}, {transform_indices = @transform_6, window_bounds = array<i64: 1, 64, 1>}]} {
    %c0 = arith.constant 0 : index
    %c0_0 = arith.constant 0 : index
    %0 = vector.load %arg1[%c0, %c0_0] : memref<32x256xf32, #tpu.memory_space<vmem>>, vector<32x256xf32>
    %c0_1 = arith.constant 0 : index
    %c0_2 = arith.constant 0 : index
    %1 = vector.load %arg2[%c0_1, %c0_2] : memref<32x1xf32, #tpu.memory_space<vmem>>, vector<32x1xf32>
    %2 = vector.broadcast %1 : vector<32x1xf32> to vector<32x256xf32>
    %3 = arith.mulf %0, %2 : vector<32x256xf32>
    %c0_3 = arith.constant 0 : index
    %c0_4 = arith.constant 0 : index
    %4 = vector.load %arg3[%c0_3, %c0_4] : memref<32x1xf32, #tpu.memory_space<vmem>>, vector<32x1xf32>
    %5 = vector.broadcast %4 : vector<32x1xf32> to vector<32x256xf32>
    %6 = arith.addf %3, %5 : vector<32x256xf32>
    %cst = arith.constant 0.000000e+00 : f32
    %7 = vector.broadcast %cst : f32 to vector<32x256xf32>
    %8 = arith.maximumf %6, %7 : vector<32x256xf32>
    %c0_5 = arith.constant 0 : index
    %c0_6 = arith.constant 0 : index
    %9 = vector.load %arg4[%c0_5, %c0_6] : memref<16x8xf32, #tpu.memory_space<vmem>>, vector<16x8xf32>
    %10 = vector.extract_strided_slice %8 {offsets = [0, 0], sizes = [8, 256], strides = [1, 1]} : vector<32x256xf32> to vector<8x256xf32>
    %cst_7 = arith.constant dense<0.000000e+00> : vector<16x256xf32>
    %11 = tpu.matmul %9, %10, %cst_7 {dimension_numbers = #tpu.dot_dimension_numbers<[1], [0], [0], [1], [0, 0, 1, 1], [], []>} : vector<16x8xf32>, vector<8x256xf32>, vector<16x256xf32> -> vector<16x256xf32>
    %c0_8 = arith.constant 0 : index
    %c0_9 = arith.constant 0 : index
    %12 = vector.load %arg5[%c0_8, %c0_9] : memref<64x256xf32, #tpu.memory_space<vmem>>, vector<16x256xf32>
    tpu.vector_store %arg5[%c0_8, %c0_9], %11 {strides = array<i32>} : memref<64x256xf32, #tpu.memory_space<vmem>>, vector<16x256xf32>,
    %cst_10 = arith.constant dense<0.000000e+00> : vector<16xf32>
    %13 = vector.multi_reduction <add>, %11, %cst_10 [1] : vector<16x256xf32> to vector<16xf32>
    %14 = vector.shape_cast %13 : vector<16xf32> to vector<16x1xf32>
    %15 = arith.mulf %11, %11 : vector<16x256xf32>
    %cst_11 = arith.constant dense<0.000000e+00> : vector<16xf32>
    %16 = vector.multi_reduction <add>, %15, %cst_11 [1] : vector<16x256xf32> to vector<16xf32>
    %17 = vector.shape_cast %16 : vector<16xf32> to vector<16x1xf32>
    %18 = vector.extract_strided_slice %8 {offsets = [8, 0], sizes = [8, 256], strides = [1, 1]} : vector<32x256xf32> to vector<8x256xf32>
    %cst_12 = arith.constant dense<0.000000e+00> : vector<16x256xf32>
    %19 = tpu.matmul %9, %18, %cst_12 {dimension_numbers = #tpu.dot_dimension_numbers<[1], [0], [0], [1], [0, 0, 1, 1], [], []>} : vector<16x8xf32>, vector<8x256xf32>, vector<16x256xf32> -> vector<16x256xf32>
    %c16 = arith.constant 16 : index
    %c0_13 = arith.constant 0 : index
    %20 = vector.load %arg5[%c16, %c0_13] : memref<64x256xf32, #tpu.memory_space<vmem>>, vector<16x256xf32>
    tpu.vector_store %arg5[%c16, %c0_13], %19 {strides = array<i32>} : memref<64x256xf32, #tpu.memory_space<vmem>>, vector<16x256xf32>,
    %cst_14 = arith.constant dense<0.000000e+00> : vector<16xf32>
    %21 = vector.multi_reduction <add>, %19, %cst_14 [1] : vector<16x256xf32> to vector<16xf32>
    %22 = vector.shape_cast %21 : vector<16xf32> to vector<16x1xf32>
    %23 = arith.mulf %19, %19 : vector<16x256xf32>
    %cst_15 = arith.constant dense<0.000000e+00> : vector<16xf32>
    %24 = vector.multi_reduction <add>, %23, %cst_15 [1] : vector<16x256xf32> to vector<16xf32>
    %25 = vector.shape_cast %24 : vector<16xf32> to vector<16x1xf32>
    %26 = vector.extract_strided_slice %8 {offsets = [16, 0], sizes = [8, 256], strides = [1, 1]} : vector<32x256xf32> to vector<8x256xf32>
    %cst_16 = arith.constant dense<0.000000e+00> : vector<16x256xf32>
    %27 = tpu.matmul %9, %26, %cst_16 {dimension_numbers = #tpu.dot_dimension_numbers<[1], [0], [0], [1], [0, 0, 1, 1], [], []>} : vector<16x8xf32>, vector<8x256xf32>, vector<16x256xf32> -> vector<16x256xf32>
    %c32 = arith.constant 32 : index
    %c0_17 = arith.constant 0 : index
    %28 = vector.load %arg5[%c32, %c0_17] : memref<64x256xf32, #tpu.memory_space<vmem>>, vector<16x256xf32>
    tpu.vector_store %arg5[%c32, %c0_17], %27 {strides = array<i32>} : memref<64x256xf32, #tpu.memory_space<vmem>>, vector<16x256xf32>,
    %cst_18 = arith.constant dense<0.000000e+00> : vector<16xf32>
    %29 = vector.multi_reduction <add>, %27, %cst_18 [1] : vector<16x256xf32> to vector<16xf32>
    %30 = vector.shape_cast %29 : vector<16xf32> to vector<16x1xf32>
    %31 = arith.mulf %27, %27 : vector<16x256xf32>
    %cst_19 = arith.constant dense<0.000000e+00> : vector<16xf32>
    %32 = vector.multi_reduction <add>, %31, %cst_19 [1] : vector<16x256xf32> to vector<16xf32>
    %33 = vector.shape_cast %32 : vector<16xf32> to vector<16x1xf32>
    %34 = vector.extract_strided_slice %8 {offsets = [24, 0], sizes = [8, 256], strides = [1, 1]} : vector<32x256xf32> to vector<8x256xf32>
    %cst_20 = arith.constant dense<0.000000e+00> : vector<16x256xf32>
    %35 = tpu.matmul %9, %34, %cst_20 {dimension_numbers = #tpu.dot_dimension_numbers<[1], [0], [0], [1], [0, 0, 1, 1], [], []>} : vector<16x8xf32>, vector<8x256xf32>, vector<16x256xf32> -> vector<16x256xf32>
    %c48 = arith.constant 48 : index
    %c0_21 = arith.constant 0 : index
    %36 = vector.load %arg5[%c48, %c0_21] : memref<64x256xf32, #tpu.memory_space<vmem>>, vector<16x256xf32>
    tpu.vector_store %arg5[%c48, %c0_21], %35 {strides = array<i32>} : memref<64x256xf32, #tpu.memory_space<vmem>>, vector<16x256xf32>,
    %cst_22 = arith.constant dense<0.000000e+00> : vector<16xf32>
    %37 = vector.multi_reduction <add>, %35, %cst_22 [1] : vector<16x256xf32> to vector<16xf32>
    %38 = vector.shape_cast %37 : vector<16xf32> to vector<16x1xf32>
    %39 = arith.mulf %35, %35 : vector<16x256xf32>
    %cst_23 = arith.constant dense<0.000000e+00> : vector<16xf32>
    %40 = vector.multi_reduction <add>, %39, %cst_23 [1] : vector<16x256xf32> to vector<16xf32>
    %41 = vector.shape_cast %40 : vector<16xf32> to vector<16x1xf32>
    %42 = tpu.concatenate %14, %22, %30, %38 in 0 : vector<16x1xf32>, vector<16x1xf32>, vector<16x1xf32>, vector<16x1xf32> -> vector<64x1xf32>
    %43 = vector.shape_cast %42 : vector<64x1xf32> to vector<1x64x1xf32>
    %c0_24 = arith.constant 0 : index
    %c0_25 = arith.constant 0 : index
    %c0_26 = arith.constant 0 : index
    %44 = vector.load %arg6[%c0_24, %c0_25, %c0_26] : memref<1x64x1xf32, #tpu.memory_space<vmem>>, vector<1x64x1xf32>
    tpu.vector_store %arg6[%c0_24, %c0_25, %c0_26], %43 {strides = array<i32>} : memref<1x64x1xf32, #tpu.memory_space<vmem>>, vector<1x64x1xf32>,
    %45 = tpu.concatenate %17, %25, %33, %41 in 0 : vector<16x1xf32>, vector<16x1xf32>, vector<16x1xf32>, vector<16x1xf32> -> vector<64x1xf32>
    %46 = vector.shape_cast %45 : vector<64x1xf32> to vector<1x64x1xf32>
    %c0_27 = arith.constant 0 : index
    %c0_28 = arith.constant 0 : index
    %c0_29 = arith.constant 0 : index
    %47 = vector.load %arg7[%c0_27, %c0_28, %c0_29] : memref<1x64x1xf32, #tpu.memory_space<vmem>>, vector<1x64x1xf32>
    tpu.vector_store %arg7[%c0_27, %c0_28, %c0_29], %46 {strides = array<i32>} : memref<1x64x1xf32, #tpu.memory_space<vmem>>, vector<1x64x1xf32>,
    return
  }
  func.func @transform_0(%arg0: i32) -> (i32, i32) {
    %c0_i32 = arith.constant 0 : i32
    %c0_i32_0 = arith.constant 0 : i32
    return %c0_i32, %arg0 : i32, i32
  }
  func.func @transform_1(%arg0: i32) -> (i32, i32) {
    %c0_i32 = arith.constant 0 : i32
    %c0_i32_0 = arith.constant 0 : i32
    %c0_i32_1 = arith.constant 0 : i32
    return %c0_i32, %c0_i32_0 : i32, i32
  }
  func.func @transform_2(%arg0: i32) -> (i32, i32) {
    %c0_i32 = arith.constant 0 : i32
    %c0_i32_0 = arith.constant 0 : i32
    %c0_i32_1 = arith.constant 0 : i32
    return %c0_i32, %c0_i32_0 : i32, i32
  }
  func.func @transform_3(%arg0: i32) -> (i32, i32) {
    %c0_i32 = arith.constant 0 : i32
    %c0_i32_0 = arith.constant 0 : i32
    %c0_i32_1 = arith.constant 0 : i32
    return %c0_i32, %c0_i32_0 : i32, i32
  }
  func.func @transform_4(%arg0: i32) -> (i32, i32) {
    %c0_i32 = arith.constant 0 : i32
    %c0_i32_0 = arith.constant 0 : i32
    return %c0_i32, %arg0 : i32, i32
  }
  func.func @transform_5(%arg0: i32) -> (i32, i32, i32) {
    %c0_i32 = arith.constant 0 : i32
    %c0_i32_0 = arith.constant 0 : i32
    %c0_i32_1 = arith.constant 0 : i32
    return %arg0, %c0_i32, %c0_i32_0 : i32, i32, i32
  }
  func.func @transform_6(%arg0: i32) -> (i32, i32, i32) {
    %c0_i32 = arith.constant 0 : i32
    %c0_i32_0 = arith.constant 0 : i32
    %c0_i32_1 = arith.constant 0 : i32
    return %arg0, %c0_i32, %c0_i32_0 : i32, i32, i32
  }
}

</mosaic_0001>

<llo_original>
// kernel: mul.49
$region0: #{mul.49}
  #allocation0 [shape = 's32[1]{0}', space=sflag, size = 0x4, scoped, tag = 'scoped memory for mul.49']
  %s0 = inlined_call_operand.vmem [shape: f32[8,1], index: 0, kind: input, shape index: {}]
  %s1 = inlined_call_operand.vmem [shape: f32[8,1], index: 1, kind: input, shape index: {}]
  %s2 = inlined_call_operand.vmem [shape: f32[8,1], index: 2, kind: output, shape index: {}]
  %v3 = vld [vmem:[%s0] sm:$0xff]
  %v4 = vld [vmem:[%s1] sm:$0xff]
  %5 = xla_tuple %v3, %v4
  %6 = xla_tuple %5
  %v7 = vmul.f32 %v3, %v4
  %8 = xla_tuple %v7
  %9 = vst [vmem:[%s2] sm:$0xff] %v7

// kernel: squeeze.8
$region0: #{squeeze.8}
  %s0 = inlined_call_operand.vmem [shape: f32[32], index: 0, kind: input, shape index: {}]
  %s1 = inlined_call_operand.vmem [shape: f32[4,8], index: 1, kind: output, shape index: {}]
  $region1: #{squeeze.8} parent=0
    #allocation0 [shape = 'u8[4096]{0}', space=vmem, size = 0x1000, scoped, tag = 'scoped mem for output reshape']
    #allocation1 [shape = 'u8[4096]{0}', space=vmem, size = 0x1000, scoped, tag = 'scoped mem for input reshape']
    %s3 = sshllo.u32 0, 1
    %v4 = vld [vmem:[%s0] sm:%s3]
    %5 = vst [vmem:[#allocation1] sm:%s3] %v4
    %v6 = vld [vmem:[#allocation1] sm:$0x1]
    %vm7 = vcmask 64512
    %8 = vst.msk [vmem:[#allocation0] sm:$0x1] %vm7, %v6
    %v9 = vld [vmem:[#allocation1] sm:$0x1]
    %10 = vrot.lane.b32.xlu0 %v9, 120
    %v11 = vpop.permute.xlu0 %10
    %vm12 = vcmask 64512
    %s13 = scalar_lea.vmem [#allocation0], 1
    %14 = vst.msk [vmem:[%s13] sm:$0x1] %vm12, %v11
    %v15 = vld [vmem:[#allocation1] sm:$0x1]
    %16 = vrot.lane.b32.xlu0 %v15, 112
    %v17 = vpop.permute.xlu0 %16
    %vm18 = vcmask 64512
    %s19 = scalar_lea.vmem [#allocation0], 2
    %20 = vst.msk [vmem:[%s19] sm:$0x1] %vm18, %v17
    %v21 = vld [vmem:[#allocation1] sm:$0x1]
    %22 = vrot.lane.b32.xlu0 %v21, 104
    %v23 = vpop.permute.xlu0 %22
    %vm24 = vcmask 64512
    %s25 = scalar_lea.vmem [#allocation0], 3
    %26 = vst.msk [vmem:[%s25] sm:$0x1] %vm24, %v23
    %s28 = sshllo.u32 0, 4
    %v30 = vld [vmem:[#allocation0] sm:%s28]
    %s31 = sshllo.u32 0, 4
    %32 = vst [vmem:[%s1] sm:%s31] %v30

// kernel: tile.32
$region0: #{tile.32}
  #allocation0 [shape = 's32[1]{0}', space=sflag, size = 0x4, scoped, tag = 'scoped memory for tile.32']
  %s0 = inlined_call_operand.vmem [shape: f32[8], index: 0, kind: input, shape index: {}]
  %s1 = inlined_call_operand.vmem [shape: f32[4,8], index: 1, kind: output, shape index: {}]
  // Predicated region
  $region2: #{tile.32} parent=0 // pred_check
    _
  $region3: #{tile.32} parent=0 // pred_check_branch
    %3 = sbr.rel (0) target = $region5
  $region4: #{tile.32} parent=0 // pred_region
    _
  $region5: #{tile.32} parent=0 // pred_fallthru
    _
  %v4 = vld [vmem:[%s0] ss:$0 sm:$0xff]
  %5 = vst [vmem:[%s1] sm:$0xf] %v4

// kernel: tile.0
$region0: #{tile.0}
  %s0 = inlined_call_operand.vmem [shape: f32[4,8], index: 0, kind: input, shape index: {}]
  %s1 = inlined_call_operand.vmem [shape: f32[32,1], index: 1, kind: output, shape index: {}]
  $region1: #{tile.0} parent=0
    #allocation0 [shape = 'u8[4096]{0}', space=vmem, size = 0x1000, scoped, tag = 'scoped mem for input reshape']
    %s3 = sshllo.u32 0, 4
    %v4 = vld [vmem:[%s0] sm:%s3]
    %5 = vst [vmem:[#allocation0] sm:%s3] %v4
    %v6 = vld [vmem:[#allocation0] sm:$0xf]
    %vm7 = vcmask 7168
    %8 = vst.msk [vmem:[%s1] ss:$8 sm:$0xf] %vm7, %v6
    %v9 = vld [vmem:[#allocation0] sm:$0xf]
    %10 = vrot.lane.b32.xlu0 %v9, 127
    %v11 = vpop.permute.xlu0 %10
    %vm12 = vcmask 7168
    %s13 = scalar_lea.vmem %s1, 1
    %14 = vst.msk [vmem:[%s13] ss:$8 sm:$0xf] %vm12, %v11
    %v15 = vld [vmem:[#allocation0] sm:$0xf]
    %16 = vrot.lane.b32.xlu0 %v15, 126
    %v17 = vpop.permute.xlu0 %16
    %vm18 = vcmask 7168
    %s19 = scalar_lea.vmem %s1, 2
    %20 = vst.msk [vmem:[%s19] ss:$8 sm:$0xf] %vm18, %v17
    %v21 = vld [vmem:[#allocation0] sm:$0xf]
    %22 = vrot.lane.b32.xlu0 %v21, 125
    %v23 = vpop.permute.xlu0 %22
    %vm24 = vcmask 7168
    %s25 = scalar_lea.vmem %s1, 3
    %26 = vst.msk [vmem:[%s25] ss:$8 sm:$0xf] %vm24, %v23
    %v27 = vld [vmem:[#allocation0] sm:$0xf]
    %28 = vrot.lane.b32.xlu0 %v27, 124
    %v29 = vpop.permute.xlu0 %28
    %vm30 = vcmask 7168
    %s31 = scalar_lea.vmem %s1, 4
    %32 = vst.msk [vmem:[%s31] ss:$8 sm:$0xf] %vm30, %v29
    %v33 = vld [vmem:[#allocation0] sm:$0xf]
    %34 = vrot.lane.b32.xlu0 %v33, 123
    %v35 = vpop.permute.xlu0 %34
    %vm36 = vcmask 7168
    %s37 = scalar_lea.vmem %s1, 5
    %38 = vst.msk [vmem:[%s37] ss:$8 sm:$0xf] %vm36, %v35
    %v39 = vld [vmem:[#allocation0] sm:$0xf]
    %40 = vrot.lane.b32.xlu0 %v39, 122
    %v41 = vpop.permute.xlu0 %40
    %vm42 = vcmask 7168
    %s43 = scalar_lea.vmem %s1, 6
    %44 = vst.msk [vmem:[%s43] ss:$8 sm:$0xf] %vm42, %v41
    %v45 = vld [vmem:[#allocation0] sm:$0xf]
    %46 = vrot.lane.b32.xlu0 %v45, 121
    %v47 = vpop.permute.xlu0 %46
    %vm48 = vcmask 7168
    %s49 = scalar_lea.vmem %s1, 7
    %50 = vst.msk [vmem:[%s49] ss:$8 sm:$0xf] %vm48, %v47

// kernel: squeeze.10
$region0: #{squeeze.10}
  %s0 = inlined_call_operand.vmem [shape: f32[64], index: 0, kind: input, shape index: {}]
  %s1 = inlined_call_operand.vmem [shape: f32[4,16], index: 1, kind: output, shape index: {}]
  $region1: #{squeeze.10} parent=0
    #allocation0 [shape = 'u8[4096]{0}', space=vmem, size = 0x1000, scoped, tag = 'scoped mem for output reshape']
    #allocation1 [shape = 'u8[4096]{0}', space=vmem, size = 0x1000, scoped, tag = 'scoped mem for input reshape']
    %s3 = sshllo.u32 0, 1
    %v4 = vld [vmem:[%s0] sm:%s3]
    %5 = vst [vmem:[#allocation1] sm:%s3] %v4
    %v6 = vld [vmem:[#allocation1] sm:$0x1]
    %vm7 = vcmask 130048
    %8 = vst.msk [vmem:[#allocation0] sm:$0x1] %vm7, %v6
    %v9 = vld [vmem:[#allocation1] sm:$0x1]
    %10 = vrot.lane.b32.xlu0 %v9, 112
    %v11 = vpop.permute.xlu0 %10
    %vm12 = vcmask 130048
    %s13 = scalar_lea.vmem [#allocation0], 1
    %14 = vst.msk [vmem:[%s13] sm:$0x1] %vm12, %v11
    %v15 = vld [vmem:[#allocation1] sm:$0x1]
    %16 = vrot.lane.b32.xlu0 %v15, 96
    %v17 = vpop.permute.xlu0 %16
    %vm18 = vcmask 130048
    %s19 = scalar_lea.vmem [#allocation0], 2
    %20 = vst.msk [vmem:[%s19] sm:$0x1] %vm18, %v17
    %v21 = vld [vmem:[#allocation1] sm:$0x1]
    %22 = vrot.lane.b32.xlu0 %v21, 80
    %v23 = vpop.permute.xlu0 %22
    %vm24 = vcmask 130048
    %s25 = scalar_lea.vmem [#allocation0], 3
    %26 = vst.msk [vmem:[%s25] sm:$0x1] %vm24, %v23
    %s28 = sshllo.u32 0, 4
    %v30 = vld [vmem:[#allocation0] sm:%s28]
    %s31 = sshllo.u32 0, 4
    %32 = vst [vmem:[%s1] sm:%s31] %v30

// kernel: tile.42
$region0: #{tile.42}
  #allocation0 [shape = 's32[1]{0}', space=sflag, size = 0x4, scoped, tag = 'scoped memory for tile.42']
  %s0 = inlined_call_operand.vmem [shape: f32[16], index: 0, kind: input, shape index: {}]
  %s1 = inlined_call_operand.vmem [shape: f32[4,16], index: 1, kind: output, shape index: {}]
  // Predicated region
  $region2: #{tile.42} parent=0 // pred_check
    _
  $region3: #{tile.42} parent=0 // pred_check_branch
    %3 = sbr.rel (0) target = $region5
  $region4: #{tile.42} parent=0 // pred_region
    _
  $region5: #{tile.42} parent=0 // pred_fallthru
    _
  %v4 = vld [vmem:[%s0] ss:$0 sm:$0xff]
  %5 = vst [vmem:[%s1] sm:$0xf] %v4

// kernel: _lambda_.3
$region0: #{_lambda_.3}
  #allocation0 [shape = 'u32[]', space=smem, size = 0x4, offset = 0x4, fixed_abs, tag = 'smem constant byte address 0x4 - core index']
  #allocation1 [shape = 'u32[144,128]{1,0:T(1,128)}', space=vmem, size = 0x12000, scoped, tag = 'internal scratch']
  %s0 = inlined_call_operand.vmem [shape: f32[32,512], index: 0, kind: input, shape index: {}]
  %s1 = inlined_call_operand.vmem [shape: f32[8,32], index: 1, kind: input, shape index: {}]
  %s2 = inlined_call_operand.vmem [shape: f32[8,512], index: 2, kind: output, shape index: {0}]
  %s3 = inlined_call_operand.vmem [shape: f32[2,8,1], index: 3, kind: output, shape index: {1}]
  %s4 = inlined_call_operand.vmem [shape: f32[2,8,1], index: 4, kind: output, shape index: {2}]
  %5 = xla_tuple %s2, %s3, %s4
  %s6 = sld [smem:[#allocation0]]
  $region80: #{_lambda_.3} parent=0
    _
  %s8 = ssub.s32 1, %s6
  %s9 = scalar_select 0, %s8, %s6
  $region1: #{_lambda_.3} parent=0
    #allocation2 [shape = 'u8[65536]{0}', space=vmem, size = 0x10000, scoped, tag = 'input window, operand 0']
    loop: start=0, step=1, limit=4
    $region2: #{_lambda_.3} parent=1 // loop_pre_header
      _
    $region3: #{_lambda_.3} parent=1 // loop_header
      %s11 = sphi 0, %s15
      %p12 = scmp.ge.s32.totalorder %s11, 4
      %s21 = sphi 0, %s23
      %s24 = sphi 0, %s21
      %s25 = sphi 0, %s24
      %s41 = sphi 0, %s25
      %s45 = sphi 0, %s45
      %s47 = sphi 0, %s45
      %s48 = sphi 0, %s47
      %s62 = sphi 0, %s48
      %s68 = sphi 0, %s70
      %s71 = sphi 0, %s68
      %s72 = sphi 0, %s71
      %s88 = sphi 0, %s72
      %s94 = sphi 0, %s96
      %s97 = sphi 0, %s94
      %s98 = sphi 0, %s97
      %s114 = sphi 0, %s98
      %s120 = sphi 0, %s122
      %s123 = sphi 0, %s120
      %s124 = sphi 0, %s123
      %s140 = sphi 0, %s124
    $region4: #{_lambda_.3} parent=1 // loop_header_branch
      %14 = sbr.rel (%p12) target = $region8
    $region5: #{_lambda_.3} parent=1 // loop_body
      %s16 = ssub.s32 %s11, 1
      %s17 = ssub.s32 %s11, 2
      %s18 = sadd.s32 %s11, 1
      %s19 = ssub.s32 %s11, %s18
      %p20 = scmp.eq.s32.totalorder %s19, 0
      %s22 = sadd.s32 %s21, 1
      %s23 = scalar_select %p20, %s21, %s22
      %p26 = pneg %p20
      %p27 = scmp.eq.s32.totalorder %s11, 1
      %p28 = por %p26, %p27
      %p29 = scmp.ne.s32.totalorder %s21, %s24
      %p30 = scmp.eq.s32.totalorder %s11, 0
      %p31 = por %p29, %p30
      %p32 = scmp.ne.s32.totalorder %s21, %s24
      %p33 = scmp.eq.s32.totalorder %s16, 1
      %p34 = por %p32, %p33
      %p35 = scmp.ne.s32.totalorder %s24, %s25
      %p36 = scmp.eq.s32.totalorder %s16, 0
      %p37 = por %p35, %p36
      %p38 = scmp.ne.s32.totalorder %s24, %s25
      %p39 = scmp.eq.s32.totalorder %s17, 1
      %p40 = por %p38, %p39
      %p42 = scmp.ne.s32.totalorder %s25, %s41
      %p43 = scmp.eq.s32.totalorder %s17, 0
      %p44 = por %p42, %p43
      %s46 = sadd.s32 %s45, 1
      %p49 = scmp.eq.s32.totalorder %s11, 1
      %p50 = scmp.ne.s32.totalorder %s45, %s47
      %p51 = scmp.eq.s32.totalorder %s11, 0
      %p52 = por %p50, %p51
      %p53 = scmp.ne.s32.totalorder %s45, %s47
      %p54 = scmp.eq.s32.totalorder %s16, 1
      %p55 = por %p53, %p54
      %p56 = scmp.ne.s32.totalorder %s47, %s48
      %p57 = scmp.eq.s32.totalorder %s16, 0
      %p58 = por %p56, %p57
      %p59 = scmp.ne.s32.totalorder %s47, %s48
      %p60 = scmp.eq.s32.totalorder %s17, 1
      %p61 = por %p59, %p60
      %p63 = scmp.ne.s32.totalorder %s48, %s62
      %p64 = scmp.eq.s32.totalorder %s17, 0
      %p65 = por %p63, %p64
      %s66 = ssub.s32 %s11, %s18
      %p67 = scmp.eq.s32.totalorder %s66, 0
      %s69 = sadd.s32 %s68, 1
      %s70 = scalar_select %p67, %s68, %s69
      %p73 = pneg %p67
      %p74 = scmp.eq.s32.totalorder %s11, 1
      %p75 = por %p73, %p74
      %p76 = scmp.ne.s32.totalorder %s68, %s71
      %p77 = scmp.eq.s32.totalorder %s11, 0
      %p78 = por %p76, %p77
      %p79 = scmp.ne.s32.totalorder %s68, %s71
      %p80 = scmp.eq.s32.totalorder %s16, 1
      %p81 = por %p79, %p80
      %p82 = scmp.ne.s32.totalorder %s71, %s72
      %p83 = scmp.eq.s32.totalorder %s16, 0
      %p84 = por %p82, %p83
      %p85 = scmp.ne.s32.totalorder %s71, %s72
      %p86 = scmp.eq.s32.totalorder %s17, 1
      %p87 = por %p85, %p86
      %p89 = scmp.ne.s32.totalorder %s72, %s88
      %p90 = scmp.eq.s32.totalorder %s17, 0
      %p91 = por %p89, %p90
      %s92 = ssub.s32 %s11, %s18
      %p93 = scmp.eq.s32.totalorder %s92, 0
      %s95 = sadd.s32 %s94, 1
      %s96 = scalar_select %p93, %s94, %s95
      %p99 = pneg %p93
      %p100 = scmp.eq.s32.totalorder %s11, 1
      %p101 = por %p99, %p100
      %p102 = scmp.ne.s32.totalorder %s94, %s97
      %p103 = scmp.eq.s32.totalorder %s11, 0
      %p104 = por %p102, %p103
      %p105 = scmp.ne.s32.totalorder %s94, %s97
      %p106 = scmp.eq.s32.totalorder %s16, 1
      %p107 = por %p105, %p106
      %p108 = scmp.ne.s32.totalorder %s97, %s98
      %p109 = scmp.eq.s32.totalorder %s16, 0
      %p110 = por %p108, %p109
      %p111 = scmp.ne.s32.totalorder %s97, %s98
      %p112 = scmp.eq.s32.totalorder %s17, 1
      %p113 = por %p111, %p112
      %p115 = scmp.ne.s32.totalorder %s98, %s114
      %p116 = scmp.eq.s32.totalorder %s17, 0
      %p117 = por %p115, %p116
      %s118 = ssub.s32 %s11, %s18
      %p119 = scmp.eq.s32.totalorder %s118, 0
      %s121 = sadd.s32 %s120, 1
      %s122 = scalar_select %p119, %s120, %s121
      %p125 = pneg %p119
      %p126 = scmp.eq.s32.totalorder %s11, 1
      %p127 = por %p125, %p126
      %p128 = scmp.ne.s32.totalorder %s120, %s123
      %p129 = scmp.eq.s32.totalorder %s11, 0
      %p130 = por %p128, %p129
      %p131 = scmp.ne.s32.totalorder %s120, %s123
      %p132 = scmp.eq.s32.totalorder %s16, 1
      %p133 = por %p131, %p132
      %p134 = scmp.ne.s32.totalorder %s123, %s124
      %p135 = scmp.eq.s32.totalorder %s16, 0
      %p136 = por %p134, %p135
      %p137 = scmp.ne.s32.totalorder %s123, %s124
      %p138 = scmp.eq.s32.totalorder %s17, 1
      %p139 = por %p137, %p138
      %p141 = scmp.ne.s32.totalorder %s124, %s140
      %p142 = scmp.eq.s32.totalorder %s17, 0
      %p143 = por %p141, %p142
      %p144 = scmp.le.s32.totalorder 1, %s11
      %p145 = scmp.lt.s32.totalorder %s11, 3
      %p146 = pnand %p144, %p145
      %p147 = pneg %p146
      // Predicated region
      $region9: #{_lambda_.3} parent=5 // pred_check
        _
      $region10: #{_lambda_.3} parent=5 // pred_check_branch
        %149 = sbr.rel (%p146) target = $region12
      $region11: #{_lambda_.3} parent=5 // pred_region
        %s150 = ssub.s32 %s11, 1
        // Predicated region
        $region13: #{_lambda_.3} parent=11 // pred_check
          %p151 = pneg %p58
        $region14: #{_lambda_.3} parent=11 // pred_check_branch
          %153 = sbr.rel (%p151) target = $region16
        $region15: #{_lambda_.3} parent=11 // pred_region
          _
        $region16: #{_lambda_.3} parent=11 // pred_fallthru
          _
      $region12: #{_lambda_.3} parent=5 // pred_fallthru
        _
      %p154 = scmp.lt.s32.totalorder %s11, 2
      // Predicated region
      $region17: #{_lambda_.3} parent=5 // pred_check
        %p155 = pneg %p154
      $region18: #{_lambda_.3} parent=5 // pred_check_branch
        %157 = sbr.rel (%p155) target = $region20
      $region19: #{_lambda_.3} parent=5 // pred_region
        // Predicated region
        $region21: #{_lambda_.3} parent=19 // pred_check
          %p158 = pneg %p31
        $region22: #{_lambda_.3} parent=19 // pred_check_branch
          %160 = sbr.rel (%p158) target = $region24
        $region23: #{_lambda_.3} parent=19 // pred_region
          %s161 = sand.u32 %s21, 1
          %s162 = sand.u32 %s21, 1
          %s163 = smul.addr %s162, 64
          %s164 = scalar_lea.vmem [#allocation2], %s163
          %s165 = smul.u32 2, %s11
          %s166 = smul.addr %s165, 8
          %s167 = scalar_lea.vmem %s0, %s166
          // Predicated region
          $region25: #{_lambda_.3} parent=23 // pred_check
            _
          $region26: #{_lambda_.3} parent=23 // pred_check_branch
            %169 = sbr.rel (0) target = $region28
          $region27: #{_lambda_.3} parent=23 // pred_region
            // Predicated region
            $region29: #{_lambda_.3} parent=27 // pred_check
              _
            $region30: #{_lambda_.3} parent=27 // pred_check_branch
              %171 = sbr.rel (0) target = $region32
            $region31: #{_lambda_.3} parent=27 // pred_region
              loop: start=0, step=1, limit=1
              $region33: #{_lambda_.3} parent=31 // loop_pre_header
                _
              $region34: #{_lambda_.3} parent=31 // loop_header
                %s173 = sphi 0, %s177
                %p174 = scmp.ge.s32.totalorder %s173, 1
                %s178 = sphi %s167, %s167
                %s179 = sphi %s164, %s164
              $region35: #{_lambda_.3} parent=31 // loop_header_branch
                %176 = sbr.rel (%p174) target = $region39
              $region36: #{_lambda_.3} parent=31 // loop_body
                %v180 = vld [vmem:[%s178] sm:$0xff]
                %181 = vst [vmem:[%s179] sm:$0xff] %v180
                %v182 = vld [vmem:[%s178 + $0x8] sm:$0xff]
                %183 = vst [vmem:[%s179 + $0x8] sm:$0xff] %v182
                %v184 = vld [vmem:[%s178 + $0x20] sm:$0xff]
                %185 = vst [vmem:[%s179 + $0x10] sm:$0xff] %v184
                %v186 = vld [vmem:[%s178 + $0x28] sm:$0xff]
                %187 = vst [vmem:[%s179 + $0x18] sm:$0xff] %v186
                %v188 = vld [vmem:[%s178 + $0x40] sm:$0xff]
                %189 = vst [vmem:[%s179 + $0x20] sm:$0xff] %v188
                %v190 = vld [vmem:[%s178 + $0x48] sm:$0xff]
                %191 = vst [vmem:[%s179 + $0x28] sm:$0xff] %v190
                %v192 = vld [vmem:[%s178 + $0x60] sm:$0xff]
                %193 = vst [vmem:[%s179 + $0x30] sm:$0xff] %v192
                %v194 = vld [vmem:[%s178 + $0x68] sm:$0xff]
                %195 = vst [vmem:[%s179 + $0x38] sm:$0xff] %v194
              $region37: #{_lambda_.3} parent=31 // loop_footer
                %s177 = sadd.s32 1, %s173
              $region38: #{_lambda_.3} parent=31 // loop_footer_branch
                %172 = sbr.rel target = $region34
              $region39: #{_lambda_.3} parent=31 // loop_exit
                _
            $region32: #{_lambda_.3} parent=27 // pred_fallthru
              _
            // Predicated region
            $region40: #{_lambda_.3} parent=27 // pred_check
              _
            $region41: #{_lambda_.3} parent=27 // pred_check_branch
              %197 = sbr.rel target = $region43
            $region42: #{_lambda_.3} parent=27 // pred_region
              _
            $region43: #{_lambda_.3} parent=27 // pred_fallthru
              _
          $region28: #{_lambda_.3} parent=23 // pred_fallthru
            _
          %198 = vnop
        $region24: #{_lambda_.3} parent=19 // pred_fallthru
          _
      $region20: #{_lambda_.3} parent=5 // pred_fallthru
        _
      %p199 = scmp.le.s32.totalorder 1, %s11
      %p200 = scmp.lt.s32.totalorder %s11, 3
      %p201 = pnand %p199, %p200
      %p202 = pneg %p201
      // Predicated region
      $region44: #{_lambda_.3} parent=5 // pred_check
        _
      $region45: #{_lambda_.3} parent=5 // pred_check_branch
        %204 = sbr.rel (%p201) target = $region47
      $region46: #{_lambda_.3} parent=5 // pred_region
        %s205 = ssub.s32 %s11, 1
        %s206 = sand.u32 %s24, 1
        %s207 = sand.u32 %s24, 1
        %s208 = smul.addr %s207, 64
        %s209 = scalar_lea.vmem [#allocation2], %s208
        // Predicated region
        $region48: #{_lambda_.3} parent=46 // pred_check
          %p210 = pneg %p37
        $region49: #{_lambda_.3} parent=46 // pred_check_branch
          %212 = sbr.rel (%p210) target = $region51
        $region50: #{_lambda_.3} parent=46 // pred_region
          _
        $region51: #{_lambda_.3} parent=46 // pred_fallthru
          _
        %s213 = sand.u32 %s24, 1
        %s214 = sand.u32 %s24, 1
        %s215 = smul.addr %s214, 64
        %s216 = scalar_lea.vmem [#allocation2], %s215
        %p217 = pneg %p37
        %p218 = pneg %p34
        %p219 = pneg %p58
        %p220 = pneg %p55
        %p221 = pneg %p84
        %p222 = pneg %p81
        %s223 = smul.u32 2, %s16
        %p224 = scmp.lt.s32.totalorder %s223, 3
        %s225 = scalar_select %p224, %s223, 3
        %s226 = smul.addr %s225, 8
        %s227 = scalar_lea.vmem %s2, %s226
        %p228 = pneg %p110
        %p229 = pneg %p107
        %p230 = scmp.lt.s32.totalorder %s16, 1
        %s231 = scalar_select %p230, %s16, 1
        %s232 = smul.addr %s231, 8
        %s233 = scalar_lea.vmem %s3, %s232
        %p234 = pneg %p136
        %p235 = pneg %p133
        %p236 = scmp.lt.s32.totalorder %s16, 1
        %s237 = scalar_select %p236, %s16, 1
        %s238 = smul.addr %s237, 8
        %s239 = scalar_lea.vmem %s4, %s238
        %s240 = smul.u32 2, %s16
        %s241 = smul.u32 2, %s16
        %p242 = scmp.lt.s32.totalorder %s241, 3
        %s243 = scalar_select %p242, %s241, 3
        %s244 = smul.addr %s243, 8
        %s245 = scalar_lea.vmem %s2, %s244
        %s246 = smul.u32 2, %s16
        %p247 = scmp.lt.s32.totalorder %s16, 1
        %s248 = scalar_select %p247, %s16, 1
        %s249 = smul.addr %s248, 8
        %s250 = scalar_lea.vmem %s3, %s249
        %p251 = scmp.lt.s32.totalorder %s16, 1
        %s252 = scalar_select %p251, %s16, 1
        %s253 = smul.addr %s252, 8
        %s254 = scalar_lea.vmem %s4, %s253
        %v255 = vld [vmem:[%s1] sm:$0xff]
        %v256 = vld [vmem:[%s209] sm:$0xff]
        %v257 = vld [vmem:[%s209 + $0x8] sm:$0xff]
        %v258 = vld [vmem:[%s209 + $0x10] sm:$0xff]
        %v259 = vld [vmem:[%s209 + $0x18] sm:$0xff]
        %v260 = vld [vmem:[%s209 + $0x20] sm:$0xff]
        %v261 = vld [vmem:[%s209 + $0x28] sm:$0xff]
        %v262 = vld [vmem:[%s209 + $0x30] sm:$0xff]
        %v263 = vld [vmem:[%s209 + $0x38] sm:$0xff]
        %vm264 = vcmask 261120
        %v266 = vsel %vm264, %v255, 0
        %268 = vmatprep.subr.mxu0 %v257
        %269 = vmatpush1.msra.mxu0 %v256
        %270 = vmatprep.subr.mxu0 %v259
        %271 = vmatpush1.msra.mxu0 %v258
        %272 = vmatprep.subr.mxu0 %v261
        %273 = vmatpush1.msra.mxu0 %v260
        %274 = vmatprep.subr.mxu0 %v263
        %275 = vmatpush1.msra.mxu0 %v262
        %276 = vmatprep.subr.mxu0 0.0
        %277 = vmatpush1.msra.mxu0 0.0
        %278 = vmatprep.subr.mxu0 0.0
        %279 = vmatpush1.msra.mxu0 0.0
        %280 = vmatprep.subr.mxu0 0.0
        %281 = vmatpush1.msra.mxu0 0.0
        %282 = vmatprep.subr.mxu0 0.0
        %283 = vmatpush1.msra.mxu0 0.0
        %284 = vmatprep.subr.mxu0 0.0
        %285 = vmatpush1.msra.mxu0 0.0
        %286 = vmatprep.subr.mxu0 0.0
        %287 = vmatpush1.msra.mxu0 0.0
        %288 = vmatprep.subr.mxu0 0.0
        %289 = vmatpush1.msra.mxu0 0.0
        %290 = vmatprep.subr.mxu0 0.0
        %291 = vmatpush1.msra.mxu0 0.0
        %292 = vmatprep.subr.mxu0 0.0
        %293 = vmatpush1.msra.mxu0 0.0
        %294 = vmatprep.subr.mxu0 0.0
        %295 = vmatpush1.msra.mxu0 0.0
        %296 = vmatprep.subr.mxu0 0.0
        %297 = vmatpush1.msra.mxu0 0.0
        %298 = vmatprep.subr.mxu0 0.0
        %299 = vmatpush1.msra.mxu0 0.0
        %300 = vmatprep.subr.mxu0 0.0
        %301 = vmatpush1.msra.mxu0 0.0
        %302 = vmatprep.subr.mxu0 0.0
        %303 = vmatpush1.msra.mxu0 0.0
        %304 = vmatprep.subr.mxu0 0.0
        %305 = vmatpush1.msra.mxu0 0.0
        %306 = vmatprep.subr.mxu0 0.0
        %307 = vmatpush1.msra.mxu0 0.0
        %308 = vmatprep.subr.mxu0 0.0
        %309 = vmatpush1.msra.mxu0 0.0
        %310 = vmatprep.subr.mxu0 0.0
        %311 = vmatpush1.msra.mxu0 0.0
        %312 = vmatprep.subr.mxu0 0.0
        %313 = vmatpush1.msra.mxu0 0.0
        %314 = vmatprep.subr.mxu0 0.0
        %315 = vmatpush1.msra.mxu0 0.0
        %316 = vmatprep.subr.mxu0 0.0
        %317 = vmatpush1.msra.mxu0 0.0
        %318 = vmatprep.subr.mxu0 0.0
        %319 = vmatpush1.msra.mxu0 0.0
        %320 = vmatprep.subr.mxu0 0.0
        %321 = vmatpush1.msra.mxu0 0.0
        %322 = vmatprep.subr.mxu0 0.0
        %323 = vmatpush1.msra.mxu0 0.0
        %324 = vmatprep.subr.mxu0 0.0
        %325 = vmatpush1.msra.mxu0 0.0
        %326 = vmatprep.subr.mxu0 0.0
        %327 = vmatpush1.msra.mxu0 0.0
        %328 = vmatprep.subr.mxu0 0.0
        %329 = vmatpush1.msra.mxu0 0.0
        %330 = vmatprep.subr.mxu0 0.0
        %331 = vmatpush1.msra.mxu0 0.0
        %332 = vmatprep.mubr.f32.mxu0 0.0
        %333 = vmatmul.mubr.f32.gmra.mrb[0].mxu0 %v266
        %v334 = vpop.f32.mrb[0].mxu0
        %v335 = vadd.f32 0.0, %v334
        %v336 = vpop.f32.mrb[0].mxu0
        %v337 = vadd.f32 0.0, %v336
        %338 = vdwg.mxu0
        %339 = vst [vmem:[%s245] sm:$0xff] %v335
        %340 = vst [vmem:[%s245 + $0x8] sm:$0xff] %v337
        %v341 = vadd.f32 %v335, %v337
        %342 = vadd.xlane.f32.xlu0 %v341
        %v343 = vpop.xlane.xlu0 %342
        %vm344 = vcmask 7168
        %345 = vst.msk [vmem:[%s250] sm:$0xff] %vm344, %v343
        %v346 = vmul.f32 %v335, %v335
        %v347 = vmul.f32 %v337, %v337
        %v348 = vadd.f32 %v346, %v347
        %349 = vadd.xlane.f32.xlu0 %v348
        %v350 = vpop.xlane.xlu0 %349
        %351 = vst.msk [vmem:[%s254] sm:$0xff] %vm344, %v350
        %s352 = smul.u32 2, %s16
        %p353 = scmp.lt.s32.totalorder %s352, 3
        %s354 = scalar_select %p353, %s352, 3
        %s355 = smul.addr %s354, 8
        %s356 = scalar_lea.vmem %s2, %s355
        %p357 = scmp.lt.s32.totalorder %s16, 1
        %s358 = scalar_select %p357, %s16, 1
        %s359 = smul.addr %s358, 8
        %s360 = scalar_lea.vmem %s3, %s359
        %p361 = scmp.lt.s32.totalorder %s16, 1
        %s362 = scalar_select %p361, %s16, 1
        %s363 = smul.addr %s362, 8
        %s364 = scalar_lea.vmem %s4, %s363
        // Predicated region
        $region52: #{_lambda_.3} parent=46 // pred_check
          %p365 = pneg %p81
        $region53: #{_lambda_.3} parent=46 // pred_check_branch
          %367 = sbr.rel (%p365) target = $region55
        $region54: #{_lambda_.3} parent=46 // pred_region
          %s368 = smul.u32 2, %s16
        $region55: #{_lambda_.3} parent=46 // pred_fallthru
          _
        // Predicated region
        $region56: #{_lambda_.3} parent=46 // pred_check
          %p369 = pneg %p107
        $region57: #{_lambda_.3} parent=46 // pred_check_branch
          %371 = sbr.rel (%p369) target = $region59
        $region58: #{_lambda_.3} parent=46 // pred_region
          _
        $region59: #{_lambda_.3} parent=46 // pred_fallthru
          _
        // Predicated region
        $region60: #{_lambda_.3} parent=46 // pred_check
          %p372 = pneg %p133
        $region61: #{_lambda_.3} parent=46 // pred_check_branch
          %374 = sbr.rel (%p372) target = $region63
        $region62: #{_lambda_.3} parent=46 // pred_region
          _
        $region63: #{_lambda_.3} parent=46 // pred_fallthru
          _
      $region47: #{_lambda_.3} parent=5 // pred_fallthru
        _
      %p375 = scmp.le.s32.totalorder 2, %s11
      // Predicated region
      $region64: #{_lambda_.3} parent=5 // pred_check
        %p376 = pneg %p375
      $region65: #{_lambda_.3} parent=5 // pred_check_branch
        %378 = sbr.rel (%p376) target = $region67
      $region66: #{_lambda_.3} parent=5 // pred_region
        %s379 = ssub.s32 %s11, 2
        // Predicated region
        $region68: #{_lambda_.3} parent=66 // pred_check
          %p380 = pneg %p87
        $region69: #{_lambda_.3} parent=66 // pred_check_branch
          %382 = sbr.rel (%p380) target = $region71
        $region70: #{_lambda_.3} parent=66 // pred_region
          %s383 = smul.u32 2, %s17
          %p384 = scmp.lt.s32.totalorder %s383, 3
          %s385 = scalar_select %p384, %s383, 3
          %s386 = smul.addr %s385, 8
          %s387 = scalar_lea.vmem %s2, %s386
        $region71: #{_lambda_.3} parent=66 // pred_fallthru
          _
        // Predicated region
        $region72: #{_lambda_.3} parent=66 // pred_check
          %p388 = pneg %p113
        $region73: #{_lambda_.3} parent=66 // pred_check_branch
          %390 = sbr.rel (%p388) target = $region75
        $region74: #{_lambda_.3} parent=66 // pred_region
          %p391 = scmp.lt.s32.totalorder %s17, 1
          %s392 = scalar_select %p391, %s17, 1
          %s393 = smul.addr %s392, 8
          %s394 = scalar_lea.vmem %s3, %s393
        $region75: #{_lambda_.3} parent=66 // pred_fallthru
          _
        // Predicated region
        $region76: #{_lambda_.3} parent=66 // pred_check
          %p395 = pneg %p139
        $region77: #{_lambda_.3} parent=66 // pred_check_branch
          %397 = sbr.rel (%p395) target = $region79
        $region78: #{_lambda_.3} parent=66 // pred_region
          %p398 = scmp.lt.s32.totalorder %s17, 1
          %s399 = scalar_select %p398, %s17, 1
          %s400 = smul.addr %s399, 8
          %s401 = scalar_lea.vmem %s4, %s400
        $region79: #{_lambda_.3} parent=66 // pred_fallthru
          _
      $region67: #{_lambda_.3} parent=5 // pred_fallthru
        _
    $region6: #{_lambda_.3} parent=1 // loop_footer
      %s15 = sadd.s32 1, %s11
    $region7: #{_lambda_.3} parent=1 // loop_footer_branch
      %10 = sbr.rel target = $region3
    $region8: #{_lambda_.3} parent=1 // loop_exit
      _

// kernel: _lambda_.4
$region0: #{_lambda_.4}
  #allocation0 [shape = 'u32[]', space=smem, size = 0x4, offset = 0x4, fixed_abs, tag = 'smem constant byte address 0x4 - core index']
  #allocation1 [shape = 'u32[144,128]{1,0:T(1,128)}', space=vmem, size = 0x12000, scoped, tag = 'internal scratch']
  %s0 = inlined_call_operand.vmem [shape: f32[8,512], index: 0, kind: input, shape index: {}]
  %s1 = inlined_call_operand.vmem [shape: f32[8,1], index: 1, kind: input, shape index: {}]
  %s2 = inlined_call_operand.vmem [shape: f32[8,1], index: 2, kind: input, shape index: {}]
  %s3 = inlined_call_operand.vmem [shape: f32[1,256], index: 3, kind: input, shape index: {}]
  %s4 = inlined_call_operand.vmem [shape: f32[1,256], index: 4, kind: input, shape index: {}]
  %s5 = inlined_call_operand.vmem [shape: f32[32,8], index: 5, kind: input, shape index: {}]
  %s6 = inlined_call_operand.vmem [shape: f32[16,8], index: 6, kind: input, shape index: {}]
  %s7 = inlined_call_operand.vmem [shape: f32[16,8], index: 7, kind: input, shape index: {}]
  %s8 = inlined_call_operand.vmem [shape: f32[8,8], index: 8, kind: input, shape index: {}]
  %s9 = inlined_call_operand.vmem [shape: f32[32,512], index: 9, kind: output, shape index: {0}]
  %s10 = inlined_call_operand.vmem [shape: f32[2,32,1], index: 10, kind: output, shape index: {1}]
  %s11 = inlined_call_operand.vmem [shape: f32[2,32,1], index: 11, kind: output, shape index: {2}]
  %12 = xla_tuple %s9, %s10, %s11
  %s13 = sld [smem:[#allocation0]]
  $region104: #{_lambda_.4} parent=0
    _
  %s15 = ssub.s32 1, %s13
  %s16 = scalar_select 0, %s15, %s13
  $region1: #{_lambda_.4} parent=0
    #allocation2 [shape = 'u8[65536]{0}', space=vmem, size = 0x10000, scoped, tag = 'output window, operand 0']
    loop: start=0, step=1, limit=4
    $region2: #{_lambda_.4} parent=1 // loop_pre_header
      _
    $region3: #{_lambda_.4} parent=1 // loop_header
      %s18 = sphi 0, %s22
      %p19 = scmp.ge.s32.totalorder %s18, 4
      %s28 = sphi 0, %s30
      %s31 = sphi 0, %s28
      %s32 = sphi 0, %s31
      %s48 = sphi 0, %s32
      %s52 = sphi 0, %s52
      %s54 = sphi 0, %s52
      %s55 = sphi 0, %s54
      %s69 = sphi 0, %s55
      %s73 = sphi 0, %s73
      %s75 = sphi 0, %s73
      %s76 = sphi 0, %s75
      %s90 = sphi 0, %s76
      %s94 = sphi 0, %s94
      %s96 = sphi 0, %s94
      %s97 = sphi 0, %s96
      %s111 = sphi 0, %s97
      %s115 = sphi 0, %s115
      %s117 = sphi 0, %s115
      %s118 = sphi 0, %s117
      %s132 = sphi 0, %s118
      %s136 = sphi 0, %s136
      %s138 = sphi 0, %s136
      %s139 = sphi 0, %s138
      %s153 = sphi 0, %s139
      %s157 = sphi 0, %s157
      %s159 = sphi 0, %s157
      %s160 = sphi 0, %s159
      %s174 = sphi 0, %s160
      %s178 = sphi 0, %s178
      %s180 = sphi 0, %s178
      %s181 = sphi 0, %s180
      %s195 = sphi 0, %s181
      %s199 = sphi 0, %s199
      %s201 = sphi 0, %s199
      %s202 = sphi 0, %s201
      %s216 = sphi 0, %s202
      %s222 = sphi 0, %s224
      %s225 = sphi 0, %s222
      %s226 = sphi 0, %s225
      %s242 = sphi 0, %s226
      %s248 = sphi 0, %s250
      %s251 = sphi 0, %s248
      %s252 = sphi 0, %s251
      %s268 = sphi 0, %s252
      %s274 = sphi 0, %s276
      %s277 = sphi 0, %s274
      %s278 = sphi 0, %s277
      %s294 = sphi 0, %s278
    $region4: #{_lambda_.4} parent=1 // loop_header_branch
      %21 = sbr.rel (%p19) target = $region8
    $region5: #{_lambda_.4} parent=1 // loop_body
      %s23 = ssub.s32 %s18, 1
      %s24 = ssub.s32 %s18, 2
      %s25 = sadd.s32 %s18, 1
      %s26 = ssub.s32 %s18, %s25
      %p27 = scmp.eq.s32.totalorder %s26, 0
      %s29 = sadd.s32 %s28, 1
      %s30 = scalar_select %p27, %s28, %s29
      %p33 = pneg %p27
      %p34 = scmp.eq.s32.totalorder %s18, 1
      %p35 = por %p33, %p34
      %p36 = scmp.ne.s32.totalorder %s28, %s31
      %p37 = scmp.eq.s32.totalorder %s18, 0
      %p38 = por %p36, %p37
      %p39 = scmp.ne.s32.totalorder %s28, %s31
      %p40 = scmp.eq.s32.totalorder %s23, 1
      %p41 = por %p39, %p40
      %p42 = scmp.ne.s32.totalorder %s31, %s32
      %p43 = scmp.eq.s32.totalorder %s23, 0
      %p44 = por %p42, %p43
      %p45 = scmp.ne.s32.totalorder %s31, %s32
      %p46 = scmp.eq.s32.totalorder %s24, 1
      %p47 = por %p45, %p46
      %p49 = scmp.ne.s32.totalorder %s32, %s48
      %p50 = scmp.eq.s32.totalorder %s24, 0
      %p51 = por %p49, %p50
      %s53 = sadd.s32 %s52, 1
      %p56 = scmp.eq.s32.totalorder %s18, 1
      %p57 = scmp.ne.s32.totalorder %s52, %s54
      %p58 = scmp.eq.s32.totalorder %s18, 0
      %p59 = por %p57, %p58
      %p60 = scmp.ne.s32.totalorder %s52, %s54
      %p61 = scmp.eq.s32.totalorder %s23, 1
      %p62 = por %p60, %p61
      %p63 = scmp.ne.s32.totalorder %s54, %s55
      %p64 = scmp.eq.s32.totalorder %s23, 0
      %p65 = por %p63, %p64
      %p66 = scmp.ne.s32.totalorder %s54, %s55
      %p67 = scmp.eq.s32.totalorder %s24, 1
      %p68 = por %p66, %p67
      %p70 = scmp.ne.s32.totalorder %s55, %s69
      %p71 = scmp.eq.s32.totalorder %s24, 0
      %p72 = por %p70, %p71
      %s74 = sadd.s32 %s73, 1
      %p77 = scmp.eq.s32.totalorder %s18, 1
      %p78 = scmp.ne.s32.totalorder %s73, %s75
      %p79 = scmp.eq.s32.totalorder %s18, 0
      %p80 = por %p78, %p79
      %p81 = scmp.ne.s32.totalorder %s73, %s75
      %p82 = scmp.eq.s32.totalorder %s23, 1
      %p83 = por %p81, %p82
      %p84 = scmp.ne.s32.totalorder %s75, %s76
      %p85 = scmp.eq.s32.totalorder %s23, 0
      %p86 = por %p84, %p85
      %p87 = scmp.ne.s32.totalorder %s75, %s76
      %p88 = scmp.eq.s32.totalorder %s24, 1
      %p89 = por %p87, %p88
      %p91 = scmp.ne.s32.totalorder %s76, %s90
      %p92 = scmp.eq.s32.totalorder %s24, 0
      %p93 = por %p91, %p92
      %s95 = sadd.s32 %s94, 1
      %p98 = scmp.eq.s32.totalorder %s18, 1
      %p99 = scmp.ne.s32.totalorder %s94, %s96
      %p100 = scmp.eq.s32.totalorder %s18, 0
      %p101 = por %p99, %p100
      %p102 = scmp.ne.s32.totalorder %s94, %s96
      %p103 = scmp.eq.s32.totalorder %s23, 1
      %p104 = por %p102, %p103
      %p105 = scmp.ne.s32.totalorder %s96, %s97
      %p106 = scmp.eq.s32.totalorder %s23, 0
      %p107 = por %p105, %p106
      %p108 = scmp.ne.s32.totalorder %s96, %s97
      %p109 = scmp.eq.s32.totalorder %s24, 1
      %p110 = por %p108, %p109
      %p112 = scmp.ne.s32.totalorder %s97, %s111
      %p113 = scmp.eq.s32.totalorder %s24, 0
      %p114 = por %p112, %p113
      %s116 = sadd.s32 %s115, 1
      %p119 = scmp.eq.s32.totalorder %s18, 1
      %p120 = scmp.ne.s32.totalorder %s115, %s117
      %p121 = scmp.eq.s32.totalorder %s18, 0
      %p122 = por %p120, %p121
      %p123 = scmp.ne.s32.totalorder %s115, %s117
      %p124 = scmp.eq.s32.totalorder %s23, 1
      %p125 = por %p123, %p124
      %p126 = scmp.ne.s32.totalorder %s117, %s118
      %p127 = scmp.eq.s32.totalorder %s23, 0
      %p128 = por %p126, %p127
      %p129 = scmp.ne.s32.totalorder %s117, %s118
      %p130 = scmp.eq.s32.totalorder %s24, 1
      %p131 = por %p129, %p130
      %p133 = scmp.ne.s32.totalorder %s118, %s132
      %p134 = scmp.eq.s32.totalorder %s24, 0
      %p135 = por %p133, %p134
      %s137 = sadd.s32 %s136, 1
      %p140 = scmp.eq.s32.totalorder %s18, 1
      %p141 = scmp.ne.s32.totalorder %s136, %s138
      %p142 = scmp.eq.s32.totalorder %s18, 0
      %p143 = por %p141, %p142
      %p144 = scmp.ne.s32.totalorder %s136, %s138
      %p145 = scmp.eq.s32.totalorder %s23, 1
      %p146 = por %p144, %p145
      %p147 = scmp.ne.s32.totalorder %s138, %s139
      %p148 = scmp.eq.s32.totalorder %s23, 0
      %p149 = por %p147, %p148
      %p150 = scmp.ne.s32.totalorder %s138, %s139
      %p151 = scmp.eq.s32.totalorder %s24, 1
      %p152 = por %p150, %p151
      %p154 = scmp.ne.s32.totalorder %s139, %s153
      %p155 = scmp.eq.s32.totalorder %s24, 0
      %p156 = por %p154, %p155
      %s158 = sadd.s32 %s157, 1
      %p161 = scmp.eq.s32.totalorder %s18, 1
      %p162 = scmp.ne.s32.totalorder %s157, %s159
      %p163 = scmp.eq.s32.totalorder %s18, 0
      %p164 = por %p162, %p163
      %p165 = scmp.ne.s32.totalorder %s157, %s159
      %p166 = scmp.eq.s32.totalorder %s23, 1
      %p167 = por %p165, %p166
      %p168 = scmp.ne.s32.totalorder %s159, %s160
      %p169 = scmp.eq.s32.totalorder %s23, 0
      %p170 = por %p168, %p169
      %p171 = scmp.ne.s32.totalorder %s159, %s160
      %p172 = scmp.eq.s32.totalorder %s24, 1
      %p173 = por %p171, %p172
      %p175 = scmp.ne.s32.totalorder %s160, %s174
      %p176 = scmp.eq.s32.totalorder %s24, 0
      %p177 = por %p175, %p176
      %s179 = sadd.s32 %s178, 1
      %p182 = scmp.eq.s32.totalorder %s18, 1
      %p183 = scmp.ne.s32.totalorder %s178, %s180
      %p184 = scmp.eq.s32.totalorder %s18, 0
      %p185 = por %p183, %p184
      %p186 = scmp.ne.s32.totalorder %s178, %s180
      %p187 = scmp.eq.s32.totalorder %s23, 1
      %p188 = por %p186, %p187
      %p189 = scmp.ne.s32.totalorder %s180, %s181
      %p190 = scmp.eq.s32.totalorder %s23, 0
      %p191 = por %p189, %p190
      %p192 = scmp.ne.s32.totalorder %s180, %s181
      %p193 = scmp.eq.s32.totalorder %s24, 1
      %p194 = por %p192, %p193
      %p196 = scmp.ne.s32.totalorder %s181, %s195
      %p197 = scmp.eq.s32.totalorder %s24, 0
      %p198 = por %p196, %p197
      %s200 = sadd.s32 %s199, 1
      %p203 = scmp.eq.s32.totalorder %s18, 1
      %p204 = scmp.ne.s32.totalorder %s199, %s201
      %p205 = scmp.eq.s32.totalorder %s18, 0
      %p206 = por %p204, %p205
      %p207 = scmp.ne.s32.totalorder %s199, %s201
      %p208 = scmp.eq.s32.totalorder %s23, 1
      %p209 = por %p207, %p208
      %p210 = scmp.ne.s32.totalorder %s201, %s202
      %p211 = scmp.eq.s32.totalorder %s23, 0
      %p212 = por %p210, %p211
      %p213 = scmp.ne.s32.totalorder %s201, %s202
      %p214 = scmp.eq.s32.totalorder %s24, 1
      %p215 = por %p213, %p214
      %p217 = scmp.ne.s32.totalorder %s202, %s216
      %p218 = scmp.eq.s32.totalorder %s24, 0
      %p219 = por %p217, %p218
      %s220 = ssub.s32 %s18, %s25
      %p221 = scmp.eq.s32.totalorder %s220, 0
      %s223 = sadd.s32 %s222, 1
      %s224 = scalar_select %p221, %s222, %s223
      %p227 = pneg %p221
      %p228 = scmp.eq.s32.totalorder %s18, 1
      %p229 = por %p227, %p228
      %p230 = scmp.ne.s32.totalorder %s222, %s225
      %p231 = scmp.eq.s32.totalorder %s18, 0
      %p232 = por %p230, %p231
      %p233 = scmp.ne.s32.totalorder %s222, %s225
      %p234 = scmp.eq.s32.totalorder %s23, 1
      %p235 = por %p233, %p234
      %p236 = scmp.ne.s32.totalorder %s225, %s226
      %p237 = scmp.eq.s32.totalorder %s23, 0
      %p238 = por %p236, %p237
      %p239 = scmp.ne.s32.totalorder %s225, %s226
      %p240 = scmp.eq.s32.totalorder %s24, 1
      %p241 = por %p239, %p240
      %p243 = scmp.ne.s32.totalorder %s226, %s242
      %p244 = scmp.eq.s32.totalorder %s24, 0
      %p245 = por %p243, %p244
      %s246 = ssub.s32 %s18, %s25
      %p247 = scmp.eq.s32.totalorder %s246, 0
      %s249 = sadd.s32 %s248, 1
      %s250 = scalar_select %p247, %s248, %s249
      %p253 = pneg %p247
      %p254 = scmp.eq.s32.totalorder %s18, 1
      %p255 = por %p253, %p254
      %p256 = scmp.ne.s32.totalorder %s248, %s251
      %p257 = scmp.eq.s32.totalorder %s18, 0
      %p258 = por %p256, %p257
      %p259 = scmp.ne.s32.totalorder %s248, %s251
      %p260 = scmp.eq.s32.totalorder %s23, 1
      %p261 = por %p259, %p260
      %p262 = scmp.ne.s32.totalorder %s251, %s252
      %p263 = scmp.eq.s32.totalorder %s23, 0
      %p264 = por %p262, %p263
      %p265 = scmp.ne.s32.totalorder %s251, %s252
      %p266 = scmp.eq.s32.totalorder %s24, 1
      %p267 = por %p265, %p266
      %p269 = scmp.ne.s32.totalorder %s252, %s268
      %p270 = scmp.eq.s32.totalorder %s24, 0
      %p271 = por %p269, %p270
      %s272 = ssub.s32 %s18, %s25
      %p273 = scmp.eq.s32.totalorder %s272, 0
      %s275 = sadd.s32 %s274, 1
      %s276 = scalar_select %p273, %s274, %s275
      %p279 = pneg %p273
      %p280 = scmp.eq.s32.totalorder %s18, 1
      %p281 = por %p279, %p280
      %p282 = scmp.ne.s32.totalorder %s274, %s277
      %p283 = scmp.eq.s32.totalorder %s18, 0
      %p284 = por %p282, %p283
      %p285 = scmp.ne.s32.totalorder %s274, %s277
      %p286 = scmp.eq.s32.totalorder %s23, 1
      %p287 = por %p285, %p286
      %p288 = scmp.ne.s32.totalorder %s277, %s278
      %p289 = scmp.eq.s32.totalorder %s23, 0
      %p290 = por %p288, %p289
      %p291 = scmp.ne.s32.totalorder %s277, %s278
      %p292 = scmp.eq.s32.totalorder %s24, 1
      %p293 = por %p291, %p292
      %p295 = scmp.ne.s32.totalorder %s278, %s294
      %p296 = scmp.eq.s32.totalorder %s24, 0
      %p297 = por %p295, %p296
      %p298 = scmp.le.s32.totalorder 1, %s18
      %p299 = scmp.lt.s32.totalorder %s18, 3
      %p300 = pnand %p298, %p299
      %p301 = pneg %p300
      // Predicated region
      $region9: #{_lambda_.4} parent=5 // pred_check
        _
      $region10: #{_lambda_.4} parent=5 // pred_check_branch
        %303 = sbr.rel (%p300) target = $region12
      $region11: #{_lambda_.4} parent=5 // pred_region
        %s304 = ssub.s32 %s18, 1
        // Predicated region
        $region13: #{_lambda_.4} parent=11 // pred_check
          %p305 = pneg %p65
        $region14: #{_lambda_.4} parent=11 // pred_check_branch
          %307 = sbr.rel (%p305) target = $region16
        $region15: #{_lambda_.4} parent=11 // pred_region
          _
        $region16: #{_lambda_.4} parent=11 // pred_fallthru
          _
        // Predicated region
        $region17: #{_lambda_.4} parent=11 // pred_check
          %p308 = pneg %p86
        $region18: #{_lambda_.4} parent=11 // pred_check_branch
          %310 = sbr.rel (%p308) target = $region20
        $region19: #{_lambda_.4} parent=11 // pred_region
          _
        $region20: #{_lambda_.4} parent=11 // pred_fallthru
          _
        // Predicated region
        $region21: #{_lambda_.4} parent=11 // pred_check
          %p311 = pneg %p107
        $region22: #{_lambda_.4} parent=11 // pred_check_branch
          %313 = sbr.rel (%p311) target = $region24
        $region23: #{_lambda_.4} parent=11 // pred_region
          _
        $region24: #{_lambda_.4} parent=11 // pred_fallthru
          _
        // Predicated region
        $region25: #{_lambda_.4} parent=11 // pred_check
          %p314 = pneg %p128
        $region26: #{_lambda_.4} parent=11 // pred_check_branch
          %316 = sbr.rel (%p314) target = $region28
        $region27: #{_lambda_.4} parent=11 // pred_region
          _
        $region28: #{_lambda_.4} parent=11 // pred_fallthru
          _
        // Predicated region
        $region29: #{_lambda_.4} parent=11 // pred_check
          %p317 = pneg %p149
        $region30: #{_lambda_.4} parent=11 // pred_check_branch
          %319 = sbr.rel (%p317) target = $region32
        $region31: #{_lambda_.4} parent=11 // pred_region
          _
        $region32: #{_lambda_.4} parent=11 // pred_fallthru
          _
        // Predicated region
        $region33: #{_lambda_.4} parent=11 // pred_check
          %p320 = pneg %p170
        $region34: #{_lambda_.4} parent=11 // pred_check_branch
          %322 = sbr.rel (%p320) target = $region36
        $region35: #{_lambda_.4} parent=11 // pred_region
          _
        $region36: #{_lambda_.4} parent=11 // pred_fallthru
          _
        // Predicated region
        $region37: #{_lambda_.4} parent=11 // pred_check
          %p323 = pneg %p191
        $region38: #{_lambda_.4} parent=11 // pred_check_branch
          %325 = sbr.rel (%p323) target = $region40
        $region39: #{_lambda_.4} parent=11 // pred_region
          _
        $region40: #{_lambda_.4} parent=11 // pred_fallthru
          _
        // Predicated region
        $region41: #{_lambda_.4} parent=11 // pred_check
          %p326 = pneg %p212
        $region42: #{_lambda_.4} parent=11 // pred_check_branch
          %328 = sbr.rel (%p326) target = $region44
        $region43: #{_lambda_.4} parent=11 // pred_region
          _
        $region44: #{_lambda_.4} parent=11 // pred_fallthru
          _
      $region12: #{_lambda_.4} parent=5 // pred_fallthru
        _
      %p329 = scmp.lt.s32.totalorder %s18, 2
      // Predicated region
      $region45: #{_lambda_.4} parent=5 // pred_check
        %p330 = pneg %p329
      $region46: #{_lambda_.4} parent=5 // pred_check_branch
        %332 = sbr.rel (%p330) target = $region48
      $region47: #{_lambda_.4} parent=5 // pred_region
        // Predicated region
        $region49: #{_lambda_.4} parent=47 // pred_check
          %p333 = pneg %p38
        $region50: #{_lambda_.4} parent=47 // pred_check_branch
          %335 = sbr.rel (%p333) target = $region52
        $region51: #{_lambda_.4} parent=47 // pred_region
          %s336 = smul.u32 2, %s18
          %p337 = scmp.lt.s32.totalorder %s336, 3
          %s338 = scalar_select %p337, %s336, 3
          %s339 = smul.addr %s338, 8
          %s340 = scalar_lea.vmem %s0, %s339
          %s341 = smul.u32 2, %s18
        $region52: #{_lambda_.4} parent=47 // pred_fallthru
          _
      $region48: #{_lambda_.4} parent=5 // pred_fallthru
        _
      %p342 = scmp.le.s32.totalorder 1, %s18
      %p343 = scmp.lt.s32.totalorder %s18, 3
      %p344 = pnand %p342, %p343
      %p345 = pneg %p344
      // Predicated region
      $region53: #{_lambda_.4} parent=5 // pred_check
        _
      $region54: #{_lambda_.4} parent=5 // pred_check_branch
        %347 = sbr.rel (%p344) target = $region56
      $region55: #{_lambda_.4} parent=5 // pred_region
        %s348 = ssub.s32 %s18, 1
        %s349 = smul.u32 2, %s23
        %p350 = scmp.lt.s32.totalorder %s349, 3
        %s351 = scalar_select %p350, %s349, 3
        %s352 = smul.addr %s351, 8
        %s353 = scalar_lea.vmem %s0, %s352
        %p354 = pneg %p44
        %p355 = pneg %p41
        %p356 = pneg %p65
        %p357 = pneg %p62
        %p358 = pneg %p86
        %p359 = pneg %p83
        %p360 = pneg %p107
        %p361 = pneg %p104
        %p362 = pneg %p128
        %p363 = pneg %p125
        %p364 = pneg %p149
        %p365 = pneg %p146
        %p366 = pneg %p170
        %p367 = pneg %p167
        %p368 = pneg %p191
        %p369 = pneg %p188
        %p370 = pneg %p212
        %p371 = pneg %p209
        %p372 = pneg %p238
        %p373 = pneg %p235
        %s374 = sand.u32 %s225, 1
        %s375 = sand.u32 %s225, 1
        %s376 = smul.addr %s375, 64
        %s377 = scalar_lea.vmem [#allocation2], %s376
        %p378 = pneg %p264
        %p379 = pneg %p261
        %p380 = scmp.lt.s32.totalorder %s23, 1
        %s381 = scalar_select %p380, %s23, 1
        %s382 = smul.addr %s381, 4
        %s383 = smul.addr %s382, 8
        %s384 = scalar_lea.vmem %s10, %s383
        %p385 = pneg %p290
        %p386 = pneg %p287
        %p387 = scmp.lt.s32.totalorder %s23, 1
        %s388 = scalar_select %p387, %s23, 1
        %s389 = smul.addr %s388, 4
        %s390 = smul.addr %s389, 8
        %s391 = scalar_lea.vmem %s11, %s390
        %s392 = smul.u32 2, %s23
        %p393 = scmp.lt.s32.totalorder %s392, 3
        %s394 = scalar_select %p393, %s392, 3
        %s395 = smul.addr %s394, 8
        %s396 = scalar_lea.vmem %s0, %s395
        %s397 = smul.u32 2, %s23
        %s398 = smul.u32 2, %s23
        %p399 = scmp.lt.s32.totalorder %s23, 1
        %s400 = scalar_select %p399, %s23, 1
        %s401 = smul.addr %s400, 4
        %s402 = smul.addr %s401, 8
        %s403 = scalar_lea.vmem %s10, %s402
        %p404 = scmp.lt.s32.totalorder %s23, 1
        %s405 = scalar_select %p404, %s23, 1
        %s406 = smul.addr %s405, 4
        %s407 = smul.addr %s406, 8
        %s408 = scalar_lea.vmem %s11, %s407
        %v409 = vld [vmem:[%s396] sm:$0xff]
        %v410 = vld [vmem:[%s396 + $0x8] sm:$0xff]
        %v411 = vld [vmem:[%s1] sm:$0xff]
        %413 = vset.pattern.permute.xlu0 0
        %414 = vperm.xlu0 %413, %v411
        %v415 = vpop.permute.xlu0 %414
        %v417 = vmul.f32 %v409, %v415
        %v418 = vmul.f32 %v410, %v415
        %v419 = vld [vmem:[%s2] sm:$0xff]
        %421 = vset.pattern.permute.xlu0 0
        %422 = vperm.xlu0 %421, %v419
        %v423 = vpop.permute.xlu0 %422
        %v425 = vadd.f32 %v417, %v423
        %v426 = vadd.f32 %v418, %v423
        %v427 = vmax.f32 %v425, 0.0
        %v428 = vmax.f32 %v426, 0.0
        %v429 = vld [vmem:[%s3] sm:$0x3]
        %v430 = vld [vmem:[%s4] sm:$0x3]
        %431 = vrot.lane.b32.xlu0 %v427, 127
        %v432 = vpop.permute.xlu0 %431
        %433 = vrot.lane.b32.xlu0 %v428, 127
        %v434 = vpop.permute.xlu0 %433
        %v435 = vlaneseq
        %v436 = vand.u32 %v435, 127
        %vm437 = vcmp.lt.s32.totalorder %v436, 127
        %v438 = vsel %vm437, %v432, %v434
        %v439 = vsel %vm437, %v434, %v432
        %v441 = vlaneseq
        %v442 = vshrl.u32 %v441, 7
        %v443 = vsub.s32 0, %v442
        %v444 = vrot.slane %v429, %v443
        %v445 = vlaneseq
        %v446 = vshrl.u32 %v445, 7
        %v447 = vsub.s32 1, %v446
        %v448 = vrot.slane %v429, %v447
        %v451 = vmul.f32 %v438, %v444
        %v452 = vmul.f32 %v439, %v448
        %453 = vrot.lane.b32.xlu0 %v427, 112
        %v454 = vpop.permute.xlu0 %453
        %455 = vrot.lane.b32.xlu0 %v428, 112
        %v456 = vpop.permute.xlu0 %455
        %vm457 = vcmp.lt.s32.totalorder %v436, 112
        %v458 = vsel %vm457, %v454, %v456
        %v459 = vsel %vm457, %v456, %v454
        %v461 = vlaneseq
        %v462 = vshrl.u32 %v461, 7
        %v463 = vsub.s32 0, %v462
        %v464 = vrot.slane %v430, %v463
        %v465 = vlaneseq
        %v466 = vshrl.u32 %v465, 7
        %v467 = vsub.s32 1, %v466
        %v468 = vrot.slane %v430, %v467
        %v471 = vmul.f32 %v458, %v464
        %v472 = vmul.f32 %v459, %v468
        %473 = vrot.lane.b32.xlu0 %v427, 111
        %v474 = vpop.permute.xlu0 %473
        %475 = vrot.lane.b32.xlu0 %v428, 111
        %v476 = vpop.permute.xlu0 %475
        %vm477 = vcmp.lt.s32.totalorder %v436, 111
        %v478 = vsel %vm477, %v474, %v476
        %v479 = vsel %vm477, %v476, %v474
        %v480 = vmul.f32 %v429, %v430
        %v482 = vlaneseq
        %v483 = vshrl.u32 %v482, 7
        %v484 = vsub.s32 0, %v483
        %v485 = vrot.slane %v480, %v484
        %v486 = vlaneseq
        %v487 = vshrl.u32 %v486, 7
        %v488 = vsub.s32 1, %v487
        %v489 = vrot.slane %v480, %v488
        %v492 = vmul.f32 %v478, %v485
        %v493 = vmul.f32 %v479, %v489
        %v494 = vld [vmem:[%s5] sm:$0xff]
        %v495 = vld [vmem:[%s5 + $0x8] sm:$0xff]
        %v496 = vld [vmem:[%s5 + $0x10] sm:$0xff]
        %v497 = vld [vmem:[%s5 + $0x18] sm:$0xff]
        %vm498 = vcmask 64512
        %v500 = vsel %vm498, %v494, 0
        %v503 = vsel %vm498, %v495, 0
        %v506 = vsel %vm498, %v496, 0
        %v509 = vsel %vm498, %v497, 0
        %511 = vmatprep.subr.mxu0 %v428
        %512 = vmatpush1.msra.mxu0 %v427
        %513 = vmatprep.subr.mxu0 0.0
        %514 = vmatpush1.msra.mxu0 0.0
        %515 = vmatprep.subr.mxu0 0.0
        %516 = vmatpush1.msra.mxu0 0.0
        %517 = vmatprep.subr.mxu0 0.0
        %518 = vmatpush1.msra.mxu0 0.0
        %519 = vmatprep.subr.mxu0 0.0
        %520 = vmatpush1.msra.mxu0 0.0
        %521 = vmatprep.subr.mxu0 0.0
        %522 = vmatpush1.msra.mxu0 0.0
        %523 = vmatprep.subr.mxu0 0.0
        %524 = vmatpush1.msra.mxu0 0.0
        %525 = vmatprep.subr.mxu0 0.0
        %526 = vmatpush1.msra.mxu0 0.0
        %527 = vmatprep.subr.mxu0 0.0
        %528 = vmatpush1.msra.mxu0 0.0
        %529 = vmatprep.subr.mxu0 0.0
        %530 = vmatpush1.msra.mxu0 0.0
        %531 = vmatprep.subr.mxu0 0.0
        %532 = vmatpush1.msra.mxu0 0.0
        %533 = vmatprep.subr.mxu0 0.0
        %534 = vmatpush1.msra.mxu0 0.0
        %535 = vmatprep.subr.mxu0 0.0
        %536 = vmatpush1.msra.mxu0 0.0
        %537 = vmatprep.subr.mxu0 0.0
        %538 = vmatpush1.msra.mxu0 0.0
        %539 = vmatprep.subr.mxu0 0.0
        %540 = vmatpush1.msra.mxu0 0.0
        %541 = vmatprep.subr.mxu0 0.0
        %542 = vmatpush1.msra.mxu0 0.0
        %543 = vmatprep.subr.mxu0 0.0
        %544 = vmatpush1.msra.mxu0 0.0
        %545 = vmatprep.subr.mxu0 0.0
        %546 = vmatpush1.msra.mxu0 0.0
        %547 = vmatprep.subr.mxu0 0.0
        %548 = vmatpush1.msra.mxu0 0.0
        %549 = vmatprep.subr.mxu0 0.0
        %550 = vmatpush1.msra.mxu0 0.0
        %551 = vmatprep.subr.mxu0 0.0
        %552 = vmatpush1.msra.mxu0 0.0
        %553 = vmatprep.subr.mxu0 0.0
        %554 = vmatpush1.msra.mxu0 0.0
        %555 = vmatprep.subr.mxu0 0.0
        %556 = vmatpush1.msra.mxu0 0.0
        %557 = vmatprep.subr.mxu0 0.0
        %558 = vmatpush1.msra.mxu0 0.0
        %559 = vmatprep.subr.mxu0 0.0
        %560 = vmatpush1.msra.mxu0 0.0
        %561 = vmatprep.subr.mxu0 0.0
        %562 = vmatpush1.msra.mxu0 0.0
        %563 = vmatprep.subr.mxu0 0.0
        %564 = vmatpush1.msra.mxu0 0.0
        %565 = vmatprep.subr.mxu0 0.0
        %566 = vmatpush1.msra.mxu0 0.0
        %567 = vmatprep.subr.mxu0 0.0
        %568 = vmatpush1.msra.mxu0 0.0
        %569 = vmatprep.subr.mxu0 0.0
        %570 = vmatpush1.msra.mxu0 0.0
        %571 = vmatprep.subr.mxu0 0.0
        %572 = vmatpush1.msra.mxu0 0.0
        %573 = vmatprep.subr.mxu0 0.0
        %574 = vmatpush1.msra.mxu0 0.0
        %575 = vmatprep.mubr.f32.mxu0 0.0
        %576 = vmatmul.mubr.f32.gmra.mrb[0].mxu0 %v500
        %v577 = vpop.f32.mrb[0].mxu0
        %v578 = vadd.f32 0.0, %v577
        %v579 = vpop.f32.mrb[0].mxu0
        %v580 = vadd.f32 0.0, %v579
        %581 = vmatprep.mubr.f32.mxu0 0.0
        %582 = vmatmul.mubr.f32.gmra.mrb[0].mxu0 %v503
        %v583 = vpop.f32.mrb[0].mxu0
        %v584 = vadd.f32 0.0, %v583
        %v585 = vpop.f32.mrb[0].mxu0
        %v586 = vadd.f32 0.0, %v585
        %587 = vmatprep.mubr.f32.mxu0 0.0
        %588 = vmatmul.mubr.f32.gmra.mrb[0].mxu0 %v506
        %v589 = vpop.f32.mrb[0].mxu0
        %v590 = vadd.f32 0.0, %v589
        %v591 = vpop.f32.mrb[0].mxu0
        %v592 = vadd.f32 0.0, %v591
        %593 = vmatprep.mubr.f32.mxu0 0.0
        %594 = vmatmul.mubr.f32.gmra.mrb[0].mxu0 %v509
        %v595 = vpop.f32.mrb[0].mxu0
        %v596 = vadd.f32 0.0, %v595
        %v597 = vpop.f32.mrb[0].mxu0
        %v598 = vadd.f32 0.0, %v597
        %599 = vdwg.mxu0
        %v600 = vld [vmem:[%s6] sm:$0xff]
        %v601 = vld [vmem:[%s6 + $0x8] sm:$0xff]
        %v603 = vsel %vm498, %v600, 0
        %v606 = vsel %vm498, %v601, 0
        %608 = vmatprep.subr.mxu0 %v452
        %609 = vmatpush1.msra.mxu0 %v451
        %610 = vmatprep.subr.mxu0 0.0
        %611 = vmatpush1.msra.mxu0 0.0
        %612 = vmatprep.subr.mxu0 0.0
        %613 = vmatpush1.msra.mxu0 0.0
        %614 = vmatprep.subr.mxu0 0.0
        %615 = vmatpush1.msra.mxu0 0.0
        %616 = vmatprep.subr.mxu0 0.0
        %617 = vmatpush1.msra.mxu0 0.0
        %618 = vmatprep.subr.mxu0 0.0
        %619 = vmatpush1.msra.mxu0 0.0
        %620 = vmatprep.subr.mxu0 0.0
        %621 = vmatpush1.msra.mxu0 0.0
        %622 = vmatprep.subr.mxu0 0.0
        %623 = vmatpush1.msra.mxu0 0.0
        %624 = vmatprep.subr.mxu0 0.0
        %625 = vmatpush1.msra.mxu0 0.0
        %626 = vmatprep.subr.mxu0 0.0
        %627 = vmatpush1.msra.mxu0 0.0
        %628 = vmatprep.subr.mxu0 0.0
        %629 = vmatpush1.msra.mxu0 0.0
        %630 = vmatprep.subr.mxu0 0.0
        %631 = vmatpush1.msra.mxu0 0.0
        %632 = vmatprep.subr.mxu0 0.0
        %633 = vmatpush1.msra.mxu0 0.0
        %634 = vmatprep.subr.mxu0 0.0
        %635 = vmatpush1.msra.mxu0 0.0
        %636 = vmatprep.subr.mxu0 0.0
        %637 = vmatpush1.msra.mxu0 0.0
        %638 = vmatprep.subr.mxu0 0.0
        %639 = vmatpush1.msra.mxu0 0.0
        %640 = vmatprep.subr.mxu0 0.0
        %641 = vmatpush1.msra.mxu0 0.0
        %642 = vmatprep.subr.mxu0 0.0
        %643 = vmatpush1.msra.mxu0 0.0
        %644 = vmatprep.subr.mxu0 0.0
        %645 = vmatpush1.msra.mxu0 0.0
        %646 = vmatprep.subr.mxu0 0.0
        %647 = vmatpush1.msra.mxu0 0.0
        %648 = vmatprep.subr.mxu0 0.0
        %649 = vmatpush1.msra.mxu0 0.0
        %650 = vmatprep.subr.mxu0 0.0
        %651 = vmatpush1.msra.mxu0 0.0
        %652 = vmatprep.subr.mxu0 0.0
        %653 = vmatpush1.msra.mxu0 0.0
        %654 = vmatprep.subr.mxu0 0.0
        %655 = vmatpush1.msra.mxu0 0.0
        %656 = vmatprep.subr.mxu0 0.0
        %657 = vmatpush1.msra.mxu0 0.0
        %658 = vmatprep.subr.mxu0 0.0
        %659 = vmatpush1.msra.mxu0 0.0
        %660 = vmatprep.subr.mxu0 0.0
        %661 = vmatpush1.msra.mxu0 0.0
        %662 = vmatprep.subr.mxu0 0.0
        %663 = vmatpush1.msra.mxu0 0.0
        %664 = vmatprep.subr.mxu0 0.0
        %665 = vmatpush1.msra.mxu0 0.0
        %666 = vmatprep.subr.mxu0 0.0
        %667 = vmatpush1.msra.mxu0 0.0
        %668 = vmatprep.subr.mxu0 0.0
        %669 = vmatpush1.msra.mxu0 0.0
        %670 = vmatprep.subr.mxu0 0.0
        %671 = vmatpush1.msra.mxu0 0.0
        %672 = vmatprep.mubr.f32.mxu0 0.0
        %673 = vmatmul.mubr.f32.gmra.mrb[0].mxu0 %v603
        %v674 = vpop.f32.mrb[0].mxu0
        %v675 = vadd.f32 0.0, %v674
        %v676 = vpop.f32.mrb[0].mxu0
        %v677 = vadd.f32 0.0, %v676
        %678 = vmatprep.mubr.f32.mxu0 0.0
        %679 = vmatmul.mubr.f32.gmra.mrb[0].mxu0 %v606
        %v680 = vpop.f32.mrb[0].mxu0
        %v681 = vadd.f32 0.0, %v680
        %v682 = vpop.f32.mrb[0].mxu0
        %v683 = vadd.f32 0.0, %v682
        %684 = vdwg.mxu0
        %v685 = vld [vmem:[%s7] sm:$0xff]
        %v686 = vld [vmem:[%s7 + $0x8] sm:$0xff]
        %v688 = vsel %vm498, %v685, 0
        %v691 = vsel %vm498, %v686, 0
        %693 = vmatprep.subr.mxu0 %v472
        %694 = vmatpush1.msra.mxu0 %v471
        %695 = vmatprep.subr.mxu0 0.0
        %696 = vmatpush1.msra.mxu0 0.0
        %697 = vmatprep.subr.mxu0 0.0
        %698 = vmatpush1.msra.mxu0 0.0
        %699 = vmatprep.subr.mxu0 0.0
        %700 = vmatpush1.msra.mxu0 0.0
        %701 = vmatprep.subr.mxu0 0.0
        %702 = vmatpush1.msra.mxu0 0.0
        %703 = vmatprep.subr.mxu0 0.0
        %704 = vmatpush1.msra.mxu0 0.0
        %705 = vmatprep.subr.mxu0 0.0
        %706 = vmatpush1.msra.mxu0 0.0
        %707 = vmatprep.subr.mxu0 0.0
        %708 = vmatpush1.msra.mxu0 0.0
        %709 = vmatprep.subr.mxu0 0.0
        %710 = vmatpush1.msra.mxu0 0.0
        %711 = vmatprep.subr.mxu0 0.0
        %712 = vmatpush1.msra.mxu0 0.0
        %713 = vmatprep.subr.mxu0 0.0
        %714 = vmatpush1.msra.mxu0 0.0
        %715 = vmatprep.subr.mxu0 0.0
        %716 = vmatpush1.msra.mxu0 0.0
        %717 = vmatprep.subr.mxu0 0.0
        %718 = vmatpush1.msra.mxu0 0.0
        %719 = vmatprep.subr.mxu0 0.0
        %720 = vmatpush1.msra.mxu0 0.0
        %721 = vmatprep.subr.mxu0 0.0
        %722 = vmatpush1.msra.mxu0 0.0
        %723 = vmatprep.subr.mxu0 0.0
        %724 = vmatpush1.msra.mxu0 0.0
        %725 = vmatprep.subr.mxu0 0.0
        %726 = vmatpush1.msra.mxu0 0.0
        %727 = vmatprep.subr.mxu0 0.0
        %728 = vmatpush1.msra.mxu0 0.0
        %729 = vmatprep.subr.mxu0 0.0
        %730 = vmatpush1.msra.mxu0 0.0
        %731 = vmatprep.subr.mxu0 0.0
        %732 = vmatpush1.msra.mxu0 0.0
        %733 = vmatprep.subr.mxu0 0.0
        %734 = vmatpush1.msra.mxu0 0.0
        %735 = vmatprep.subr.mxu0 0.0
        %736 = vmatpush1.msra.mxu0 0.0
        %737 = vmatprep.subr.mxu0 0.0
        %738 = vmatpush1.msra.mxu0 0.0
        %739 = vmatprep.subr.mxu0 0.0
        %740 = vmatpush1.msra.mxu0 0.0
        %741 = vmatprep.subr.mxu0 0.0
        %742 = vmatpush1.msra.mxu0 0.0
        %743 = vmatprep.subr.mxu0 0.0
        %744 = vmatpush1.msra.mxu0 0.0
        %745 = vmatprep.subr.mxu0 0.0
        %746 = vmatpush1.msra.mxu0 0.0
        %747 = vmatprep.subr.mxu0 0.0
        %748 = vmatpush1.msra.mxu0 0.0
        %749 = vmatprep.subr.mxu0 0.0
        %750 = vmatpush1.msra.mxu0 0.0
        %751 = vmatprep.subr.mxu0 0.0
        %752 = vmatpush1.msra.mxu0 0.0
        %753 = vmatprep.subr.mxu0 0.0
        %754 = vmatpush1.msra.mxu0 0.0
        %755 = vmatprep.subr.mxu0 0.0
        %756 = vmatpush1.msra.mxu0 0.0
        %757 = vmatprep.mubr.f32.mxu0 0.0
        %758 = vmatmul.mubr.f32.gmra.mrb[0].mxu0 %v688
        %v759 = vpop.f32.mrb[0].mxu0
        %v760 = vadd.f32 0.0, %v759
        %v761 = vpop.f32.mrb[0].mxu0
        %v762 = vadd.f32 0.0, %v761
        %763 = vmatprep.mubr.f32.mxu0 0.0
        %764 = vmatmul.mubr.f32.gmra.mrb[0].mxu0 %v691
        %v765 = vpop.f32.mrb[0].mxu0
        %v766 = vadd.f32 0.0, %v765
        %v767 = vpop.f32.mrb[0].mxu0
        %v768 = vadd.f32 0.0, %v767
        %769 = vdwg.mxu0
        %v770 = vld [vmem:[%s8] sm:$0xff]
        %v772 = vsel %vm498, %v770, 0
        %774 = vmatprep.subr.mxu0 %v493
        %775 = vmatpush1.msra.mxu0 %v492
        %776 = vmatprep.subr.mxu0 0.0
        %777 = vmatpush1.msra.mxu0 0.0
        %778 = vmatprep.subr.mxu0 0.0
        %779 = vmatpush1.msra.mxu0 0.0
        %780 = vmatprep.subr.mxu0 0.0
        %781 = vmatpush1.msra.mxu0 0.0
        %782 = vmatprep.subr.mxu0 0.0
        %783 = vmatpush1.msra.mxu0 0.0
        %784 = vmatprep.subr.mxu0 0.0
        %785 = vmatpush1.msra.mxu0 0.0
        %786 = vmatprep.subr.mxu0 0.0
        %787 = vmatpush1.msra.mxu0 0.0
        %788 = vmatprep.subr.mxu0 0.0
        %789 = vmatpush1.msra.mxu0 0.0
        %790 = vmatprep.subr.mxu0 0.0
        %791 = vmatpush1.msra.mxu0 0.0
        %792 = vmatprep.subr.mxu0 0.0
        %793 = vmatpush1.msra.mxu0 0.0
        %794 = vmatprep.subr.mxu0 0.0
        %795 = vmatpush1.msra.mxu0 0.0
        %796 = vmatprep.subr.mxu0 0.0
        %797 = vmatpush1.msra.mxu0 0.0
        %798 = vmatprep.subr.mxu0 0.0
        %799 = vmatpush1.msra.mxu0 0.0
        %800 = vmatprep.subr.mxu0 0.0
        %801 = vmatpush1.msra.mxu0 0.0
        %802 = vmatprep.subr.mxu0 0.0
        %803 = vmatpush1.msra.mxu0 0.0
        %804 = vmatprep.subr.mxu0 0.0
        %805 = vmatpush1.msra.mxu0 0.0
        %806 = vmatprep.subr.mxu0 0.0
        %807 = vmatpush1.msra.mxu0 0.0
        %808 = vmatprep.subr.mxu0 0.0
        %809 = vmatpush1.msra.mxu0 0.0
        %810 = vmatprep.subr.mxu0 0.0
        %811 = vmatpush1.msra.mxu0 0.0
        %812 = vmatprep.subr.mxu0 0.0
        %813 = vmatpush1.msra.mxu0 0.0
        %814 = vmatprep.subr.mxu0 0.0
        %815 = vmatpush1.msra.mxu0 0.0
        %816 = vmatprep.subr.mxu0 0.0
        %817 = vmatpush1.msra.mxu0 0.0
        %818 = vmatprep.subr.mxu0 0.0
        %819 = vmatpush1.msra.mxu0 0.0
        %820 = vmatprep.subr.mxu0 0.0
        %821 = vmatpush1.msra.mxu0 0.0
        %822 = vmatprep.subr.mxu0 0.0
        %823 = vmatpush1.msra.mxu0 0.0
        %824 = vmatprep.subr.mxu0 0.0
        %825 = vmatpush1.msra.mxu0 0.0
        %826 = vmatprep.subr.mxu0 0.0
        %827 = vmatpush1.msra.mxu0 0.0
        %828 = vmatprep.subr.mxu0 0.0
        %829 = vmatpush1.msra.mxu0 0.0
        %830 = vmatprep.subr.mxu0 0.0
        %831 = vmatpush1.msra.mxu0 0.0
        %832 = vmatprep.subr.mxu0 0.0
        %833 = vmatpush1.msra.mxu0 0.0
        %834 = vmatprep.subr.mxu0 0.0
        %835 = vmatpush1.msra.mxu0 0.0
        %836 = vmatprep.subr.mxu0 0.0
        %837 = vmatpush1.msra.mxu0 0.0
        %838 = vmatprep.mubr.f32.mxu0 0.0
        %839 = vmatmul.mubr.f32.gmra.mrb[0].mxu0 %v772
        %v840 = vpop.f32.mrb[0].mxu0
        %v841 = vadd.f32 0.0, %v840
        %v842 = vpop.f32.mrb[0].mxu0
        %v843 = vadd.f32 0.0, %v842
        %844 = vdwg.mxu0
        %v845 = vadd.f32 %v584, %v675
        %v846 = vadd.f32 %v586, %v677
        %v847 = vadd.f32 %v590, %v760
        %v848 = vadd.f32 %v592, %v762
        %v849 = vadd.f32 %v596, %v681
        %v850 = vadd.f32 %v598, %v683
        %v851 = vadd.f32 %v849, %v766
        %v852 = vadd.f32 %v850, %v768
        %v853 = vadd.f32 %v851, %v841
        %v854 = vadd.f32 %v852, %v843
        %855 = vst [vmem:[%s377] sm:$0xff] %v578
        %856 = vst [vmem:[%s377 + $0x8] sm:$0xff] %v580
        %857 = vst [vmem:[%s377 + $0x10] sm:$0xff] %v845
        %858 = vst [vmem:[%s377 + $0x18] sm:$0xff] %v846
        %859 = vst [vmem:[%s377 + $0x20] sm:$0xff] %v847
        %860 = vst [vmem:[%s377 + $0x28] sm:$0xff] %v848
        %861 = vst [vmem:[%s377 + $0x30] sm:$0xff] %v853
        %862 = vst [vmem:[%s377 + $0x38] sm:$0xff] %v854
        %v863 = vadd.f32 %v578, %v580
        %864 = vadd.xlane.f32.xlu0 %v863
        %v865 = vpop.xlane.xlu0 %864
        %v866 = vadd.f32 %v845, %v846
        %867 = vadd.xlane.f32.xlu0 %v866
        %v868 = vpop.xlane.xlu0 %867
        %v869 = vadd.f32 %v847, %v848
        %870 = vadd.xlane.f32.xlu0 %v869
        %v871 = vpop.xlane.xlu0 %870
        %v872 = vadd.f32 %v853, %v854
        %873 = vadd.xlane.f32.xlu0 %v872
        %v874 = vpop.xlane.xlu0 %873
        %vm875 = vcmask 7168
        %876 = vst.msk [vmem:[%s403] sm:$0xff] %vm875, %v865
        %877 = vst.msk [vmem:[%s403 + $0x8] sm:$0xff] %vm875, %v868
        %878 = vst.msk [vmem:[%s403 + $0x10] sm:$0xff] %vm875, %v871
        %879 = vst.msk [vmem:[%s403 + $0x18] sm:$0xff] %vm875, %v874
        %v880 = vmul.f32 %v578, %v578
        %v881 = vmul.f32 %v580, %v580
        %v882 = vadd.f32 %v880, %v881
        %883 = vadd.xlane.f32.xlu0 %v882
        %v884 = vpop.xlane.xlu0 %883
        %v885 = vmul.f32 %v845, %v845
        %v886 = vmul.f32 %v846, %v846
        %v887 = vadd.f32 %v885, %v886
        %888 = vadd.xlane.f32.xlu0 %v887
        %v889 = vpop.xlane.xlu0 %888
        %v890 = vmul.f32 %v847, %v847
        %v891 = vmul.f32 %v848, %v848
        %v892 = vadd.f32 %v890, %v891
        %893 = vadd.xlane.f32.xlu0 %v892
        %v894 = vpop.xlane.xlu0 %893
        %v895 = vmul.f32 %v853, %v853
        %v896 = vmul.f32 %v854, %v854
        %v897 = vadd.f32 %v895, %v896
        %898 = vadd.xlane.f32.xlu0 %v897
        %v899 = vpop.xlane.xlu0 %898
        %900 = vst.msk [vmem:[%s408] sm:$0xff] %vm875, %v884
        %901 = vst.msk [vmem:[%s408 + $0x8] sm:$0xff] %vm875, %v889
        %902 = vst.msk [vmem:[%s408 + $0x10] sm:$0xff] %vm875, %v894
        %903 = vst.msk [vmem:[%s408 + $0x18] sm:$0xff] %vm875, %v899
        %s904 = sand.u32 %s225, 1
        %s905 = sand.u32 %s225, 1
        %s906 = smul.addr %s905, 64
        %s907 = scalar_lea.vmem [#allocation2], %s906
        %p908 = scmp.lt.s32.totalorder %s23, 1
        %s909 = scalar_select %p908, %s23, 1
        %s910 = smul.addr %s909, 4
        %s911 = smul.addr %s910, 8
        %s912 = scalar_lea.vmem %s10, %s911
        %p913 = scmp.lt.s32.totalorder %s23, 1
        %s914 = scalar_select %p913, %s23, 1
        %s915 = smul.addr %s914, 4
        %s916 = smul.addr %s915, 8
        %s917 = scalar_lea.vmem %s11, %s916
        // Predicated region
        $region57: #{_lambda_.4} parent=55 // pred_check
          %p918 = pneg %p235
        $region58: #{_lambda_.4} parent=55 // pred_check_branch
          %920 = sbr.rel (%p918) target = $region60
        $region59: #{_lambda_.4} parent=55 // pred_region
          %s921 = smul.u32 2, %s23
          %s922 = smul.addr %s921, 8
          %s923 = scalar_lea.vmem %s9, %s922
          // Predicated region
          $region61: #{_lambda_.4} parent=59 // pred_check
            _
          $region62: #{_lambda_.4} parent=59 // pred_check_branch
            %925 = sbr.rel (0) target = $region64
          $region63: #{_lambda_.4} parent=59 // pred_region
            // Predicated region
            $region65: #{_lambda_.4} parent=63 // pred_check
              _
            $region66: #{_lambda_.4} parent=63 // pred_check_branch
              %927 = sbr.rel (0) target = $region68
            $region67: #{_lambda_.4} parent=63 // pred_region
              loop: start=0, step=1, limit=1
              $region69: #{_lambda_.4} parent=67 // loop_pre_header
                _
              $region70: #{_lambda_.4} parent=67 // loop_header
                %s929 = sphi 0, %s933
                %p930 = scmp.ge.s32.totalorder %s929, 1
                %s934 = sphi %s907, %s907
                %s935 = sphi %s923, %s923
              $region71: #{_lambda_.4} parent=67 // loop_header_branch
                %932 = sbr.rel (%p930) target = $region75
              $region72: #{_lambda_.4} parent=67 // loop_body
                %v936 = vld [vmem:[%s934] sm:$0xff]
                %937 = vst [vmem:[%s935] sm:$0xff] %v936
                %v938 = vld [vmem:[%s934 + $0x8] sm:$0xff]
                %939 = vst [vmem:[%s935 + $0x8] sm:$0xff] %v938
                %v940 = vld [vmem:[%s934 + $0x10] sm:$0xff]
                %941 = vst [vmem:[%s935 + $0x20] sm:$0xff] %v940
                %v942 = vld [vmem:[%s934 + $0x18] sm:$0xff]
                %943 = vst [vmem:[%s935 + $0x28] sm:$0xff] %v942
                %v944 = vld [vmem:[%s934 + $0x20] sm:$0xff]
                %945 = vst [vmem:[%s935 + $0x40] sm:$0xff] %v944
                %v946 = vld [vmem:[%s934 + $0x28] sm:$0xff]
                %947 = vst [vmem:[%s935 + $0x48] sm:$0xff] %v946
                %v948 = vld [vmem:[%s934 + $0x30] sm:$0xff]
                %949 = vst [vmem:[%s935 + $0x60] sm:$0xff] %v948
                %v950 = vld [vmem:[%s934 + $0x38] sm:$0xff]
                %951 = vst [vmem:[%s935 + $0x68] sm:$0xff] %v950
              $region73: #{_lambda_.4} parent=67 // loop_footer
                %s933 = sadd.s32 1, %s929
              $region74: #{_lambda_.4} parent=67 // loop_footer_branch
                %928 = sbr.rel target = $region70
              $region75: #{_lambda_.4} parent=67 // loop_exit
                _
            $region68: #{_lambda_.4} parent=63 // pred_fallthru
              _
            // Predicated region
            $region76: #{_lambda_.4} parent=63 // pred_check
              _
            $region77: #{_lambda_.4} parent=63 // pred_check_branch
              %953 = sbr.rel target = $region79
            $region78: #{_lambda_.4} parent=63 // pred_region
              _
            $region79: #{_lambda_.4} parent=63 // pred_fallthru
              _
          $region64: #{_lambda_.4} parent=59 // pred_fallthru
            _
          %954 = vnop
        $region60: #{_lambda_.4} parent=55 // pred_fallthru
          _
        // Predicated region
        $region80: #{_lambda_.4} parent=55 // pred_check
          %p955 = pneg %p261
        $region81: #{_lambda_.4} parent=55 // pred_check_branch
          %957 = sbr.rel (%p955) target = $region83
        $region82: #{_lambda_.4} parent=55 // pred_region
          _
        $region83: #{_lambda_.4} parent=55 // pred_fallthru
          _
        // Predicated region
        $region84: #{_lambda_.4} parent=55 // pred_check
          %p958 = pneg %p287
        $region85: #{_lambda_.4} parent=55 // pred_check_branch
          %960 = sbr.rel (%p958) target = $region87
        $region86: #{_lambda_.4} parent=55 // pred_region
          _
        $region87: #{_lambda_.4} parent=55 // pred_fallthru
          _
      $region56: #{_lambda_.4} parent=5 // pred_fallthru
        _
      %p961 = scmp.le.s32.totalorder 2, %s18
      // Predicated region
      $region88: #{_lambda_.4} parent=5 // pred_check
        %p962 = pneg %p961
      $region89: #{_lambda_.4} parent=5 // pred_check_branch
        %964 = sbr.rel (%p962) target = $region91
      $region90: #{_lambda_.4} parent=5 // pred_region
        %s965 = ssub.s32 %s18, 2
        // Predicated region
        $region92: #{_lambda_.4} parent=90 // pred_check
          %p966 = pneg %p241
        $region93: #{_lambda_.4} parent=90 // pred_check_branch
          %968 = sbr.rel (%p966) target = $region95
        $region94: #{_lambda_.4} parent=90 // pred_region
          %s969 = sand.u32 %s226, 1
          %s970 = sand.u32 %s226, 1
          %s971 = smul.addr %s970, 64
          %s972 = scalar_lea.vmem [#allocation2], %s971
        $region95: #{_lambda_.4} parent=90 // pred_fallthru
          _
        // Predicated region
        $region96: #{_lambda_.4} parent=90 // pred_check
          %p973 = pneg %p267
        $region97: #{_lambda_.4} parent=90 // pred_check_branch
          %975 = sbr.rel (%p973) target = $region99
        $region98: #{_lambda_.4} parent=90 // pred_region
          %p976 = scmp.lt.s32.totalorder %s24, 1
          %s977 = scalar_select %p976, %s24, 1
          %s978 = smul.addr %s977, 4
          %s979 = smul.addr %s978, 8
          %s980 = scalar_lea.vmem %s10, %s979
        $region99: #{_lambda_.4} parent=90 // pred_fallthru
          _
        // Predicated region
        $region100: #{_lambda_.4} parent=90 // pred_check
          %p981 = pneg %p293
        $region101: #{_lambda_.4} parent=90 // pred_check_branch
          %983 = sbr.rel (%p981) target = $region103
        $region102: #{_lambda_.4} parent=90 // pred_region
          %p984 = scmp.lt.s32.totalorder %s24, 1
          %s985 = scalar_select %p984, %s24, 1
          %s986 = smul.addr %s985, 4
          %s987 = smul.addr %s986, 8
          %s988 = scalar_lea.vmem %s11, %s987
        $region103: #{_lambda_.4} parent=90 // pred_fallthru
          _
      $region91: #{_lambda_.4} parent=5 // pred_fallthru
        _
    $region6: #{_lambda_.4} parent=1 // loop_footer
      %s22 = sadd.s32 1, %s18
    $region7: #{_lambda_.4} parent=1 // loop_footer_branch
      %17 = sbr.rel target = $region3
    $region8: #{_lambda_.4} parent=1 // loop_exit
      _

// kernel: _lambda_.5
$region0: #{_lambda_.5}
  #allocation0 [shape = 'u32[]', space=smem, size = 0x4, offset = 0x4, fixed_abs, tag = 'smem constant byte address 0x4 - core index']
  #allocation1 [shape = 'u32[144,128]{1,0:T(1,128)}', space=vmem, size = 0x12000, scoped, tag = 'internal scratch']
  %s0 = inlined_call_operand.vmem [shape: f32[32,512], index: 0, kind: input, shape index: {}]
  %s1 = inlined_call_operand.vmem [shape: f32[32,1], index: 1, kind: input, shape index: {}]
  %s2 = inlined_call_operand.vmem [shape: f32[32,1], index: 2, kind: input, shape index: {}]
  %s3 = inlined_call_operand.vmem [shape: f32[16,8], index: 3, kind: input, shape index: {}]
  %s4 = inlined_call_operand.vmem [shape: f32[64,512], index: 4, kind: output, shape index: {0}]
  %s5 = inlined_call_operand.vmem [shape: f32[2,64,1], index: 5, kind: output, shape index: {1}]
  %s6 = inlined_call_operand.vmem [shape: f32[2,64,1], index: 6, kind: output, shape index: {2}]
  %7 = xla_tuple %s4, %s5, %s6
  %s8 = sld [smem:[#allocation0]]
  $region107: #{_lambda_.5} parent=0
    _
  %s10 = ssub.s32 1, %s8
  %s11 = scalar_select 0, %s10, %s8
  $region1: #{_lambda_.5} parent=0
    #allocation2 [shape = 'u8[65536]{0}', space=vmem, size = 0x10000, scoped, tag = 'input window, operand 0']
    #allocation3 [shape = 'u8[131072]{0}', space=vmem, size = 0x20000, scoped, tag = 'output window, operand 0']
    loop: start=0, step=1, limit=4
    $region2: #{_lambda_.5} parent=1 // loop_pre_header
      _
    $region3: #{_lambda_.5} parent=1 // loop_header
      %s13 = sphi 0, %s17
      %p14 = scmp.ge.s32.totalorder %s13, 4
      %s23 = sphi 0, %s25
      %s26 = sphi 0, %s23
      %s27 = sphi 0, %s26
      %s43 = sphi 0, %s27
      %s47 = sphi 0, %s47
      %s49 = sphi 0, %s47
      %s50 = sphi 0, %s49
      %s64 = sphi 0, %s50
      %s68 = sphi 0, %s68
      %s70 = sphi 0, %s68
      %s71 = sphi 0, %s70
      %s85 = sphi 0, %s71
      %s89 = sphi 0, %s89
      %s91 = sphi 0, %s89
      %s92 = sphi 0, %s91
      %s106 = sphi 0, %s92
      %s112 = sphi 0, %s114
      %s115 = sphi 0, %s112
      %s116 = sphi 0, %s115
      %s132 = sphi 0, %s116
      %s138 = sphi 0, %s140
      %s141 = sphi 0, %s138
      %s142 = sphi 0, %s141
      %s158 = sphi 0, %s142
      %s164 = sphi 0, %s166
      %s167 = sphi 0, %s164
      %s168 = sphi 0, %s167
      %s184 = sphi 0, %s168
    $region4: #{_lambda_.5} parent=1 // loop_header_branch
      %16 = sbr.rel (%p14) target = $region8
    $region5: #{_lambda_.5} parent=1 // loop_body
      %s18 = ssub.s32 %s13, 1
      %s19 = ssub.s32 %s13, 2
      %s20 = sadd.s32 %s13, 1
      %s21 = ssub.s32 %s13, %s20
      %p22 = scmp.eq.s32.totalorder %s21, 0
      %s24 = sadd.s32 %s23, 1
      %s25 = scalar_select %p22, %s23, %s24
      %p28 = pneg %p22
      %p29 = scmp.eq.s32.totalorder %s13, 1
      %p30 = por %p28, %p29
      %p31 = scmp.ne.s32.totalorder %s23, %s26
      %p32 = scmp.eq.s32.totalorder %s13, 0
      %p33 = por %p31, %p32
      %p34 = scmp.ne.s32.totalorder %s23, %s26
      %p35 = scmp.eq.s32.totalorder %s18, 1
      %p36 = por %p34, %p35
      %p37 = scmp.ne.s32.totalorder %s26, %s27
      %p38 = scmp.eq.s32.totalorder %s18, 0
      %p39 = por %p37, %p38
      %p40 = scmp.ne.s32.totalorder %s26, %s27
      %p41 = scmp.eq.s32.totalorder %s19, 1
      %p42 = por %p40, %p41
      %p44 = scmp.ne.s32.totalorder %s27, %s43
      %p45 = scmp.eq.s32.totalorder %s19, 0
      %p46 = por %p44, %p45
      %s48 = sadd.s32 %s47, 1
      %p51 = scmp.eq.s32.totalorder %s13, 1
      %p52 = scmp.ne.s32.totalorder %s47, %s49
      %p53 = scmp.eq.s32.totalorder %s13, 0
      %p54 = por %p52, %p53
      %p55 = scmp.ne.s32.totalorder %s47, %s49
      %p56 = scmp.eq.s32.totalorder %s18, 1
      %p57 = por %p55, %p56
      %p58 = scmp.ne.s32.totalorder %s49, %s50
      %p59 = scmp.eq.s32.totalorder %s18, 0
      %p60 = por %p58, %p59
      %p61 = scmp.ne.s32.totalorder %s49, %s50
      %p62 = scmp.eq.s32.totalorder %s19, 1
      %p63 = por %p61, %p62
      %p65 = scmp.ne.s32.totalorder %s50, %s64
      %p66 = scmp.eq.s32.totalorder %s19, 0
      %p67 = por %p65, %p66
      %s69 = sadd.s32 %s68, 1
      %p72 = scmp.eq.s32.totalorder %s13, 1
      %p73 = scmp.ne.s32.totalorder %s68, %s70
      %p74 = scmp.eq.s32.totalorder %s13, 0
      %p75 = por %p73, %p74
      %p76 = scmp.ne.s32.totalorder %s68, %s70
      %p77 = scmp.eq.s32.totalorder %s18, 1
      %p78 = por %p76, %p77
      %p79 = scmp.ne.s32.totalorder %s70, %s71
      %p80 = scmp.eq.s32.totalorder %s18, 0
      %p81 = por %p79, %p80
      %p82 = scmp.ne.s32.totalorder %s70, %s71
      %p83 = scmp.eq.s32.totalorder %s19, 1
      %p84 = por %p82, %p83
      %p86 = scmp.ne.s32.totalorder %s71, %s85
      %p87 = scmp.eq.s32.totalorder %s19, 0
      %p88 = por %p86, %p87
      %s90 = sadd.s32 %s89, 1
      %p93 = scmp.eq.s32.totalorder %s13, 1
      %p94 = scmp.ne.s32.totalorder %s89, %s91
      %p95 = scmp.eq.s32.totalorder %s13, 0
      %p96 = por %p94, %p95
      %p97 = scmp.ne.s32.totalorder %s89, %s91
      %p98 = scmp.eq.s32.totalorder %s18, 1
      %p99 = por %p97, %p98
      %p100 = scmp.ne.s32.totalorder %s91, %s92
      %p101 = scmp.eq.s32.totalorder %s18, 0
      %p102 = por %p100, %p101
      %p103 = scmp.ne.s32.totalorder %s91, %s92
      %p104 = scmp.eq.s32.totalorder %s19, 1
      %p105 = por %p103, %p104
      %p107 = scmp.ne.s32.totalorder %s92, %s106
      %p108 = scmp.eq.s32.totalorder %s19, 0
      %p109 = por %p107, %p108
      %s110 = ssub.s32 %s13, %s20
      %p111 = scmp.eq.s32.totalorder %s110, 0
      %s113 = sadd.s32 %s112, 1
      %s114 = scalar_select %p111, %s112, %s113
      %p117 = pneg %p111
      %p118 = scmp.eq.s32.totalorder %s13, 1
      %p119 = por %p117, %p118
      %p120 = scmp.ne.s32.totalorder %s112, %s115
      %p121 = scmp.eq.s32.totalorder %s13, 0
      %p122 = por %p120, %p121
      %p123 = scmp.ne.s32.totalorder %s112, %s115
      %p124 = scmp.eq.s32.totalorder %s18, 1
      %p125 = por %p123, %p124
      %p126 = scmp.ne.s32.totalorder %s115, %s116
      %p127 = scmp.eq.s32.totalorder %s18, 0
      %p128 = por %p126, %p127
      %p129 = scmp.ne.s32.totalorder %s115, %s116
      %p130 = scmp.eq.s32.totalorder %s19, 1
      %p131 = por %p129, %p130
      %p133 = scmp.ne.s32.totalorder %s116, %s132
      %p134 = scmp.eq.s32.totalorder %s19, 0
      %p135 = por %p133, %p134
      %s136 = ssub.s32 %s13, %s20
      %p137 = scmp.eq.s32.totalorder %s136, 0
      %s139 = sadd.s32 %s138, 1
      %s140 = scalar_select %p137, %s138, %s139
      %p143 = pneg %p137
      %p144 = scmp.eq.s32.totalorder %s13, 1
      %p145 = por %p143, %p144
      %p146 = scmp.ne.s32.totalorder %s138, %s141
      %p147 = scmp.eq.s32.totalorder %s13, 0
      %p148 = por %p146, %p147
      %p149 = scmp.ne.s32.totalorder %s138, %s141
      %p150 = scmp.eq.s32.totalorder %s18, 1
      %p151 = por %p149, %p150
      %p152 = scmp.ne.s32.totalorder %s141, %s142
      %p153 = scmp.eq.s32.totalorder %s18, 0
      %p154 = por %p152, %p153
      %p155 = scmp.ne.s32.totalorder %s141, %s142
      %p156 = scmp.eq.s32.totalorder %s19, 1
      %p157 = por %p155, %p156
      %p159 = scmp.ne.s32.totalorder %s142, %s158
      %p160 = scmp.eq.s32.totalorder %s19, 0
      %p161 = por %p159, %p160
      %s162 = ssub.s32 %s13, %s20
      %p163 = scmp.eq.s32.totalorder %s162, 0
      %s165 = sadd.s32 %s164, 1
      %s166 = scalar_select %p163, %s164, %s165
      %p169 = pneg %p163
      %p170 = scmp.eq.s32.totalorder %s13, 1
      %p171 = por %p169, %p170
      %p172 = scmp.ne.s32.totalorder %s164, %s167
      %p173 = scmp.eq.s32.totalorder %s13, 0
      %p174 = por %p172, %p173
      %p175 = scmp.ne.s32.totalorder %s164, %s167
      %p176 = scmp.eq.s32.totalorder %s18, 1
      %p177 = por %p175, %p176
      %p178 = scmp.ne.s32.totalorder %s167, %s168
      %p179 = scmp.eq.s32.totalorder %s18, 0
      %p180 = por %p178, %p179
      %p181 = scmp.ne.s32.totalorder %s167, %s168
      %p182 = scmp.eq.s32.totalorder %s19, 1
      %p183 = por %p181, %p182
      %p185 = scmp.ne.s32.totalorder %s168, %s184
      %p186 = scmp.eq.s32.totalorder %s19, 0
      %p187 = por %p185, %p186
      %p188 = scmp.le.s32.totalorder 1, %s13
      %p189 = scmp.lt.s32.totalorder %s13, 3
      %p190 = pnand %p188, %p189
      %p191 = pneg %p190
      // Predicated region
      $region9: #{_lambda_.5} parent=5 // pred_check
        _
      $region10: #{_lambda_.5} parent=5 // pred_check_branch
        %193 = sbr.rel (%p190) target = $region12
      $region11: #{_lambda_.5} parent=5 // pred_region
        %s194 = ssub.s32 %s13, 1
        // Predicated region
        $region13: #{_lambda_.5} parent=11 // pred_check
          %p195 = pneg %p60
        $region14: #{_lambda_.5} parent=11 // pred_check_branch
          %197 = sbr.rel (%p195) target = $region16
        $region15: #{_lambda_.5} parent=11 // pred_region
          _
        $region16: #{_lambda_.5} parent=11 // pred_fallthru
          _
        // Predicated region
        $region17: #{_lambda_.5} parent=11 // pred_check
          %p198 = pneg %p81
        $region18: #{_lambda_.5} parent=11 // pred_check_branch
          %200 = sbr.rel (%p198) target = $region20
        $region19: #{_lambda_.5} parent=11 // pred_region
          _
        $region20: #{_lambda_.5} parent=11 // pred_fallthru
          _
        // Predicated region
        $region21: #{_lambda_.5} parent=11 // pred_check
          %p201 = pneg %p102
        $region22: #{_lambda_.5} parent=11 // pred_check_branch
          %203 = sbr.rel (%p201) target = $region24
        $region23: #{_lambda_.5} parent=11 // pred_region
          _
        $region24: #{_lambda_.5} parent=11 // pred_fallthru
          _
      $region12: #{_lambda_.5} parent=5 // pred_fallthru
        _
      %p204 = scmp.lt.s32.totalorder %s13, 2
      // Predicated region
      $region25: #{_lambda_.5} parent=5 // pred_check
        %p205 = pneg %p204
      $region26: #{_lambda_.5} parent=5 // pred_check_branch
        %207 = sbr.rel (%p205) target = $region28
      $region27: #{_lambda_.5} parent=5 // pred_region
        // Predicated region
        $region29: #{_lambda_.5} parent=27 // pred_check
          %p208 = pneg %p33
        $region30: #{_lambda_.5} parent=27 // pred_check_branch
          %210 = sbr.rel (%p208) target = $region32
        $region31: #{_lambda_.5} parent=27 // pred_region
          %s211 = sand.u32 %s23, 1
          %s212 = sand.u32 %s23, 1
          %s213 = smul.addr %s212, 64
          %s214 = scalar_lea.vmem [#allocation2], %s213
          %s215 = smul.u32 2, %s13
          %s216 = smul.addr %s215, 8
          %s217 = scalar_lea.vmem %s0, %s216
          // Predicated region
          $region33: #{_lambda_.5} parent=31 // pred_check
            _
          $region34: #{_lambda_.5} parent=31 // pred_check_branch
            %219 = sbr.rel (0) target = $region36
          $region35: #{_lambda_.5} parent=31 // pred_region
            // Predicated region
            $region37: #{_lambda_.5} parent=35 // pred_check
              _
            $region38: #{_lambda_.5} parent=35 // pred_check_branch
              %221 = sbr.rel (0) target = $region40
            $region39: #{_lambda_.5} parent=35 // pred_region
              loop: start=0, step=1, limit=1
              $region41: #{_lambda_.5} parent=39 // loop_pre_header
                _
              $region42: #{_lambda_.5} parent=39 // loop_header
                %s223 = sphi 0, %s227
                %p224 = scmp.ge.s32.totalorder %s223, 1
                %s228 = sphi %s217, %s217
                %s229 = sphi %s214, %s214
              $region43: #{_lambda_.5} parent=39 // loop_header_branch
                %226 = sbr.rel (%p224) target = $region47
              $region44: #{_lambda_.5} parent=39 // loop_body
                %v230 = vld [vmem:[%s228] sm:$0xff]
                %231 = vst [vmem:[%s229] sm:$0xff] %v230
                %v232 = vld [vmem:[%s228 + $0x8] sm:$0xff]
                %233 = vst [vmem:[%s229 + $0x8] sm:$0xff] %v232
                %v234 = vld [vmem:[%s228 + $0x20] sm:$0xff]
                %235 = vst [vmem:[%s229 + $0x10] sm:$0xff] %v234
                %v236 = vld [vmem:[%s228 + $0x28] sm:$0xff]
                %237 = vst [vmem:[%s229 + $0x18] sm:$0xff] %v236
                %v238 = vld [vmem:[%s228 + $0x40] sm:$0xff]
                %239 = vst [vmem:[%s229 + $0x20] sm:$0xff] %v238
                %v240 = vld [vmem:[%s228 + $0x48] sm:$0xff]
                %241 = vst [vmem:[%s229 + $0x28] sm:$0xff] %v240
                %v242 = vld [vmem:[%s228 + $0x60] sm:$0xff]
                %243 = vst [vmem:[%s229 + $0x30] sm:$0xff] %v242
                %v244 = vld [vmem:[%s228 + $0x68] sm:$0xff]
                %245 = vst [vmem:[%s229 + $0x38] sm:$0xff] %v244
              $region45: #{_lambda_.5} parent=39 // loop_footer
                %s227 = sadd.s32 1, %s223
              $region46: #{_lambda_.5} parent=39 // loop_footer_branch
                %222 = sbr.rel target = $region42
              $region47: #{_lambda_.5} parent=39 // loop_exit
                _
            $region40: #{_lambda_.5} parent=35 // pred_fallthru
              _
            // Predicated region
            $region48: #{_lambda_.5} parent=35 // pred_check
              _
            $region49: #{_lambda_.5} parent=35 // pred_check_branch
              %247 = sbr.rel target = $region51
            $region50: #{_lambda_.5} parent=35 // pred_region
              _
            $region51: #{_lambda_.5} parent=35 // pred_fallthru
              _
          $region36: #{_lambda_.5} parent=31 // pred_fallthru
            _
          %248 = vnop
        $region32: #{_lambda_.5} parent=27 // pred_fallthru
          _
      $region28: #{_lambda_.5} parent=5 // pred_fallthru
        _
      %p249 = scmp.le.s32.totalorder 1, %s13
      %p250 = scmp.lt.s32.totalorder %s13, 3
      %p251 = pnand %p249, %p250
      %p252 = pneg %p251
      // Predicated region
      $region52: #{_lambda_.5} parent=5 // pred_check
        _
      $region53: #{_lambda_.5} parent=5 // pred_check_branch
        %254 = sbr.rel (%p251) target = $region55
      $region54: #{_lambda_.5} parent=5 // pred_region
        %s255 = ssub.s32 %s13, 1
        %s256 = sand.u32 %s26, 1
        %s257 = sand.u32 %s26, 1
        %s258 = smul.addr %s257, 64
        %s259 = scalar_lea.vmem [#allocation2], %s258
        // Predicated region
        $region56: #{_lambda_.5} parent=54 // pred_check
          %p260 = pneg %p39
        $region57: #{_lambda_.5} parent=54 // pred_check_branch
          %262 = sbr.rel (%p260) target = $region59
        $region58: #{_lambda_.5} parent=54 // pred_region
          _
        $region59: #{_lambda_.5} parent=54 // pred_fallthru
          _
        %s263 = sand.u32 %s26, 1
        %s264 = sand.u32 %s26, 1
        %s265 = smul.addr %s264, 64
        %s266 = scalar_lea.vmem [#allocation2], %s265
        %p267 = pneg %p39
        %p268 = pneg %p36
        %p269 = pneg %p60
        %p270 = pneg %p57
        %p271 = pneg %p81
        %p272 = pneg %p78
        %p273 = pneg %p102
        %p274 = pneg %p99
        %p275 = pneg %p128
        %p276 = pneg %p125
        %s277 = sand.u32 %s115, 1
        %s278 = sand.u32 %s115, 1
        %s279 = smul.addr %s278, 128
        %s280 = scalar_lea.vmem [#allocation3], %s279
        %p281 = pneg %p154
        %p282 = pneg %p151
        %p283 = scmp.lt.s32.totalorder %s18, 1
        %s284 = scalar_select %p283, %s18, 1
        %s285 = smul.addr %s284, 8
        %s286 = smul.addr %s285, 8
        %s287 = scalar_lea.vmem %s5, %s286
        %p288 = pneg %p180
        %p289 = pneg %p177
        %p290 = scmp.lt.s32.totalorder %s18, 1
        %s291 = scalar_select %p290, %s18, 1
        %s292 = smul.addr %s291, 8
        %s293 = smul.addr %s292, 8
        %s294 = scalar_lea.vmem %s6, %s293
        %s295 = smul.u32 2, %s18
        %s296 = smul.u32 2, %s18
        %p297 = scmp.lt.s32.totalorder %s18, 1
        %s298 = scalar_select %p297, %s18, 1
        %s299 = smul.addr %s298, 8
        %s300 = smul.addr %s299, 8
        %s301 = scalar_lea.vmem %s5, %s300
        %p302 = scmp.lt.s32.totalorder %s18, 1
        %s303 = scalar_select %p302, %s18, 1
        %s304 = smul.addr %s303, 8
        %s305 = smul.addr %s304, 8
        %s306 = scalar_lea.vmem %s6, %s305
        %v307 = vld [vmem:[%s259] sm:$0xff]
        %v308 = vld [vmem:[%s259 + $0x8] sm:$0xff]
        %v309 = vld [vmem:[%s259 + $0x10] sm:$0xff]
        %v310 = vld [vmem:[%s259 + $0x18] sm:$0xff]
        %v311 = vld [vmem:[%s259 + $0x20] sm:$0xff]
        %v312 = vld [vmem:[%s259 + $0x28] sm:$0xff]
        %v313 = vld [vmem:[%s259 + $0x30] sm:$0xff]
        %v314 = vld [vmem:[%s259 + $0x38] sm:$0xff]
        %v315 = vld [vmem:[%s1] sm:$0xff]
        %v316 = vld [vmem:[%s1 + $0x8] sm:$0xff]
        %v317 = vld [vmem:[%s1 + $0x10] sm:$0xff]
        %v318 = vld [vmem:[%s1 + $0x18] sm:$0xff]
        %320 = vset.pattern.permute.xlu0 0
        %321 = vperm.xlu0 %320, %v315
        %v322 = vpop.permute.xlu0 %321
        %325 = vset.pattern.permute.xlu0 0
        %326 = vperm.xlu0 %325, %v316
        %v327 = vpop.permute.xlu0 %326
        %330 = vset.pattern.permute.xlu0 0
        %331 = vperm.xlu0 %330, %v317
        %v332 = vpop.permute.xlu0 %331
        %335 = vset.pattern.permute.xlu0 0
        %336 = vperm.xlu0 %335, %v318
        %v337 = vpop.permute.xlu0 %336
        %v339 = vmul.f32 %v307, %v322
        %v340 = vmul.f32 %v308, %v322
        %v341 = vmul.f32 %v309, %v327
        %v342 = vmul.f32 %v310, %v327
        %v343 = vmul.f32 %v311, %v332
        %v344 = vmul.f32 %v312, %v332
        %v345 = vmul.f32 %v313, %v337
        %v346 = vmul.f32 %v314, %v337
        %v347 = vld [vmem:[%s2] sm:$0xff]
        %v348 = vld [vmem:[%s2 + $0x8] sm:$0xff]
        %v349 = vld [vmem:[%s2 + $0x10] sm:$0xff]
        %v350 = vld [vmem:[%s2 + $0x18] sm:$0xff]
        %352 = vset.pattern.permute.xlu0 0
        %353 = vperm.xlu0 %352, %v347
        %v354 = vpop.permute.xlu0 %353
        %357 = vset.pattern.permute.xlu0 0
        %358 = vperm.xlu0 %357, %v348
        %v359 = vpop.permute.xlu0 %358
        %362 = vset.pattern.permute.xlu0 0
        %363 = vperm.xlu0 %362, %v349
        %v364 = vpop.permute.xlu0 %363
        %367 = vset.pattern.permute.xlu0 0
        %368 = vperm.xlu0 %367, %v350
        %v369 = vpop.permute.xlu0 %368
        %v371 = vadd.f32 %v339, %v354
        %v372 = vadd.f32 %v340, %v354
        %v373 = vadd.f32 %v341, %v359
        %v374 = vadd.f32 %v342, %v359
        %v375 = vadd.f32 %v343, %v364
        %v376 = vadd.f32 %v344, %v364
        %v377 = vadd.f32 %v345, %v369
        %v378 = vadd.f32 %v346, %v369
        %v379 = vmax.f32 %v371, 0.0
        %v380 = vmax.f32 %v372, 0.0
        %v381 = vmax.f32 %v373, 0.0
        %v382 = vmax.f32 %v374, 0.0
        %v383 = vmax.f32 %v375, 0.0
        %v384 = vmax.f32 %v376, 0.0
        %v385 = vmax.f32 %v377, 0.0
        %v386 = vmax.f32 %v378, 0.0
        %v387 = vld [vmem:[%s3] sm:$0xff]
        %v388 = vld [vmem:[%s3 + $0x8] sm:$0xff]
        %vm389 = vcmask 64512
        %v391 = vsel %vm389, %v387, 0
        %v394 = vsel %vm389, %v388, 0
        %396 = vmatprep.subr.mxu0 %v380
        %397 = vmatpush1.msra.mxu0 %v379
        %398 = vmatprep.subr.mxu0 0.0
        %399 = vmatpush1.msra.mxu0 0.0
        %400 = vmatprep.subr.mxu0 0.0
        %401 = vmatpush1.msra.mxu0 0.0
        %402 = vmatprep.subr.mxu0 0.0
        %403 = vmatpush1.msra.mxu0 0.0
        %404 = vmatprep.subr.mxu0 0.0
        %405 = vmatpush1.msra.mxu0 0.0
        %406 = vmatprep.subr.mxu0 0.0
        %407 = vmatpush1.msra.mxu0 0.0
        %408 = vmatprep.subr.mxu0 0.0
        %409 = vmatpush1.msra.mxu0 0.0
        %410 = vmatprep.subr.mxu0 0.0
        %411 = vmatpush1.msra.mxu0 0.0
        %412 = vmatprep.subr.mxu0 0.0
        %413 = vmatpush1.msra.mxu0 0.0
        %414 = vmatprep.subr.mxu0 0.0
        %415 = vmatpush1.msra.mxu0 0.0
        %416 = vmatprep.subr.mxu0 0.0
        %417 = vmatpush1.msra.mxu0 0.0
        %418 = vmatprep.subr.mxu0 0.0
        %419 = vmatpush1.msra.mxu0 0.0
        %420 = vmatprep.subr.mxu0 0.0
        %421 = vmatpush1.msra.mxu0 0.0
        %422 = vmatprep.subr.mxu0 0.0
        %423 = vmatpush1.msra.mxu0 0.0
        %424 = vmatprep.subr.mxu0 0.0
        %425 = vmatpush1.msra.mxu0 0.0
        %426 = vmatprep.subr.mxu0 0.0
        %427 = vmatpush1.msra.mxu0 0.0
        %428 = vmatprep.subr.mxu0 0.0
        %429 = vmatpush1.msra.mxu0 0.0
        %430 = vmatprep.subr.mxu0 0.0
        %431 = vmatpush1.msra.mxu0 0.0
        %432 = vmatprep.subr.mxu0 0.0
        %433 = vmatpush1.msra.mxu0 0.0
        %434 = vmatprep.subr.mxu0 0.0
        %435 = vmatpush1.msra.mxu0 0.0
        %436 = vmatprep.subr.mxu0 0.0
        %437 = vmatpush1.msra.mxu0 0.0
        %438 = vmatprep.subr.mxu0 0.0
        %439 = vmatpush1.msra.mxu0 0.0
        %440 = vmatprep.subr.mxu0 0.0
        %441 = vmatpush1.msra.mxu0 0.0
        %442 = vmatprep.subr.mxu0 0.0
        %443 = vmatpush1.msra.mxu0 0.0
        %444 = vmatprep.subr.mxu0 0.0
        %445 = vmatpush1.msra.mxu0 0.0
        %446 = vmatprep.subr.mxu0 0.0
        %447 = vmatpush1.msra.mxu0 0.0
        %448 = vmatprep.subr.mxu0 0.0
        %449 = vmatpush1.msra.mxu0 0.0
        %450 = vmatprep.subr.mxu0 0.0
        %451 = vmatpush1.msra.mxu0 0.0
        %452 = vmatprep.subr.mxu0 0.0
        %453 = vmatpush1.msra.mxu0 0.0
        %454 = vmatprep.subr.mxu0 0.0
        %455 = vmatpush1.msra.mxu0 0.0
        %456 = vmatprep.subr.mxu0 0.0
        %457 = vmatpush1.msra.mxu0 0.0
        %458 = vmatprep.subr.mxu0 0.0
        %459 = vmatpush1.msra.mxu0 0.0
        %460 = vmatprep.mubr.f32.mxu0 0.0
        %461 = vmatmul.mubr.f32.gmra.mrb[0].mxu0 %v391
        %v462 = vpop.f32.mrb[0].mxu0
        %v463 = vadd.f32 0.0, %v462
        %v464 = vpop.f32.mrb[0].mxu0
        %v465 = vadd.f32 0.0, %v464
        %466 = vmatprep.mubr.f32.mxu0 0.0
        %467 = vmatmul.mubr.f32.gmra.mrb[0].mxu0 %v394
        %v468 = vpop.f32.mrb[0].mxu0
        %v469 = vadd.f32 0.0, %v468
        %v470 = vpop.f32.mrb[0].mxu0
        %v471 = vadd.f32 0.0, %v470
        %472 = vdwg.mxu0
        %473 = vst [vmem:[%s280] sm:$0xff] %v463
        %474 = vst [vmem:[%s280 + $0x8] sm:$0xff] %v465
        %475 = vst [vmem:[%s280 + $0x10] sm:$0xff] %v469
        %476 = vst [vmem:[%s280 + $0x18] sm:$0xff] %v471
        %v477 = vadd.f32 %v463, %v465
        %478 = vadd.xlane.f32.xlu0 %v477
        %v479 = vpop.xlane.xlu0 %478
        %v480 = vadd.f32 %v469, %v471
        %481 = vadd.xlane.f32.xlu0 %v480
        %v482 = vpop.xlane.xlu0 %481
        %v483 = vmul.f32 %v463, %v463
        %v484 = vmul.f32 %v465, %v465
        %v485 = vmul.f32 %v469, %v469
        %v486 = vmul.f32 %v471, %v471
        %v487 = vadd.f32 %v483, %v484
        %488 = vadd.xlane.f32.xlu0 %v487
        %v489 = vpop.xlane.xlu0 %488
        %v490 = vadd.f32 %v485, %v486
        %491 = vadd.xlane.f32.xlu0 %v490
        %v492 = vpop.xlane.xlu0 %491
        %493 = vmatprep.subr.mxu0 %v382
        %494 = vmatpush1.msra.mxu0 %v381
        %495 = vmatprep.subr.mxu0 0.0
        %496 = vmatpush1.msra.mxu0 0.0
        %497 = vmatprep.subr.mxu0 0.0
        %498 = vmatpush1.msra.mxu0 0.0
        %499 = vmatprep.subr.mxu0 0.0
        %500 = vmatpush1.msra.mxu0 0.0
        %501 = vmatprep.subr.mxu0 0.0
        %502 = vmatpush1.msra.mxu0 0.0
        %503 = vmatprep.subr.mxu0 0.0
        %504 = vmatpush1.msra.mxu0 0.0
        %505 = vmatprep.subr.mxu0 0.0
        %506 = vmatpush1.msra.mxu0 0.0
        %507 = vmatprep.subr.mxu0 0.0
        %508 = vmatpush1.msra.mxu0 0.0
        %509 = vmatprep.subr.mxu0 0.0
        %510 = vmatpush1.msra.mxu0 0.0
        %511 = vmatprep.subr.mxu0 0.0
        %512 = vmatpush1.msra.mxu0 0.0
        %513 = vmatprep.subr.mxu0 0.0
        %514 = vmatpush1.msra.mxu0 0.0
        %515 = vmatprep.subr.mxu0 0.0
        %516 = vmatpush1.msra.mxu0 0.0
        %517 = vmatprep.subr.mxu0 0.0
        %518 = vmatpush1.msra.mxu0 0.0
        %519 = vmatprep.subr.mxu0 0.0
        %520 = vmatpush1.msra.mxu0 0.0
        %521 = vmatprep.subr.mxu0 0.0
        %522 = vmatpush1.msra.mxu0 0.0
        %523 = vmatprep.subr.mxu0 0.0
        %524 = vmatpush1.msra.mxu0 0.0
        %525 = vmatprep.subr.mxu0 0.0
        %526 = vmatpush1.msra.mxu0 0.0
        %527 = vmatprep.subr.mxu0 0.0
        %528 = vmatpush1.msra.mxu0 0.0
        %529 = vmatprep.subr.mxu0 0.0
        %530 = vmatpush1.msra.mxu0 0.0
        %531 = vmatprep.subr.mxu0 0.0
        %532 = vmatpush1.msra.mxu0 0.0
        %533 = vmatprep.subr.mxu0 0.0
        %534 = vmatpush1.msra.mxu0 0.0
        %535 = vmatprep.subr.mxu0 0.0
        %536 = vmatpush1.msra.mxu0 0.0
        %537 = vmatprep.subr.mxu0 0.0
        %538 = vmatpush1.msra.mxu0 0.0
        %539 = vmatprep.subr.mxu0 0.0
        %540 = vmatpush1.msra.mxu0 0.0
        %541 = vmatprep.subr.mxu0 0.0
        %542 = vmatpush1.msra.mxu0 0.0
        %543 = vmatprep.subr.mxu0 0.0
        %544 = vmatpush1.msra.mxu0 0.0
        %545 = vmatprep.subr.mxu0 0.0
        %546 = vmatpush1.msra.mxu0 0.0
        %547 = vmatprep.subr.mxu0 0.0
        %548 = vmatpush1.msra.mxu0 0.0
        %549 = vmatprep.subr.mxu0 0.0
        %550 = vmatpush1.msra.mxu0 0.0
        %551 = vmatprep.subr.mxu0 0.0
        %552 = vmatpush1.msra.mxu0 0.0
        %553 = vmatprep.subr.mxu0 0.0
        %554 = vmatpush1.msra.mxu0 0.0
        %555 = vmatprep.subr.mxu0 0.0
        %556 = vmatpush1.msra.mxu0 0.0
        %557 = vmatprep.mubr.f32.mxu0 0.0
        %558 = vmatmul.mubr.f32.gmra.mrb[0].mxu0 %v391
        %v559 = vpop.f32.mrb[0].mxu0
        %v560 = vadd.f32 0.0, %v559
        %v561 = vpop.f32.mrb[0].mxu0
        %v562 = vadd.f32 0.0, %v561
        %563 = vmatprep.mubr.f32.mxu0 0.0
        %564 = vmatmul.mubr.f32.gmra.mrb[0].mxu0 %v394
        %v565 = vpop.f32.mrb[0].mxu0
        %v566 = vadd.f32 0.0, %v565
        %v567 = vpop.f32.mrb[0].mxu0
        %v568 = vadd.f32 0.0, %v567
        %569 = vdwg.mxu0
        %570 = vst [vmem:[%s280 + $0x20] sm:$0xff] %v560
        %571 = vst [vmem:[%s280 + $0x28] sm:$0xff] %v562
        %572 = vst [vmem:[%s280 + $0x30] sm:$0xff] %v566
        %573 = vst [vmem:[%s280 + $0x38] sm:$0xff] %v568
        %v574 = vadd.f32 %v560, %v562
        %575 = vadd.xlane.f32.xlu0 %v574
        %v576 = vpop.xlane.xlu0 %575
        %v577 = vadd.f32 %v566, %v568
        %578 = vadd.xlane.f32.xlu0 %v577
        %v579 = vpop.xlane.xlu0 %578
        %v580 = vmul.f32 %v560, %v560
        %v581 = vmul.f32 %v562, %v562
        %v582 = vmul.f32 %v566, %v566
        %v583 = vmul.f32 %v568, %v568
        %v584 = vadd.f32 %v580, %v581
        %585 = vadd.xlane.f32.xlu0 %v584
        %v586 = vpop.xlane.xlu0 %585
        %v587 = vadd.f32 %v582, %v583
        %588 = vadd.xlane.f32.xlu0 %v587
        %v589 = vpop.xlane.xlu0 %588
        %590 = vmatprep.subr.mxu0 %v384
        %591 = vmatpush1.msra.mxu0 %v383
        %592 = vmatprep.subr.mxu0 0.0
        %593 = vmatpush1.msra.mxu0 0.0
        %594 = vmatprep.subr.mxu0 0.0
        %595 = vmatpush1.msra.mxu0 0.0
        %596 = vmatprep.subr.mxu0 0.0
        %597 = vmatpush1.msra.mxu0 0.0
        %598 = vmatprep.subr.mxu0 0.0
        %599 = vmatpush1.msra.mxu0 0.0
        %600 = vmatprep.subr.mxu0 0.0
        %601 = vmatpush1.msra.mxu0 0.0
        %602 = vmatprep.subr.mxu0 0.0
        %603 = vmatpush1.msra.mxu0 0.0
        %604 = vmatprep.subr.mxu0 0.0
        %605 = vmatpush1.msra.mxu0 0.0
        %606 = vmatprep.subr.mxu0 0.0
        %607 = vmatpush1.msra.mxu0 0.0
        %608 = vmatprep.subr.mxu0 0.0
        %609 = vmatpush1.msra.mxu0 0.0
        %610 = vmatprep.subr.mxu0 0.0
        %611 = vmatpush1.msra.mxu0 0.0
        %612 = vmatprep.subr.mxu0 0.0
        %613 = vmatpush1.msra.mxu0 0.0
        %614 = vmatprep.subr.mxu0 0.0
        %615 = vmatpush1.msra.mxu0 0.0
        %616 = vmatprep.subr.mxu0 0.0
        %617 = vmatpush1.msra.mxu0 0.0
        %618 = vmatprep.subr.mxu0 0.0
        %619 = vmatpush1.msra.mxu0 0.0
        %620 = vmatprep.subr.mxu0 0.0
        %621 = vmatpush1.msra.mxu0 0.0
        %622 = vmatprep.subr.mxu0 0.0
        %623 = vmatpush1.msra.mxu0 0.0
        %624 = vmatprep.subr.mxu0 0.0
        %625 = vmatpush1.msra.mxu0 0.0
        %626 = vmatprep.subr.mxu0 0.0
        %627 = vmatpush1.msra.mxu0 0.0
        %628 = vmatprep.subr.mxu0 0.0
        %629 = vmatpush1.msra.mxu0 0.0
        %630 = vmatprep.subr.mxu0 0.0
        %631 = vmatpush1.msra.mxu0 0.0
        %632 = vmatprep.subr.mxu0 0.0
        %633 = vmatpush1.msra.mxu0 0.0
        %634 = vmatprep.subr.mxu0 0.0
        %635 = vmatpush1.msra.mxu0 0.0
        %636 = vmatprep.subr.mxu0 0.0
        %637 = vmatpush1.msra.mxu0 0.0
        %638 = vmatprep.subr.mxu0 0.0
        %639 = vmatpush1.msra.mxu0 0.0
        %640 = vmatprep.subr.mxu0 0.0
        %641 = vmatpush1.msra.mxu0 0.0
        %642 = vmatprep.subr.mxu0 0.0
        %643 = vmatpush1.msra.mxu0 0.0
        %644 = vmatprep.subr.mxu0 0.0
        %645 = vmatpush1.msra.mxu0 0.0
        %646 = vmatprep.subr.mxu0 0.0
        %647 = vmatpush1.msra.mxu0 0.0
        %648 = vmatprep.subr.mxu0 0.0
        %649 = vmatpush1.msra.mxu0 0.0
        %650 = vmatprep.subr.mxu0 0.0
        %651 = vmatpush1.msra.mxu0 0.0
        %652 = vmatprep.subr.mxu0 0.0
        %653 = vmatpush1.msra.mxu0 0.0
        %654 = vmatprep.mubr.f32.mxu0 0.0
        %655 = vmatmul.mubr.f32.gmra.mrb[0].mxu0 %v391
        %v656 = vpop.f32.mrb[0].mxu0
        %v657 = vadd.f32 0.0, %v656
        %v658 = vpop.f32.mrb[0].mxu0
        %v659 = vadd.f32 0.0, %v658
        %660 = vmatprep.mubr.f32.mxu0 0.0
        %661 = vmatmul.mubr.f32.gmra.mrb[0].mxu0 %v394
        %v662 = vpop.f32.mrb[0].mxu0
        %v663 = vadd.f32 0.0, %v662
        %v664 = vpop.f32.mrb[0].mxu0
        %v665 = vadd.f32 0.0, %v664
        %666 = vdwg.mxu0
        %667 = vst [vmem:[%s280 + $0x40] sm:$0xff] %v657
        %668 = vst [vmem:[%s280 + $0x48] sm:$0xff] %v659
        %669 = vst [vmem:[%s280 + $0x50] sm:$0xff] %v663
        %670 = vst [vmem:[%s280 + $0x58] sm:$0xff] %v665
        %v671 = vadd.f32 %v657, %v659
        %672 = vadd.xlane.f32.xlu0 %v671
        %v673 = vpop.xlane.xlu0 %672
        %v674 = vadd.f32 %v663, %v665
        %675 = vadd.xlane.f32.xlu0 %v674
        %v676 = vpop.xlane.xlu0 %675
        %v677 = vmul.f32 %v657, %v657
        %v678 = vmul.f32 %v659, %v659
        %v679 = vmul.f32 %v663, %v663
        %v680 = vmul.f32 %v665, %v665
        %v681 = vadd.f32 %v677, %v678
        %682 = vadd.xlane.f32.xlu0 %v681
        %v683 = vpop.xlane.xlu0 %682
        %v684 = vadd.f32 %v679, %v680
        %685 = vadd.xlane.f32.xlu0 %v684
        %v686 = vpop.xlane.xlu0 %685
        %687 = vmatprep.subr.mxu0 %v386
        %688 = vmatpush1.msra.mxu0 %v385
        %689 = vmatprep.subr.mxu0 0.0
        %690 = vmatpush1.msra.mxu0 0.0
        %691 = vmatprep.subr.mxu0 0.0
        %692 = vmatpush1.msra.mxu0 0.0
        %693 = vmatprep.subr.mxu0 0.0
        %694 = vmatpush1.msra.mxu0 0.0
        %695 = vmatprep.subr.mxu0 0.0
        %696 = vmatpush1.msra.mxu0 0.0
        %697 = vmatprep.subr.mxu0 0.0
        %698 = vmatpush1.msra.mxu0 0.0
        %699 = vmatprep.subr.mxu0 0.0
        %700 = vmatpush1.msra.mxu0 0.0
        %701 = vmatprep.subr.mxu0 0.0
        %702 = vmatpush1.msra.mxu0 0.0
        %703 = vmatprep.subr.mxu0 0.0
        %704 = vmatpush1.msra.mxu0 0.0
        %705 = vmatprep.subr.mxu0 0.0
        %706 = vmatpush1.msra.mxu0 0.0
        %707 = vmatprep.subr.mxu0 0.0
        %708 = vmatpush1.msra.mxu0 0.0
        %709 = vmatprep.subr.mxu0 0.0
        %710 = vmatpush1.msra.mxu0 0.0
        %711 = vmatprep.subr.mxu0 0.0
        %712 = vmatpush1.msra.mxu0 0.0
        %713 = vmatprep.subr.mxu0 0.0
        %714 = vmatpush1.msra.mxu0 0.0
        %715 = vmatprep.subr.mxu0 0.0
        %716 = vmatpush1.msra.mxu0 0.0
        %717 = vmatprep.subr.mxu0 0.0
        %718 = vmatpush1.msra.mxu0 0.0
        %719 = vmatprep.subr.mxu0 0.0
        %720 = vmatpush1.msra.mxu0 0.0
        %721 = vmatprep.subr.mxu0 0.0
        %722 = vmatpush1.msra.mxu0 0.0
        %723 = vmatprep.subr.mxu0 0.0
        %724 = vmatpush1.msra.mxu0 0.0
        %725 = vmatprep.subr.mxu0 0.0
        %726 = vmatpush1.msra.mxu0 0.0
        %727 = vmatprep.subr.mxu0 0.0
        %728 = vmatpush1.msra.mxu0 0.0
        %729 = vmatprep.subr.mxu0 0.0
        %730 = vmatpush1.msra.mxu0 0.0
        %731 = vmatprep.subr.mxu0 0.0
        %732 = vmatpush1.msra.mxu0 0.0
        %733 = vmatprep.subr.mxu0 0.0
        %734 = vmatpush1.msra.mxu0 0.0
        %735 = vmatprep.subr.mxu0 0.0
        %736 = vmatpush1.msra.mxu0 0.0
        %737 = vmatprep.subr.mxu0 0.0
        %738 = vmatpush1.msra.mxu0 0.0
        %739 = vmatprep.subr.mxu0 0.0
        %740 = vmatpush1.msra.mxu0 0.0
        %741 = vmatprep.subr.mxu0 0.0
        %742 = vmatpush1.msra.mxu0 0.0
        %743 = vmatprep.subr.mxu0 0.0
        %744 = vmatpush1.msra.mxu0 0.0
        %745 = vmatprep.subr.mxu0 0.0
        %746 = vmatpush1.msra.mxu0 0.0
        %747 = vmatprep.subr.mxu0 0.0
        %748 = vmatpush1.msra.mxu0 0.0
        %749 = vmatprep.subr.mxu0 0.0
        %750 = vmatpush1.msra.mxu0 0.0
        %751 = vmatprep.mubr.f32.mxu0 0.0
        %752 = vmatmul.mubr.f32.gmra.mrb[0].mxu0 %v391
        %v753 = vpop.f32.mrb[0].mxu0
        %v754 = vadd.f32 0.0, %v753
        %v755 = vpop.f32.mrb[0].mxu0
        %v756 = vadd.f32 0.0, %v755
        %757 = vmatprep.mubr.f32.mxu0 0.0
        %758 = vmatmul.mubr.f32.gmra.mrb[0].mxu0 %v394
        %v759 = vpop.f32.mrb[0].mxu0
        %v760 = vadd.f32 0.0, %v759
        %v761 = vpop.f32.mrb[0].mxu0
        %v762 = vadd.f32 0.0, %v761
        %763 = vdwg.mxu0
        %764 = vst [vmem:[%s280 + $0x60] sm:$0xff] %v754
        %765 = vst [vmem:[%s280 + $0x68] sm:$0xff] %v756
        %766 = vst [vmem:[%s280 + $0x70] sm:$0xff] %v760
        %767 = vst [vmem:[%s280 + $0x78] sm:$0xff] %v762
        %v768 = vadd.f32 %v754, %v756
        %769 = vadd.xlane.f32.xlu0 %v768
        %v770 = vpop.xlane.xlu0 %769
        %v771 = vadd.f32 %v760, %v762
        %772 = vadd.xlane.f32.xlu0 %v771
        %v773 = vpop.xlane.xlu0 %772
        %v774 = vmul.f32 %v754, %v754
        %v775 = vmul.f32 %v756, %v756
        %v776 = vmul.f32 %v760, %v760
        %v777 = vmul.f32 %v762, %v762
        %v778 = vadd.f32 %v774, %v775
        %779 = vadd.xlane.f32.xlu0 %v778
        %v780 = vpop.xlane.xlu0 %779
        %v781 = vadd.f32 %v776, %v777
        %782 = vadd.xlane.f32.xlu0 %v781
        %v783 = vpop.xlane.xlu0 %782
        %vm784 = vcmask 7168
        %785 = vst.msk [vmem:[%s301] sm:$0xff] %vm784, %v479
        %786 = vst.msk [vmem:[%s301 + $0x8] sm:$0xff] %vm784, %v482
        %787 = vst.msk [vmem:[%s301 + $0x10] sm:$0xff] %vm784, %v576
        %788 = vst.msk [vmem:[%s301 + $0x18] sm:$0xff] %vm784, %v579
        %789 = vst.msk [vmem:[%s301 + $0x20] sm:$0xff] %vm784, %v673
        %790 = vst.msk [vmem:[%s301 + $0x28] sm:$0xff] %vm784, %v676
        %791 = vst.msk [vmem:[%s301 + $0x30] sm:$0xff] %vm784, %v770
        %792 = vst.msk [vmem:[%s301 + $0x38] sm:$0xff] %vm784, %v773
        %793 = vst.msk [vmem:[%s306] sm:$0xff] %vm784, %v489
        %794 = vst.msk [vmem:[%s306 + $0x8] sm:$0xff] %vm784, %v492
        %795 = vst.msk [vmem:[%s306 + $0x10] sm:$0xff] %vm784, %v586
        %796 = vst.msk [vmem:[%s306 + $0x18] sm:$0xff] %vm784, %v589
        %797 = vst.msk [vmem:[%s306 + $0x20] sm:$0xff] %vm784, %v683
        %798 = vst.msk [vmem:[%s306 + $0x28] sm:$0xff] %vm784, %v686
        %799 = vst.msk [vmem:[%s306 + $0x30] sm:$0xff] %vm784, %v780
        %800 = vst.msk [vmem:[%s306 + $0x38] sm:$0xff] %vm784, %v783
        %s801 = sand.u32 %s115, 1
        %s802 = sand.u32 %s115, 1
        %s803 = smul.addr %s802, 128
        %s804 = scalar_lea.vmem [#allocation3], %s803
        %p805 = scmp.lt.s32.totalorder %s18, 1
        %s806 = scalar_select %p805, %s18, 1
        %s807 = smul.addr %s806, 8
        %s808 = smul.addr %s807, 8
        %s809 = scalar_lea.vmem %s5, %s808
        %p810 = scmp.lt.s32.totalorder %s18, 1
        %s811 = scalar_select %p810, %s18, 1
        %s812 = smul.addr %s811, 8
        %s813 = smul.addr %s812, 8
        %s814 = scalar_lea.vmem %s6, %s813
        // Predicated region
        $region60: #{_lambda_.5} parent=54 // pred_check
          %p815 = pneg %p125
        $region61: #{_lambda_.5} parent=54 // pred_check_branch
          %817 = sbr.rel (%p815) target = $region63
        $region62: #{_lambda_.5} parent=54 // pred_region
          %s818 = smul.u32 2, %s18
          %s819 = smul.addr %s818, 8
          %s820 = scalar_lea.vmem %s4, %s819
          // Predicated region
          $region64: #{_lambda_.5} parent=62 // pred_check
            _
          $region65: #{_lambda_.5} parent=62 // pred_check_branch
            %822 = sbr.rel (0) target = $region67
          $region66: #{_lambda_.5} parent=62 // pred_region
            // Predicated region
            $region68: #{_lambda_.5} parent=66 // pred_check
              _
            $region69: #{_lambda_.5} parent=66 // pred_check_branch
              %824 = sbr.rel (0) target = $region71
            $region70: #{_lambda_.5} parent=66 // pred_region
              loop: start=0, step=1, limit=1
              $region72: #{_lambda_.5} parent=70 // loop_pre_header
                _
              $region73: #{_lambda_.5} parent=70 // loop_header
                %s826 = sphi 0, %s830
                %p827 = scmp.ge.s32.totalorder %s826, 1
                %s831 = sphi %s804, %s804
                %s832 = sphi %s820, %s820
              $region74: #{_lambda_.5} parent=70 // loop_header_branch
                %829 = sbr.rel (%p827) target = $region78
              $region75: #{_lambda_.5} parent=70 // loop_body
                %v833 = vld [vmem:[%s831] sm:$0xff]
                %834 = vst [vmem:[%s832] sm:$0xff] %v833
                %v835 = vld [vmem:[%s831 + $0x8] sm:$0xff]
                %836 = vst [vmem:[%s832 + $0x8] sm:$0xff] %v835
                %v837 = vld [vmem:[%s831 + $0x10] sm:$0xff]
                %838 = vst [vmem:[%s832 + $0x20] sm:$0xff] %v837
                %v839 = vld [vmem:[%s831 + $0x18] sm:$0xff]
                %840 = vst [vmem:[%s832 + $0x28] sm:$0xff] %v839
                %v841 = vld [vmem:[%s831 + $0x20] sm:$0xff]
                %842 = vst [vmem:[%s832 + $0x40] sm:$0xff] %v841
                %v843 = vld [vmem:[%s831 + $0x28] sm:$0xff]
                %844 = vst [vmem:[%s832 + $0x48] sm:$0xff] %v843
                %v845 = vld [vmem:[%s831 + $0x30] sm:$0xff]
                %846 = vst [vmem:[%s832 + $0x60] sm:$0xff] %v845
                %v847 = vld [vmem:[%s831 + $0x38] sm:$0xff]
                %848 = vst [vmem:[%s832 + $0x68] sm:$0xff] %v847
                %v849 = vld [vmem:[%s831 + $0x40] sm:$0xff]
                %850 = vst [vmem:[%s832 + $0x80] sm:$0xff] %v849
                %v851 = vld [vmem:[%s831 + $0x48] sm:$0xff]
                %852 = vst [vmem:[%s832 + $0x88] sm:$0xff] %v851
                %v853 = vld [vmem:[%s831 + $0x50] sm:$0xff]
                %854 = vst [vmem:[%s832 + $0xa0] sm:$0xff] %v853
                %v855 = vld [vmem:[%s831 + $0x58] sm:$0xff]
                %856 = vst [vmem:[%s832 + $0xa8] sm:$0xff] %v855
                %v857 = vld [vmem:[%s831 + $0x60] sm:$0xff]
                %858 = vst [vmem:[%s832 + $0xc0] sm:$0xff] %v857
                %v859 = vld [vmem:[%s831 + $0x68] sm:$0xff]
                %860 = vst [vmem:[%s832 + $0xc8] sm:$0xff] %v859
                %v861 = vld [vmem:[%s831 + $0x70] sm:$0xff]
                %862 = vst [vmem:[%s832 + $0xe0] sm:$0xff] %v861
                %v863 = vld [vmem:[%s831 + $0x78] sm:$0xff]
                %864 = vst [vmem:[%s832 + $0xe8] sm:$0xff] %v863
              $region76: #{_lambda_.5} parent=70 // loop_footer
                %s830 = sadd.s32 1, %s826
              $region77: #{_lambda_.5} parent=70 // loop_footer_branch
                %825 = sbr.rel target = $region73
              $region78: #{_lambda_.5} parent=70 // loop_exit
                _
            $region71: #{_lambda_.5} parent=66 // pred_fallthru
              _
            // Predicated region
            $region79: #{_lambda_.5} parent=66 // pred_check
              _
            $region80: #{_lambda_.5} parent=66 // pred_check_branch
              %866 = sbr.rel target = $region82
            $region81: #{_lambda_.5} parent=66 // pred_region
              _
            $region82: #{_lambda_.5} parent=66 // pred_fallthru
              _
          $region67: #{_lambda_.5} parent=62 // pred_fallthru
            _
          %867 = vnop
        $region63: #{_lambda_.5} parent=54 // pred_fallthru
          _
        // Predicated region
        $region83: #{_lambda_.5} parent=54 // pred_check
          %p868 = pneg %p151
        $region84: #{_lambda_.5} parent=54 // pred_check_branch
          %870 = sbr.rel (%p868) target = $region86
        $region85: #{_lambda_.5} parent=54 // pred_region
          _
        $region86: #{_lambda_.5} parent=54 // pred_fallthru
          _
        // Predicated region
        $region87: #{_lambda_.5} parent=54 // pred_check
          %p871 = pneg %p177
        $region88: #{_lambda_.5} parent=54 // pred_check_branch
          %873 = sbr.rel (%p871) target = $region90
        $region89: #{_lambda_.5} parent=54 // pred_region
          _
        $region90: #{_lambda_.5} parent=54 // pred_fallthru
          _
      $region55: #{_lambda_.5} parent=5 // pred_fallthru
        _
      %p874 = scmp.le.s32.totalorder 2, %s13
      // Predicated region
      $region91: #{_lambda_.5} parent=5 // pred_check
        %p875 = pneg %p874
      $region92: #{_lambda_.5} parent=5 // pred_check_branch
        %877 = sbr.rel (%p875) target = $region94
      $region93: #{_lambda_.5} parent=5 // pred_region
        %s878 = ssub.s32 %s13, 2
        // Predicated region
        $region95: #{_lambda_.5} parent=93 // pred_check
          %p879 = pneg %p131
        $region96: #{_lambda_.5} parent=93 // pred_check_branch
          %881 = sbr.rel (%p879) target = $region98
        $region97: #{_lambda_.5} parent=93 // pred_region
          %s882 = sand.u32 %s116, 1
          %s883 = sand.u32 %s116, 1
          %s884 = smul.addr %s883, 128
          %s885 = scalar_lea.vmem [#allocation3], %s884
        $region98: #{_lambda_.5} parent=93 // pred_fallthru
          _
        // Predicated region
        $region99: #{_lambda_.5} parent=93 // pred_check
          %p886 = pneg %p157
        $region100: #{_lambda_.5} parent=93 // pred_check_branch
          %888 = sbr.rel (%p886) target = $region102
        $region101: #{_lambda_.5} parent=93 // pred_region
          %p889 = scmp.lt.s32.totalorder %s19, 1
          %s890 = scalar_select %p889, %s19, 1
          %s891 = smul.addr %s890, 8
          %s892 = smul.addr %s891, 8
          %s893 = scalar_lea.vmem %s5, %s892
        $region102: #{_lambda_.5} parent=93 // pred_fallthru
          _
        // Predicated region
        $region103: #{_lambda_.5} parent=93 // pred_check
          %p894 = pneg %p183
        $region104: #{_lambda_.5} parent=93 // pred_check_branch
          %896 = sbr.rel (%p894) target = $region106
        $region105: #{_lambda_.5} parent=93 // pred_region
          %p897 = scmp.lt.s32.totalorder %s19, 1
          %s898 = scalar_select %p897, %s19, 1
          %s899 = smul.addr %s898, 8
          %s900 = smul.addr %s899, 8
          %s901 = scalar_lea.vmem %s6, %s900
        $region106: #{_lambda_.5} parent=93 // pred_fallthru
          _
      $region94: #{_lambda_.5} parent=5 // pred_fallthru
        _
    $region6: #{_lambda_.5} parent=1 // loop_footer
      %s17 = sadd.s32 1, %s13
    $region7: #{_lambda_.5} parent=1 // loop_footer_branch
      %12 = sbr.rel target = $region3
    $region8: #{_lambda_.5} parent=1 // loop_exit
      _

</llo_original>
